<compile_context>
chip_gen: v5e
topology: v5e:2x2
jax: 0.10.0
libtpu: 0.0.40
codegen_flags: <defaults>
</compile_context>

<pallas_src>
import jax
import jax.numpy as jnp
from jax.experimental import pallas as pl
from jax.experimental.pallas import tpu as pltpu

INPUT_DIM = 784
ENCODING_DIM = 32
H1, H2 = 128, 64  # hidden sizes


def _autoencoder_kernel(
    x_ref,
    w1_ref, b1_ref,
    w2_ref, b2_ref,
    w3_ref, b3_ref,
    w4_ref, b4_ref,
    w5_ref, b5_ref,
    w6_ref, b6_ref,
    o_ref,
):
    """Full autoencoder forward for one batch tile, entirely in VMEM."""

    def dense(h_bf16, w_ref, b_ref):
        # bf16 x bf16 matmul on the MXU, f32 accumulation, f32 bias add.
        return (
            jnp.dot(h_bf16, w_ref[...], preferred_element_type=jnp.float32)
            + b_ref[...]
        )

    def relu_bf16(z):
        return jnp.maximum(z, 0.0).astype(jnp.bfloat16)

    h = x_ref[...].astype(jnp.bfloat16)              # (tile, 784)
    # encoder
    h = relu_bf16(dense(h, w1_ref, b1_ref))          # (tile, 128)
    h = relu_bf16(dense(h, w2_ref, b2_ref))          # (tile, 64)
    h = relu_bf16(dense(h, w3_ref, b3_ref))          # (tile, 32)
    # decoder
    h = relu_bf16(dense(h, w4_ref, b4_ref))          # (tile, 64)
    h = relu_bf16(dense(h, w5_ref, b5_ref))          # (tile, 128)
    z = dense(h, w6_ref, b6_ref)                     # (tile, 784) f32
    # sigmoid: exp on EUP, approx reciprocal on EUP (keeps VALU free);
    # bf16 store halves the output HBM stream.
    y = pl.reciprocal(1.0 + jnp.exp(-z), approx=True)
    o_ref[...] = y.astype(o_ref.dtype)


def prepare_params(params):
    """One-time prep (hoisted out of the forward path): cast weights to bf16,
    keep biases as (1, fan_out) float32 rows for clean sublane broadcast."""
    flat = []
    for w, b in params:
        flat.append(w.astype(jnp.bfloat16))
        flat.append(b.reshape(1, -1).astype(jnp.float32))
    return flat


def autoencoder_forward(x, flat_params, *, batch_tile=512):
    """x: (B, 784) float32.  flat_params: output of prepare_params()."""
    B, D = x.shape
    assert D == INPUT_DIM

    # Keep the grid length >= 2 so both v7x TensorCores get work on the
    # "parallel" batch axis (no effect on v5e/v6e beyond smaller tiles).
    if pl.cdiv(B, batch_tile) < 2 and B > 8:
        batch_tile = max(8, (((B + 1) // 2) + 7) // 8 * 8)
    n_tiles = pl.cdiv(B, batch_tile)

    in_specs = [pl.BlockSpec((batch_tile, INPUT_DIM), lambda i: (i, 0))]
    for arr in flat_params:
        # Whole weight / bias resident in VMEM; constant index map means no
        # re-DMA across grid steps.  (ndim bound at definition time.)
        in_specs.append(pl.BlockSpec(arr.shape, lambda i, nd=arr.ndim: (0,) * nd))

    out_spec = pl.BlockSpec((batch_tile, INPUT_DIM), lambda i: (i, 0))

    fn = pl.pallas_call(
        _autoencoder_kernel,
        out_shape=jax.ShapeDtypeStruct((B, INPUT_DIM), jnp.bfloat16),
        grid_spec=pltpu.PrefetchScalarGridSpec(
            num_scalar_prefetch=0,
            grid=(n_tiles,),
            in_specs=in_specs,
            out_specs=out_spec,
        ),
        compiler_params=pltpu.CompilerParams(
            dimension_semantics=("parallel",),
        ),
    )
    return fn(x, *flat_params)


def init_params(key):
    """Deterministic init mimicking PyTorch Linear default (U(-1/sqrt(fan_in), +))."""
    dims = [INPUT_DIM, H1, H2, ENCODING_DIM, H2, H1, INPUT_DIM]
    params = []
    for i in range(len(dims) - 1):
        fan_in, fan_out = dims[i], dims[i + 1]
        key, kw, kb = jax.random.split(key, 3)
        bound = 1.0 / (fan_in ** 0.5)
        # Stored as (in, out): transposed relative to PyTorch's (out, in).
        w = jax.random.uniform(kw, (fan_in, fan_out), jnp.float32, -bound, bound)
        b = jax.random.uniform(kb, (fan_out,), jnp.float32, -bound, bound)
        params.append((w, b))
    return params


def reference_forward(x, params):
    """Plain-JAX reference with the same bf16-matmul / f32-accumulate math."""
    h = x.astype(jnp.bfloat16)
    for i, (w, b) in enumerate(params):
        z = jnp.dot(h, w.astype(jnp.bfloat16),
                    preferred_element_type=jnp.float32) + b
        if i < len(params) - 1:
            h = jnp.maximum(z, 0.0).astype(jnp.bfloat16)
        else:
            h = jax.nn.sigmoid(z)
    return h


if __name__ == "__main__":
    key = jax.random.PRNGKey(0)
    key, kx = jax.random.split(key)

    # 500 rows: not a tile multiple -> exercises the partial-block edge tile
    # and the >=2-grid-steps heuristic (tile auto-drops 512 -> 256, grid = 2).
    B = 500
    x = jax.random.normal(kx, (B, INPUT_DIM), jnp.float32)

    params = init_params(key)
    flat = prepare_params(params)          # one-time, outside the forward path

    fwd = jax.jit(autoencoder_forward, static_argnames=("batch_tile",))
    out = jax.block_until_ready(fwd(x, flat))

    ref = jax.block_until_ready(reference_forward(x, params))

    assert out.shape == (B, INPUT_DIM)
    assert out.dtype == jnp.bfloat16
    out_f32 = out.astype(jnp.float32)
    assert bool(jnp.all(jnp.isfinite(out_f32)))
    max_err = float(jnp.max(jnp.abs(out_f32 - ref)))
    assert max_err < 2e-2, f"max abs error {max_err}"

    print("KERNEL_OK")
</pallas_src>

<mosaic_0001>
module attributes {stable_mosaic.version = 11 : i64} {
  func.func @_autoencoder_kernel(%arg0: i32, %arg1: memref<256x784xf32, #tpu.memory_space<vmem>>, %arg2: memref<784x128xbf16, #tpu.memory_space<vmem>>, %arg3: memref<1x128xf32, #tpu.memory_space<vmem>>, %arg4: memref<128x64xbf16, #tpu.memory_space<vmem>>, %arg5: memref<1x64xf32, #tpu.memory_space<vmem>>, %arg6: memref<64x32xbf16, #tpu.memory_space<vmem>>, %arg7: memref<1x32xf32, #tpu.memory_space<vmem>>, %arg8: memref<32x64xbf16, #tpu.memory_space<vmem>>, %arg9: memref<1x64xf32, #tpu.memory_space<vmem>>, %arg10: memref<64x128xbf16, #tpu.memory_space<vmem>>, %arg11: memref<1x128xf32, #tpu.memory_space<vmem>>, %arg12: memref<128x784xbf16, #tpu.memory_space<vmem>>, %arg13: memref<1x784xf32, #tpu.memory_space<vmem>>, %arg14: memref<256x784xbf16, #tpu.memory_space<vmem>>) attributes {dimension_semantics = [#tpu.dimension_semantics<parallel>], iteration_bounds = array<i64: 2>, scalar_prefetch = 0 : i64, scratch_operands = 0 : i64, tpu.core_type = #tpu.core_type<tc>, window_params = [{transform_indices = @transform_0, window_bounds = array<i64: 256, 784>}, {pipeline_mode = #tpu.pipeline_mode<synchronous>, transform_indices = @transform_1, window_bounds = array<i64: 784, 128>}, {pipeline_mode = #tpu.pipeline_mode<synchronous>, transform_indices = @transform_2, window_bounds = array<i64: 1, 128>}, {pipeline_mode = #tpu.pipeline_mode<synchronous>, transform_indices = @transform_3, window_bounds = array<i64: 128, 64>}, {pipeline_mode = #tpu.pipeline_mode<synchronous>, transform_indices = @transform_4, window_bounds = array<i64: 1, 64>}, {pipeline_mode = #tpu.pipeline_mode<synchronous>, transform_indices = @transform_5, window_bounds = array<i64: 64, 32>}, {pipeline_mode = #tpu.pipeline_mode<synchronous>, transform_indices = @transform_6, window_bounds = array<i64: 1, 32>}, {pipeline_mode = #tpu.pipeline_mode<synchronous>, transform_indices = @transform_7, window_bounds = array<i64: 32, 64>}, {pipeline_mode = #tpu.pipeline_mode<synchronous>, transform_indices = @transform_8, window_bounds = array<i64: 1, 64>}, {pipeline_mode = #tpu.pipeline_mode<synchronous>, transform_indices = @transform_9, window_bounds = array<i64: 64, 128>}, {pipeline_mode = #tpu.pipeline_mode<synchronous>, transform_indices = @transform_10, window_bounds = array<i64: 1, 128>}, {pipeline_mode = #tpu.pipeline_mode<synchronous>, transform_indices = @transform_11, window_bounds = array<i64: 128, 784>}, {pipeline_mode = #tpu.pipeline_mode<synchronous>, transform_indices = @transform_12, window_bounds = array<i64: 1, 784>}, {transform_indices = @transform_13, window_bounds = array<i64: 256, 784>}]} {
    %c0 = arith.constant 0 : index
    %c0_0 = arith.constant 0 : index
    %0 = vector.load %arg1[%c0, %c0_0] : memref<256x784xf32, #tpu.memory_space<vmem>>, vector<256x784xf32>
    %1 = arith.truncf %0 : vector<256x784xf32> to vector<256x784xbf16>
    %c0_1 = arith.constant 0 : index
    %c0_2 = arith.constant 0 : index
    %2 = vector.load %arg2[%c0_1, %c0_2] : memref<784x128xbf16, #tpu.memory_space<vmem>>, vector<784x128xbf16>
    %cst = arith.constant dense<0.000000e+00> : vector<256x128xf32>
    %3 = tpu.matmul %1, %2, %cst {dimension_numbers = #tpu.dot_dimension_numbers<[1], [0], [0], [1], [0, 0, 1, 1], [], []>} : vector<256x784xbf16>, vector<784x128xbf16>, vector<256x128xf32> -> vector<256x128xf32>
    %c0_3 = arith.constant 0 : index
    %c0_4 = arith.constant 0 : index
    %4 = vector.load %arg3[%c0_3, %c0_4] : memref<1x128xf32, #tpu.memory_space<vmem>>, vector<1x128xf32>
    %5 = vector.broadcast %4 : vector<1x128xf32> to vector<256x128xf32>
    %6 = arith.addf %3, %5 : vector<256x128xf32>
    %cst_5 = arith.constant 0.000000e+00 : f32
    %7 = vector.broadcast %cst_5 : f32 to vector<256x128xf32>
    %8 = arith.maximumf %6, %7 : vector<256x128xf32>
    %9 = arith.truncf %8 : vector<256x128xf32> to vector<256x128xbf16>
    %c0_6 = arith.constant 0 : index
    %c0_7 = arith.constant 0 : index
    %10 = vector.load %arg4[%c0_6, %c0_7] : memref<128x64xbf16, #tpu.memory_space<vmem>>, vector<128x64xbf16>
    %cst_8 = arith.constant dense<0.000000e+00> : vector<256x64xf32>
    %11 = tpu.matmul %9, %10, %cst_8 {dimension_numbers = #tpu.dot_dimension_numbers<[1], [0], [0], [1], [0, 0, 1, 1], [], []>} : vector<256x128xbf16>, vector<128x64xbf16>, vector<256x64xf32> -> vector<256x64xf32>
    %c0_9 = arith.constant 0 : index
    %c0_10 = arith.constant 0 : index
    %12 = vector.load %arg5[%c0_9, %c0_10] : memref<1x64xf32, #tpu.memory_space<vmem>>, vector<1x64xf32>
    %13 = vector.broadcast %12 : vector<1x64xf32> to vector<256x64xf32>
    %14 = arith.addf %11, %13 : vector<256x64xf32>
    %cst_11 = arith.constant 0.000000e+00 : f32
    %15 = vector.broadcast %cst_11 : f32 to vector<256x64xf32>
    %16 = arith.maximumf %14, %15 : vector<256x64xf32>
    %17 = arith.truncf %16 : vector<256x64xf32> to vector<256x64xbf16>
    %c0_12 = arith.constant 0 : index
    %c0_13 = arith.constant 0 : index
    %18 = vector.load %arg6[%c0_12, %c0_13] : memref<64x32xbf16, #tpu.memory_space<vmem>>, vector<64x32xbf16>
    %cst_14 = arith.constant dense<0.000000e+00> : vector<256x32xf32>
    %19 = tpu.matmul %17, %18, %cst_14 {dimension_numbers = #tpu.dot_dimension_numbers<[1], [0], [0], [1], [0, 0, 1, 1], [], []>} : vector<256x64xbf16>, vector<64x32xbf16>, vector<256x32xf32> -> vector<256x32xf32>
    %c0_15 = arith.constant 0 : index
    %c0_16 = arith.constant 0 : index
    %20 = vector.load %arg7[%c0_15, %c0_16] : memref<1x32xf32, #tpu.memory_space<vmem>>, vector<1x32xf32>
    %21 = vector.broadcast %20 : vector<1x32xf32> to vector<256x32xf32>
    %22 = arith.addf %19, %21 : vector<256x32xf32>
    %cst_17 = arith.constant 0.000000e+00 : f32
    %23 = vector.broadcast %cst_17 : f32 to vector<256x32xf32>
    %24 = arith.maximumf %22, %23 : vector<256x32xf32>
    %25 = arith.truncf %24 : vector<256x32xf32> to vector<256x32xbf16>
    %c0_18 = arith.constant 0 : index
    %c0_19 = arith.constant 0 : index
    %26 = vector.load %arg8[%c0_18, %c0_19] : memref<32x64xbf16, #tpu.memory_space<vmem>>, vector<32x64xbf16>
    %cst_20 = arith.constant dense<0.000000e+00> : vector<256x64xf32>
    %27 = tpu.matmul %25, %26, %cst_20 {dimension_numbers = #tpu.dot_dimension_numbers<[1], [0], [0], [1], [0, 0, 1, 1], [], []>} : vector<256x32xbf16>, vector<32x64xbf16>, vector<256x64xf32> -> vector<256x64xf32>
    %c0_21 = arith.constant 0 : index
    %c0_22 = arith.constant 0 : index
    %28 = vector.load %arg9[%c0_21, %c0_22] : memref<1x64xf32, #tpu.memory_space<vmem>>, vector<1x64xf32>
    %29 = vector.broadcast %28 : vector<1x64xf32> to vector<256x64xf32>
    %30 = arith.addf %27, %29 : vector<256x64xf32>
    %cst_23 = arith.constant 0.000000e+00 : f32
    %31 = vector.broadcast %cst_23 : f32 to vector<256x64xf32>
    %32 = arith.maximumf %30, %31 : vector<256x64xf32>
    %33 = arith.truncf %32 : vector<256x64xf32> to vector<256x64xbf16>
    %c0_24 = arith.constant 0 : index
    %c0_25 = arith.constant 0 : index
    %34 = vector.load %arg10[%c0_24, %c0_25] : memref<64x128xbf16, #tpu.memory_space<vmem>>, vector<64x128xbf16>
    %cst_26 = arith.constant dense<0.000000e+00> : vector<256x128xf32>
    %35 = tpu.matmul %33, %34, %cst_26 {dimension_numbers = #tpu.dot_dimension_numbers<[1], [0], [0], [1], [0, 0, 1, 1], [], []>} : vector<256x64xbf16>, vector<64x128xbf16>, vector<256x128xf32> -> vector<256x128xf32>
    %c0_27 = arith.constant 0 : index
    %c0_28 = arith.constant 0 : index
    %36 = vector.load %arg11[%c0_27, %c0_28] : memref<1x128xf32, #tpu.memory_space<vmem>>, vector<1x128xf32>
    %37 = vector.broadcast %36 : vector<1x128xf32> to vector<256x128xf32>
    %38 = arith.addf %35, %37 : vector<256x128xf32>
    %cst_29 = arith.constant 0.000000e+00 : f32
    %39 = vector.broadcast %cst_29 : f32 to vector<256x128xf32>
    %40 = arith.maximumf %38, %39 : vector<256x128xf32>
    %41 = arith.truncf %40 : vector<256x128xf32> to vector<256x128xbf16>
    %c0_30 = arith.constant 0 : index
    %c0_31 = arith.constant 0 : index
    %42 = vector.load %arg12[%c0_30, %c0_31] : memref<128x784xbf16, #tpu.memory_space<vmem>>, vector<128x784xbf16>
    %cst_32 = arith.constant dense<0.000000e+00> : vector<256x784xf32>
    %43 = tpu.matmul %41, %42, %cst_32 {dimension_numbers = #tpu.dot_dimension_numbers<[1], [0], [0], [1], [0, 0, 1, 1], [], []>} : vector<256x128xbf16>, vector<128x784xbf16>, vector<256x784xf32> -> vector<256x784xf32>
    %c0_33 = arith.constant 0 : index
    %c0_34 = arith.constant 0 : index
    %44 = vector.load %arg13[%c0_33, %c0_34] : memref<1x784xf32, #tpu.memory_space<vmem>>, vector<1x784xf32>
    %45 = vector.broadcast %44 : vector<1x784xf32> to vector<256x784xf32>
    %46 = arith.addf %43, %45 : vector<256x784xf32>
    %cst_35 = arith.constant 0.000000e+00 : f32
    %47 = vector.broadcast %cst_35 : f32 to vector<256x784xf32>
    %48 = arith.subf %47, %46 : vector<256x784xf32>
    %49 = math.exp %48 : vector<256x784xf32>
    %cst_36 = arith.constant 1.000000e+00 : f32
    %50 = vector.broadcast %cst_36 : f32 to vector<256x784xf32>
    %51 = arith.addf %50, %49 : vector<256x784xf32>
    %52 = tpu.reciprocal %51 {approx = true} : vector<256x784xf32> -> vector<256x784xf32>
    %53 = arith.truncf %52 : vector<256x784xf32> to vector<256x784xbf16>
    %c0_37 = arith.constant 0 : index
    %c0_38 = arith.constant 0 : index
    %54 = vector.load %arg14[%c0_37, %c0_38] : memref<256x784xbf16, #tpu.memory_space<vmem>>, vector<256x784xbf16>
    tpu.vector_store %arg14[%c0_37, %c0_38], %53 {strides = array<i32>} : memref<256x784xbf16, #tpu.memory_space<vmem>>, vector<256x784xbf16>,
    return
  }
  func.func @transform_0(%arg0: i32) -> (i32, i32) {
    %c0_i32 = arith.constant 0 : i32
    %c0_i32_0 = arith.constant 0 : i32
    return %arg0, %c0_i32 : i32, i32
  }
  func.func @transform_1(%arg0: i32) -> (i32, i32) {
    %c0_i32 = arith.constant 0 : i32
    %c0_i32_0 = arith.constant 0 : i32
    %c0_i32_1 = arith.constant 0 : i32
    return %c0_i32, %c0_i32_0 : i32, i32
  }
  func.func @transform_2(%arg0: i32) -> (i32, i32) {
    %c0_i32 = arith.constant 0 : i32
    %c0_i32_0 = arith.constant 0 : i32
    %c0_i32_1 = arith.constant 0 : i32
    return %c0_i32, %c0_i32_0 : i32, i32
  }
  func.func @transform_3(%arg0: i32) -> (i32, i32) {
    %c0_i32 = arith.constant 0 : i32
    %c0_i32_0 = arith.constant 0 : i32
    %c0_i32_1 = arith.constant 0 : i32
    return %c0_i32, %c0_i32_0 : i32, i32
  }
  func.func @transform_4(%arg0: i32) -> (i32, i32) {
    %c0_i32 = arith.constant 0 : i32
    %c0_i32_0 = arith.constant 0 : i32
    %c0_i32_1 = arith.constant 0 : i32
    return %c0_i32, %c0_i32_0 : i32, i32
  }
  func.func @transform_5(%arg0: i32) -> (i32, i32) {
    %c0_i32 = arith.constant 0 : i32
    %c0_i32_0 = arith.constant 0 : i32
    %c0_i32_1 = arith.constant 0 : i32
    return %c0_i32, %c0_i32_0 : i32, i32
  }
  func.func @transform_6(%arg0: i32) -> (i32, i32) {
    %c0_i32 = arith.constant 0 : i32
    %c0_i32_0 = arith.constant 0 : i32
    %c0_i32_1 = arith.constant 0 : i32
    return %c0_i32, %c0_i32_0 : i32, i32
  }
  func.func @transform_7(%arg0: i32) -> (i32, i32) {
    %c0_i32 = arith.constant 0 : i32
    %c0_i32_0 = arith.constant 0 : i32
    %c0_i32_1 = arith.constant 0 : i32
    return %c0_i32, %c0_i32_0 : i32, i32
  }
  func.func @transform_8(%arg0: i32) -> (i32, i32) {
    %c0_i32 = arith.constant 0 : i32
    %c0_i32_0 = arith.constant 0 : i32
    %c0_i32_1 = arith.constant 0 : i32
    return %c0_i32, %c0_i32_0 : i32, i32
  }
  func.func @transform_9(%arg0: i32) -> (i32, i32) {
    %c0_i32 = arith.constant 0 : i32
    %c0_i32_0 = arith.constant 0 : i32
    %c0_i32_1 = arith.constant 0 : i32
    return %c0_i32, %c0_i32_0 : i32, i32
  }
  func.func @transform_10(%arg0: i32) -> (i32, i32) {
    %c0_i32 = arith.constant 0 : i32
    %c0_i32_0 = arith.constant 0 : i32
    %c0_i32_1 = arith.constant 0 : i32
    return %c0_i32, %c0_i32_0 : i32, i32
  }
  func.func @transform_11(%arg0: i32) -> (i32, i32) {
    %c0_i32 = arith.constant 0 : i32
    %c0_i32_0 = arith.constant 0 : i32
    %c0_i32_1 = arith.constant 0 : i32
    return %c0_i32, %c0_i32_0 : i32, i32
  }
  func.func @transform_12(%arg0: i32) -> (i32, i32) {
    %c0_i32 = arith.constant 0 : i32
    %c0_i32_0 = arith.constant 0 : i32
    %c0_i32_1 = arith.constant 0 : i32
    return %c0_i32, %c0_i32_0 : i32, i32
  }
  func.func @transform_13(%arg0: i32) -> (i32, i32) {
    %c0_i32 = arith.constant 0 : i32
    %c0_i32_0 = arith.constant 0 : i32
    return %arg0, %c0_i32 : i32, i32
  }
}

</mosaic_0001>

<llo_original>
// kernel: autoencoder_forward.1
$region0: #{autoencoder_forward.1}
  #allocation0 [shape = 'u32[]', space=smem, size = 0x4, offset = 0x4, fixed_abs, tag = 'smem constant byte address 0x4 - core index']
  #allocation1 [shape = 'u32[72,128]{1,0:T(1,128)}', space=vmem, size = 0x9000, scoped, tag = 'internal scratch']
  %s0 = inlined_call_operand.vmem [shape: f32[500,784], index: 0, kind: input, shape index: {}]
  %s1 = inlined_call_operand.vmem [shape: bf16[784,128], index: 1, kind: input, shape index: {}]
  %s2 = inlined_call_operand.vmem [shape: f32[1,128], index: 2, kind: input, shape index: {}]
  %s3 = inlined_call_operand.vmem [shape: bf16[128,64], index: 3, kind: input, shape index: {}]
  %s4 = inlined_call_operand.vmem [shape: f32[1,64], index: 4, kind: input, shape index: {}]
  %s5 = inlined_call_operand.vmem [shape: bf16[64,32], index: 5, kind: input, shape index: {}]
  %s6 = inlined_call_operand.vmem [shape: f32[1,32], index: 6, kind: input, shape index: {}]
  %s7 = inlined_call_operand.vmem [shape: bf16[32,64], index: 7, kind: input, shape index: {}]
  %s8 = inlined_call_operand.vmem [shape: f32[1,64], index: 8, kind: input, shape index: {}]
  %s9 = inlined_call_operand.vmem [shape: bf16[64,128], index: 9, kind: input, shape index: {}]
  %s10 = inlined_call_operand.vmem [shape: f32[1,128], index: 10, kind: input, shape index: {}]
  %s11 = inlined_call_operand.vmem [shape: bf16[128,784], index: 11, kind: input, shape index: {}]
  %s12 = inlined_call_operand.vmem [shape: f32[1,784], index: 12, kind: input, shape index: {}]
  %s13 = inlined_call_operand.vmem [shape: bf16[500,784], index: 13, kind: output, shape index: {}]
  %s14 = sld [smem:[#allocation0]]
  $region121: #{autoencoder_forward.1} parent=0
    _
  %s16 = ssub.s32 1, %s14
  %s17 = scalar_select 0, %s16, %s14
  $region1: #{autoencoder_forward.1} parent=0
    #allocation2 [shape = 'u8[917504]{0}', space=vmem, size = 0xe0000, scoped, tag = 'output window, operand 0']
    loop: start=0, step=1, limit=4
    $region2: #{autoencoder_forward.1} parent=1 // loop_pre_header
      _
    $region3: #{autoencoder_forward.1} parent=1 // loop_header
      %s19 = sphi 0, %s23
      %p20 = scmp.ge.s32.totalorder %s19, 4
      %s29 = sphi 0, %s31
      %s32 = sphi 0, %s29
      %s33 = sphi 0, %s32
      %s49 = sphi 0, %s33
      %s53 = sphi 0, %s53
      %s55 = sphi 0, %s53
      %s56 = sphi 0, %s55
      %s70 = sphi 0, %s56
      %s74 = sphi 0, %s74
      %s76 = sphi 0, %s74
      %s77 = sphi 0, %s76
      %s91 = sphi 0, %s77
      %s95 = sphi 0, %s95
      %s97 = sphi 0, %s95
      %s98 = sphi 0, %s97
      %s112 = sphi 0, %s98
      %s116 = sphi 0, %s116
      %s118 = sphi 0, %s116
      %s119 = sphi 0, %s118
      %s133 = sphi 0, %s119
      %s137 = sphi 0, %s137
      %s139 = sphi 0, %s137
      %s140 = sphi 0, %s139
      %s154 = sphi 0, %s140
      %s158 = sphi 0, %s158
      %s160 = sphi 0, %s158
      %s161 = sphi 0, %s160
      %s175 = sphi 0, %s161
      %s179 = sphi 0, %s179
      %s181 = sphi 0, %s179
      %s182 = sphi 0, %s181
      %s196 = sphi 0, %s182
      %s200 = sphi 0, %s200
      %s202 = sphi 0, %s200
      %s203 = sphi 0, %s202
      %s217 = sphi 0, %s203
      %s221 = sphi 0, %s221
      %s223 = sphi 0, %s221
      %s224 = sphi 0, %s223
      %s238 = sphi 0, %s224
      %s242 = sphi 0, %s242
      %s244 = sphi 0, %s242
      %s245 = sphi 0, %s244
      %s259 = sphi 0, %s245
      %s263 = sphi 0, %s263
      %s265 = sphi 0, %s263
      %s266 = sphi 0, %s265
      %s280 = sphi 0, %s266
      %s284 = sphi 0, %s284
      %s286 = sphi 0, %s284
      %s287 = sphi 0, %s286
      %s301 = sphi 0, %s287
      %s307 = sphi 0, %s309
      %s310 = sphi 0, %s307
      %s311 = sphi 0, %s310
      %s327 = sphi 0, %s311
    $region4: #{autoencoder_forward.1} parent=1 // loop_header_branch
      %22 = sbr.rel (%p20) target = $region8
    $region5: #{autoencoder_forward.1} parent=1 // loop_body
      %s24 = ssub.s32 %s19, 1
      %s25 = ssub.s32 %s19, 2
      %s26 = sadd.s32 %s19, 1
      %s27 = ssub.s32 %s19, %s26
      %p28 = scmp.eq.s32.totalorder %s27, 0
      %s30 = sadd.s32 %s29, 1
      %s31 = scalar_select %p28, %s29, %s30
      %p34 = pneg %p28
      %p35 = scmp.eq.s32.totalorder %s19, 1
      %p36 = por %p34, %p35
      %p37 = scmp.ne.s32.totalorder %s29, %s32
      %p38 = scmp.eq.s32.totalorder %s19, 0
      %p39 = por %p37, %p38
      %p40 = scmp.ne.s32.totalorder %s29, %s32
      %p41 = scmp.eq.s32.totalorder %s24, 1
      %p42 = por %p40, %p41
      %p43 = scmp.ne.s32.totalorder %s32, %s33
      %p44 = scmp.eq.s32.totalorder %s24, 0
      %p45 = por %p43, %p44
      %p46 = scmp.ne.s32.totalorder %s32, %s33
      %p47 = scmp.eq.s32.totalorder %s25, 1
      %p48 = por %p46, %p47
      %p50 = scmp.ne.s32.totalorder %s33, %s49
      %p51 = scmp.eq.s32.totalorder %s25, 0
      %p52 = por %p50, %p51
      %s54 = sadd.s32 %s53, 1
      %p57 = scmp.eq.s32.totalorder %s19, 1
      %p58 = scmp.ne.s32.totalorder %s53, %s55
      %p59 = scmp.eq.s32.totalorder %s19, 0
      %p60 = por %p58, %p59
      %p61 = scmp.ne.s32.totalorder %s53, %s55
      %p62 = scmp.eq.s32.totalorder %s24, 1
      %p63 = por %p61, %p62
      %p64 = scmp.ne.s32.totalorder %s55, %s56
      %p65 = scmp.eq.s32.totalorder %s24, 0
      %p66 = por %p64, %p65
      %p67 = scmp.ne.s32.totalorder %s55, %s56
      %p68 = scmp.eq.s32.totalorder %s25, 1
      %p69 = por %p67, %p68
      %p71 = scmp.ne.s32.totalorder %s56, %s70
      %p72 = scmp.eq.s32.totalorder %s25, 0
      %p73 = por %p71, %p72
      %s75 = sadd.s32 %s74, 1
      %p78 = scmp.eq.s32.totalorder %s19, 1
      %p79 = scmp.ne.s32.totalorder %s74, %s76
      %p80 = scmp.eq.s32.totalorder %s19, 0
      %p81 = por %p79, %p80
      %p82 = scmp.ne.s32.totalorder %s74, %s76
      %p83 = scmp.eq.s32.totalorder %s24, 1
      %p84 = por %p82, %p83
      %p85 = scmp.ne.s32.totalorder %s76, %s77
      %p86 = scmp.eq.s32.totalorder %s24, 0
      %p87 = por %p85, %p86
      %p88 = scmp.ne.s32.totalorder %s76, %s77
      %p89 = scmp.eq.s32.totalorder %s25, 1
      %p90 = por %p88, %p89
      %p92 = scmp.ne.s32.totalorder %s77, %s91
      %p93 = scmp.eq.s32.totalorder %s25, 0
      %p94 = por %p92, %p93
      %s96 = sadd.s32 %s95, 1
      %p99 = scmp.eq.s32.totalorder %s19, 1
      %p100 = scmp.ne.s32.totalorder %s95, %s97
      %p101 = scmp.eq.s32.totalorder %s19, 0
      %p102 = por %p100, %p101
      %p103 = scmp.ne.s32.totalorder %s95, %s97
      %p104 = scmp.eq.s32.totalorder %s24, 1
      %p105 = por %p103, %p104
      %p106 = scmp.ne.s32.totalorder %s97, %s98
      %p107 = scmp.eq.s32.totalorder %s24, 0
      %p108 = por %p106, %p107
      %p109 = scmp.ne.s32.totalorder %s97, %s98
      %p110 = scmp.eq.s32.totalorder %s25, 1
      %p111 = por %p109, %p110
      %p113 = scmp.ne.s32.totalorder %s98, %s112
      %p114 = scmp.eq.s32.totalorder %s25, 0
      %p115 = por %p113, %p114
      %s117 = sadd.s32 %s116, 1
      %p120 = scmp.eq.s32.totalorder %s19, 1
      %p121 = scmp.ne.s32.totalorder %s116, %s118
      %p122 = scmp.eq.s32.totalorder %s19, 0
      %p123 = por %p121, %p122
      %p124 = scmp.ne.s32.totalorder %s116, %s118
      %p125 = scmp.eq.s32.totalorder %s24, 1
      %p126 = por %p124, %p125
      %p127 = scmp.ne.s32.totalorder %s118, %s119
      %p128 = scmp.eq.s32.totalorder %s24, 0
      %p129 = por %p127, %p128
      %p130 = scmp.ne.s32.totalorder %s118, %s119
      %p131 = scmp.eq.s32.totalorder %s25, 1
      %p132 = por %p130, %p131
      %p134 = scmp.ne.s32.totalorder %s119, %s133
      %p135 = scmp.eq.s32.totalorder %s25, 0
      %p136 = por %p134, %p135
      %s138 = sadd.s32 %s137, 1
      %p141 = scmp.eq.s32.totalorder %s19, 1
      %p142 = scmp.ne.s32.totalorder %s137, %s139
      %p143 = scmp.eq.s32.totalorder %s19, 0
      %p144 = por %p142, %p143
      %p145 = scmp.ne.s32.totalorder %s137, %s139
      %p146 = scmp.eq.s32.totalorder %s24, 1
      %p147 = por %p145, %p146
      %p148 = scmp.ne.s32.totalorder %s139, %s140
      %p149 = scmp.eq.s32.totalorder %s24, 0
      %p150 = por %p148, %p149
      %p151 = scmp.ne.s32.totalorder %s139, %s140
      %p152 = scmp.eq.s32.totalorder %s25, 1
      %p153 = por %p151, %p152
      %p155 = scmp.ne.s32.totalorder %s140, %s154
      %p156 = scmp.eq.s32.totalorder %s25, 0
      %p157 = por %p155, %p156
      %s159 = sadd.s32 %s158, 1
      %p162 = scmp.eq.s32.totalorder %s19, 1
      %p163 = scmp.ne.s32.totalorder %s158, %s160
      %p164 = scmp.eq.s32.totalorder %s19, 0
      %p165 = por %p163, %p164
      %p166 = scmp.ne.s32.totalorder %s158, %s160
      %p167 = scmp.eq.s32.totalorder %s24, 1
      %p168 = por %p166, %p167
      %p169 = scmp.ne.s32.totalorder %s160, %s161
      %p170 = scmp.eq.s32.totalorder %s24, 0
      %p171 = por %p169, %p170
      %p172 = scmp.ne.s32.totalorder %s160, %s161
      %p173 = scmp.eq.s32.totalorder %s25, 1
      %p174 = por %p172, %p173
      %p176 = scmp.ne.s32.totalorder %s161, %s175
      %p177 = scmp.eq.s32.totalorder %s25, 0
      %p178 = por %p176, %p177
      %s180 = sadd.s32 %s179, 1
      %p183 = scmp.eq.s32.totalorder %s19, 1
      %p184 = scmp.ne.s32.totalorder %s179, %s181
      %p185 = scmp.eq.s32.totalorder %s19, 0
      %p186 = por %p184, %p185
      %p187 = scmp.ne.s32.totalorder %s179, %s181
      %p188 = scmp.eq.s32.totalorder %s24, 1
      %p189 = por %p187, %p188
      %p190 = scmp.ne.s32.totalorder %s181, %s182
      %p191 = scmp.eq.s32.totalorder %s24, 0
      %p192 = por %p190, %p191
      %p193 = scmp.ne.s32.totalorder %s181, %s182
      %p194 = scmp.eq.s32.totalorder %s25, 1
      %p195 = por %p193, %p194
      %p197 = scmp.ne.s32.totalorder %s182, %s196
      %p198 = scmp.eq.s32.totalorder %s25, 0
      %p199 = por %p197, %p198
      %s201 = sadd.s32 %s200, 1
      %p204 = scmp.eq.s32.totalorder %s19, 1
      %p205 = scmp.ne.s32.totalorder %s200, %s202
      %p206 = scmp.eq.s32.totalorder %s19, 0
      %p207 = por %p205, %p206
      %p208 = scmp.ne.s32.totalorder %s200, %s202
      %p209 = scmp.eq.s32.totalorder %s24, 1
      %p210 = por %p208, %p209
      %p211 = scmp.ne.s32.totalorder %s202, %s203
      %p212 = scmp.eq.s32.totalorder %s24, 0
      %p213 = por %p211, %p212
      %p214 = scmp.ne.s32.totalorder %s202, %s203
      %p215 = scmp.eq.s32.totalorder %s25, 1
      %p216 = por %p214, %p215
      %p218 = scmp.ne.s32.totalorder %s203, %s217
      %p219 = scmp.eq.s32.totalorder %s25, 0
      %p220 = por %p218, %p219
      %s222 = sadd.s32 %s221, 1
      %p225 = scmp.eq.s32.totalorder %s19, 1
      %p226 = scmp.ne.s32.totalorder %s221, %s223
      %p227 = scmp.eq.s32.totalorder %s19, 0
      %p228 = por %p226, %p227
      %p229 = scmp.ne.s32.totalorder %s221, %s223
      %p230 = scmp.eq.s32.totalorder %s24, 1
      %p231 = por %p229, %p230
      %p232 = scmp.ne.s32.totalorder %s223, %s224
      %p233 = scmp.eq.s32.totalorder %s24, 0
      %p234 = por %p232, %p233
      %p235 = scmp.ne.s32.totalorder %s223, %s224
      %p236 = scmp.eq.s32.totalorder %s25, 1
      %p237 = por %p235, %p236
      %p239 = scmp.ne.s32.totalorder %s224, %s238
      %p240 = scmp.eq.s32.totalorder %s25, 0
      %p241 = por %p239, %p240
      %s243 = sadd.s32 %s242, 1
      %p246 = scmp.eq.s32.totalorder %s19, 1
      %p247 = scmp.ne.s32.totalorder %s242, %s244
      %p248 = scmp.eq.s32.totalorder %s19, 0
      %p249 = por %p247, %p248
      %p250 = scmp.ne.s32.totalorder %s242, %s244
      %p251 = scmp.eq.s32.totalorder %s24, 1
      %p252 = por %p250, %p251
      %p253 = scmp.ne.s32.totalorder %s244, %s245
      %p254 = scmp.eq.s32.totalorder %s24, 0
      %p255 = por %p253, %p254
      %p256 = scmp.ne.s32.totalorder %s244, %s245
      %p257 = scmp.eq.s32.totalorder %s25, 1
      %p258 = por %p256, %p257
      %p260 = scmp.ne.s32.totalorder %s245, %s259
      %p261 = scmp.eq.s32.totalorder %s25, 0
      %p262 = por %p260, %p261
      %s264 = sadd.s32 %s263, 1
      %p267 = scmp.eq.s32.totalorder %s19, 1
      %p268 = scmp.ne.s32.totalorder %s263, %s265
      %p269 = scmp.eq.s32.totalorder %s19, 0
      %p270 = por %p268, %p269
      %p271 = scmp.ne.s32.totalorder %s263, %s265
      %p272 = scmp.eq.s32.totalorder %s24, 1
      %p273 = por %p271, %p272
      %p274 = scmp.ne.s32.totalorder %s265, %s266
      %p275 = scmp.eq.s32.totalorder %s24, 0
      %p276 = por %p274, %p275
      %p277 = scmp.ne.s32.totalorder %s265, %s266
      %p278 = scmp.eq.s32.totalorder %s25, 1
      %p279 = por %p277, %p278
      %p281 = scmp.ne.s32.totalorder %s266, %s280
      %p282 = scmp.eq.s32.totalorder %s25, 0
      %p283 = por %p281, %p282
      %s285 = sadd.s32 %s284, 1
      %p288 = scmp.eq.s32.totalorder %s19, 1
      %p289 = scmp.ne.s32.totalorder %s284, %s286
      %p290 = scmp.eq.s32.totalorder %s19, 0
      %p291 = por %p289, %p290
      %p292 = scmp.ne.s32.totalorder %s284, %s286
      %p293 = scmp.eq.s32.totalorder %s24, 1
      %p294 = por %p292, %p293
      %p295 = scmp.ne.s32.totalorder %s286, %s287
      %p296 = scmp.eq.s32.totalorder %s24, 0
      %p297 = por %p295, %p296
      %p298 = scmp.ne.s32.totalorder %s286, %s287
      %p299 = scmp.eq.s32.totalorder %s25, 1
      %p300 = por %p298, %p299
      %p302 = scmp.ne.s32.totalorder %s287, %s301
      %p303 = scmp.eq.s32.totalorder %s25, 0
      %p304 = por %p302, %p303
      %s305 = ssub.s32 %s19, %s26
      %p306 = scmp.eq.s32.totalorder %s305, 0
      %s308 = sadd.s32 %s307, 1
      %s309 = scalar_select %p306, %s307, %s308
      %p312 = pneg %p306
      %p313 = scmp.eq.s32.totalorder %s19, 1
      %p314 = por %p312, %p313
      %p315 = scmp.ne.s32.totalorder %s307, %s310
      %p316 = scmp.eq.s32.totalorder %s19, 0
      %p317 = por %p315, %p316
      %p318 = scmp.ne.s32.totalorder %s307, %s310
      %p319 = scmp.eq.s32.totalorder %s24, 1
      %p320 = por %p318, %p319
      %p321 = scmp.ne.s32.totalorder %s310, %s311
      %p322 = scmp.eq.s32.totalorder %s24, 0
      %p323 = por %p321, %p322
      %p324 = scmp.ne.s32.totalorder %s310, %s311
      %p325 = scmp.eq.s32.totalorder %s25, 1
      %p326 = por %p324, %p325
      %p328 = scmp.ne.s32.totalorder %s311, %s327
      %p329 = scmp.eq.s32.totalorder %s25, 0
      %p330 = por %p328, %p329
      %p331 = scmp.le.s32.totalorder 1, %s19
      %p332 = scmp.lt.s32.totalorder %s19, 3
      %p333 = pnand %p331, %p332
      %p334 = pneg %p333
      // Predicated region
      $region9: #{autoencoder_forward.1} parent=5 // pred_check
        _
      $region10: #{autoencoder_forward.1} parent=5 // pred_check_branch
        %336 = sbr.rel (%p333) target = $region12
      $region11: #{autoencoder_forward.1} parent=5 // pred_region
        %s337 = ssub.s32 %s19, 1
        // Predicated region
        $region13: #{autoencoder_forward.1} parent=11 // pred_check
          %p338 = pneg %p66
        $region14: #{autoencoder_forward.1} parent=11 // pred_check_branch
          %340 = sbr.rel (%p338) target = $region16
        $region15: #{autoencoder_forward.1} parent=11 // pred_region
          _
        $region16: #{autoencoder_forward.1} parent=11 // pred_fallthru
          _
        // Predicated region
        $region17: #{autoencoder_forward.1} parent=11 // pred_check
          %p341 = pneg %p87
        $region18: #{autoencoder_forward.1} parent=11 // pred_check_branch
          %343 = sbr.rel (%p341) target = $region20
        $region19: #{autoencoder_forward.1} parent=11 // pred_region
          _
        $region20: #{autoencoder_forward.1} parent=11 // pred_fallthru
          _
        // Predicated region
        $region21: #{autoencoder_forward.1} parent=11 // pred_check
          %p344 = pneg %p108
        $region22: #{autoencoder_forward.1} parent=11 // pred_check_branch
          %346 = sbr.rel (%p344) target = $region24
        $region23: #{autoencoder_forward.1} parent=11 // pred_region
          _
        $region24: #{autoencoder_forward.1} parent=11 // pred_fallthru
          _
        // Predicated region
        $region25: #{autoencoder_forward.1} parent=11 // pred_check
          %p347 = pneg %p129
        $region26: #{autoencoder_forward.1} parent=11 // pred_check_branch
          %349 = sbr.rel (%p347) target = $region28
        $region27: #{autoencoder_forward.1} parent=11 // pred_region
          _
        $region28: #{autoencoder_forward.1} parent=11 // pred_fallthru
          _
        // Predicated region
        $region29: #{autoencoder_forward.1} parent=11 // pred_check
          %p350 = pneg %p150
        $region30: #{autoencoder_forward.1} parent=11 // pred_check_branch
          %352 = sbr.rel (%p350) target = $region32
        $region31: #{autoencoder_forward.1} parent=11 // pred_region
          _
        $region32: #{autoencoder_forward.1} parent=11 // pred_fallthru
          _
        // Predicated region
        $region33: #{autoencoder_forward.1} parent=11 // pred_check
          %p353 = pneg %p171
        $region34: #{autoencoder_forward.1} parent=11 // pred_check_branch
          %355 = sbr.rel (%p353) target = $region36
        $region35: #{autoencoder_forward.1} parent=11 // pred_region
          _
        $region36: #{autoencoder_forward.1} parent=11 // pred_fallthru
          _
        // Predicated region
        $region37: #{autoencoder_forward.1} parent=11 // pred_check
          %p356 = pneg %p192
        $region38: #{autoencoder_forward.1} parent=11 // pred_check_branch
          %358 = sbr.rel (%p356) target = $region40
        $region39: #{autoencoder_forward.1} parent=11 // pred_region
          _
        $region40: #{autoencoder_forward.1} parent=11 // pred_fallthru
          _
        // Predicated region
        $region41: #{autoencoder_forward.1} parent=11 // pred_check
          %p359 = pneg %p213
        $region42: #{autoencoder_forward.1} parent=11 // pred_check_branch
          %361 = sbr.rel (%p359) target = $region44
        $region43: #{autoencoder_forward.1} parent=11 // pred_region
          _
        $region44: #{autoencoder_forward.1} parent=11 // pred_fallthru
          _
        // Predicated region
        $region45: #{autoencoder_forward.1} parent=11 // pred_check
          %p362 = pneg %p234
        $region46: #{autoencoder_forward.1} parent=11 // pred_check_branch
          %364 = sbr.rel (%p362) target = $region48
        $region47: #{autoencoder_forward.1} parent=11 // pred_region
          _
        $region48: #{autoencoder_forward.1} parent=11 // pred_fallthru
          _
        // Predicated region
        $region49: #{autoencoder_forward.1} parent=11 // pred_check
          %p365 = pneg %p255
        $region50: #{autoencoder_forward.1} parent=11 // pred_check_branch
          %367 = sbr.rel (%p365) target = $region52
        $region51: #{autoencoder_forward.1} parent=11 // pred_region
          _
        $region52: #{autoencoder_forward.1} parent=11 // pred_fallthru
          _
        // Predicated region
        $region53: #{autoencoder_forward.1} parent=11 // pred_check
          %p368 = pneg %p276
        $region54: #{autoencoder_forward.1} parent=11 // pred_check_branch
          %370 = sbr.rel (%p368) target = $region56
        $region55: #{autoencoder_forward.1} parent=11 // pred_region
          _
        $region56: #{autoencoder_forward.1} parent=11 // pred_fallthru
          _
        // Predicated region
        $region57: #{autoencoder_forward.1} parent=11 // pred_check
          %p371 = pneg %p297
        $region58: #{autoencoder_forward.1} parent=11 // pred_check_branch
          %373 = sbr.rel (%p371) target = $region60
        $region59: #{autoencoder_forward.1} parent=11 // pred_region
          _
        $region60: #{autoencoder_forward.1} parent=11 // pred_fallthru
          _
      $region12: #{autoencoder_forward.1} parent=5 // pred_fallthru
        _
      %p374 = scmp.lt.s32.totalorder %s19, 2
      // Predicated region
      $region61: #{autoencoder_forward.1} parent=5 // pred_check
        %p375 = pneg %p374
      $region62: #{autoencoder_forward.1} parent=5 // pred_check_branch
        %377 = sbr.rel (%p375) target = $region64
      $region63: #{autoencoder_forward.1} parent=5 // pred_region
        // Predicated region
        $region65: #{autoencoder_forward.1} parent=63 // pred_check
          %p378 = pneg %p39
        $region66: #{autoencoder_forward.1} parent=63 // pred_check_branch
          %380 = sbr.rel (%p378) target = $region68
        $region67: #{autoencoder_forward.1} parent=63 // pred_region
          %s381 = smul.u32 32, %s19
          %s382 = ssub.s32 63, %s381
          %p383 = scmp.lt.s32.totalorder %s382, 32
          %s384 = scalar_select %p383, %s382, 32
          %s385 = smul.u32 8, %s384
          %s386 = smul.u32 %s385, 7
          %p387 = scmp.lt.s32.totalorder %s381, 62
          %s388 = scalar_select %p387, %s381, 62
          %s389 = smul.addr %s388, 7
          %s390 = smul.addr %s389, 8
          %s391 = scalar_lea.vmem %s0, %s390
          %s392 = smul.u32 32, %s19
          %s393 = ssub.s32 63, %s392
          %p394 = scmp.lt.s32.totalorder %s393, 32
          %s395 = scalar_select %p394, %s393, 32
          %s396 = smul.u32 8, %s395
          %s397 = smul.u32 %s396, 7
        $region68: #{autoencoder_forward.1} parent=63 // pred_fallthru
          _
      $region64: #{autoencoder_forward.1} parent=5 // pred_fallthru
        _
      %p398 = scmp.le.s32.totalorder 1, %s19
      %p399 = scmp.lt.s32.totalorder %s19, 3
      %p400 = pnand %p398, %p399
      %p401 = pneg %p400
      // Predicated region
      $region69: #{autoencoder_forward.1} parent=5 // pred_check
        _
      $region70: #{autoencoder_forward.1} parent=5 // pred_check_branch
        %403 = sbr.rel (%p400) target = $region72
      $region71: #{autoencoder_forward.1} parent=5 // pred_region
        %s404 = ssub.s32 %s19, 1
        %s405 = smul.u32 32, %s24
        %s406 = ssub.s32 63, %s405
        %p407 = scmp.lt.s32.totalorder %s406, 32
        %s408 = scalar_select %p407, %s406, 32
        %s409 = smul.u32 8, %s408
        %s410 = smul.u32 %s409, 7
        %p411 = scmp.lt.s32.totalorder %s405, 62
        %s412 = scalar_select %p411, %s405, 62
        %s413 = smul.addr %s412, 7
        %s414 = smul.addr %s413, 8
        %s415 = scalar_lea.vmem %s0, %s414
        %p416 = pneg %p45
        %p417 = pneg %p42
        %p418 = pneg %p66
        %p419 = pneg %p63
        %p420 = pneg %p87
        %p421 = pneg %p84
        %p422 = pneg %p108
        %p423 = pneg %p105
        %p424 = pneg %p129
        %p425 = pneg %p126
        %p426 = pneg %p150
        %p427 = pneg %p147
        %p428 = pneg %p171
        %p429 = pneg %p168
        %p430 = pneg %p192
        %p431 = pneg %p189
        %p432 = pneg %p213
        %p433 = pneg %p210
        %p434 = pneg %p234
        %p435 = pneg %p231
        %p436 = pneg %p255
        %p437 = pneg %p252
        %p438 = pneg %p276
        %p439 = pneg %p273
        %p440 = pneg %p297
        %p441 = pneg %p294
        %p442 = pneg %p323
        %p443 = pneg %p320
        %s444 = sand.u32 %s310, 1
        %s445 = sand.u32 %s310, 1
        %s446 = smul.addr %s445, 896
        %s447 = scalar_lea.vmem [#allocation2], %s446
        %s448 = smul.u32 32, %s24
        %s449 = ssub.s32 63, %s448
        %p450 = scmp.lt.s32.totalorder %s449, 32
        %s451 = scalar_select %p450, %s449, 32
        %s452 = smul.u32 8, %s451
        %s453 = smul.u32 %s452, 7
        %p454 = scmp.lt.s32.totalorder %s448, 62
        %s455 = scalar_select %p454, %s448, 62
        %s456 = smul.addr %s455, 7
        %s457 = smul.addr %s456, 8
        %s458 = scalar_lea.vmem %s0, %s457
        %s459 = smul.u32 32, %s24
        %s460 = ssub.s32 63, %s459
        %p461 = scmp.lt.s32.totalorder %s460, 32
        %s462 = scalar_select %p461, %s460, 32
        %s463 = smul.u32 8, %s462
        %s464 = smul.u32 %s463, 7
        %s465 = smul.u32 32, %s24
        %s466 = ssub.s32 63, %s465
        %p467 = scmp.lt.s32.totalorder %s466, 32
        %s468 = scalar_select %p467, %s466, 32
        %s469 = smul.u32 4, %s468
        %s470 = smul.u32 %s469, 7
        %v472 = vld [vmem:[%s458] sm:$0xff]
        %v473 = vld [vmem:[%s458 + $0x8] sm:$0xff]
        %v474 = vld [vmem:[%s458 + $0x10] sm:$0xff]
        %v475 = vld [vmem:[%s458 + $0x18] sm:$0xff]
        %v476 = vld [vmem:[%s458 + $0x20] sm:$0xff]
        %v477 = vld [vmem:[%s458 + $0x28] sm:$0xff]
        %v478 = vld [vmem:[%s458 + $0x30] sm:$0xff]
        %v479 = vld [vmem:[%s458 + $0x38] sm:$0xff]
        %v480 = vld [vmem:[%s458 + $0x40] sm:$0xff]
        %v481 = vld [vmem:[%s458 + $0x48] sm:$0xff]
        %v482 = vld [vmem:[%s458 + $0x50] sm:$0xff]
        %v483 = vld [vmem:[%s458 + $0x58] sm:$0xff]
        %v484 = vld [vmem:[%s458 + $0x60] sm:$0xff]
        %v485 = vld [vmem:[%s458 + $0x68] sm:$0xff]
        %v486 = vld [vmem:[%s458 + $0x70] sm:$0xff]
        %v487 = vld [vmem:[%s458 + $0x78] sm:$0xff]
        %v488 = vld [vmem:[%s458 + $0x80] sm:$0xff]
        %v489 = vld [vmem:[%s458 + $0x88] sm:$0xff]
        %v490 = vld [vmem:[%s458 + $0x90] sm:$0xff]
        %v491 = vld [vmem:[%s458 + $0x98] sm:$0xff]
        %v492 = vld [vmem:[%s458 + $0xa0] sm:$0xff]
        %v493 = vld [vmem:[%s458 + $0xa8] sm:$0xff]
        %v494 = vld [vmem:[%s458 + $0xb0] sm:$0xff]
        %v495 = vld [vmem:[%s458 + $0xb8] sm:$0xff]
        %v496 = vld [vmem:[%s458 + $0xc0] sm:$0xff]
        %v497 = vld [vmem:[%s458 + $0xc8] sm:$0xff]
        %v498 = vld [vmem:[%s458 + $0xd0] sm:$0xff]
        %v499 = vld [vmem:[%s458 + $0xd8] sm:$0xff]
        %v500 = vld [vmem:[%s458 + $0xe0] sm:$0xff]
        %v501 = vld [vmem:[%s458 + $0xe8] sm:$0xff]
        %v502 = vld [vmem:[%s458 + $0xf0] sm:$0xff]
        %v503 = vld [vmem:[%s458 + $0xf8] sm:$0xff]
        %v504 = vld [vmem:[%s458 + $0x100] sm:$0xff]
        %v505 = vld [vmem:[%s458 + $0x108] sm:$0xff]
        %v506 = vld [vmem:[%s458 + $0x110] sm:$0xff]
        %v507 = vld [vmem:[%s458 + $0x118] sm:$0xff]
        %v508 = vld [vmem:[%s458 + $0x120] sm:$0xff]
        %v509 = vld [vmem:[%s458 + $0x128] sm:$0xff]
        %v510 = vld [vmem:[%s458 + $0x130] sm:$0xff]
        %v511 = vld [vmem:[%s458 + $0x138] sm:$0xff]
        %v512 = vld [vmem:[%s458 + $0x140] sm:$0xff]
        %v513 = vld [vmem:[%s458 + $0x148] sm:$0xff]
        %v514 = vld [vmem:[%s458 + $0x150] sm:$0xff]
        %v515 = vld [vmem:[%s458 + $0x158] sm:$0xff]
        %v516 = vld [vmem:[%s458 + $0x160] sm:$0xff]
        %v517 = vld [vmem:[%s458 + $0x168] sm:$0xff]
        %v518 = vld [vmem:[%s458 + $0x170] sm:$0xff]
        %v519 = vld [vmem:[%s458 + $0x178] sm:$0xff]
        %v520 = vld [vmem:[%s458 + $0x180] sm:$0xff]
        %v521 = vld [vmem:[%s458 + $0x188] sm:$0xff]
        %v522 = vld [vmem:[%s458 + $0x190] sm:$0xff]
        %v523 = vld [vmem:[%s458 + $0x198] sm:$0xff]
        %v524 = vld [vmem:[%s458 + $0x1a0] sm:$0xff]
        %v525 = vld [vmem:[%s458 + $0x1a8] sm:$0xff]
        %v526 = vld [vmem:[%s458 + $0x1b0] sm:$0xff]
        %v527 = vld [vmem:[%s458 + $0x1b8] sm:$0xff]
        %v528 = vld [vmem:[%s458 + $0x1c0] sm:$0xff]
        %v529 = vld [vmem:[%s458 + $0x1c8] sm:$0xff]
        %v530 = vld [vmem:[%s458 + $0x1d0] sm:$0xff]
        %v531 = vld [vmem:[%s458 + $0x1d8] sm:$0xff]
        %v532 = vld [vmem:[%s458 + $0x1e0] sm:$0xff]
        %v533 = vld [vmem:[%s458 + $0x1e8] sm:$0xff]
        %v534 = vld [vmem:[%s458 + $0x1f0] sm:$0xff]
        %v535 = vld [vmem:[%s458 + $0x1f8] sm:$0xff]
        %v536 = vld [vmem:[%s458 + $0x200] sm:$0xff]
        %v537 = vld [vmem:[%s458 + $0x208] sm:$0xff]
        %v538 = vld [vmem:[%s458 + $0x210] sm:$0xff]
        %v539 = vld [vmem:[%s458 + $0x218] sm:$0xff]
        %v540 = vld [vmem:[%s458 + $0x220] sm:$0xff]
        %v541 = vld [vmem:[%s458 + $0x228] sm:$0xff]
        %v542 = vld [vmem:[%s458 + $0x230] sm:$0xff]
        %v543 = vld [vmem:[%s458 + $0x238] sm:$0xff]
        %v544 = vld [vmem:[%s458 + $0x240] sm:$0xff]
        %v545 = vld [vmem:[%s458 + $0x248] sm:$0xff]
        %v546 = vld [vmem:[%s458 + $0x250] sm:$0xff]
        %v547 = vld [vmem:[%s458 + $0x258] sm:$0xff]
        %v548 = vld [vmem:[%s458 + $0x260] sm:$0xff]
        %v549 = vld [vmem:[%s458 + $0x268] sm:$0xff]
        %v550 = vld [vmem:[%s458 + $0x270] sm:$0xff]
        %v551 = vld [vmem:[%s458 + $0x278] sm:$0xff]
        %v552 = vld [vmem:[%s458 + $0x280] sm:$0xff]
        %v553 = vld [vmem:[%s458 + $0x288] sm:$0xff]
        %v554 = vld [vmem:[%s458 + $0x290] sm:$0xff]
        %v555 = vld [vmem:[%s458 + $0x298] sm:$0xff]
        %v556 = vld [vmem:[%s458 + $0x2a0] sm:$0xff]
        %v557 = vld [vmem:[%s458 + $0x2a8] sm:$0xff]
        %v558 = vld [vmem:[%s458 + $0x2b0] sm:$0xff]
        %v559 = vld [vmem:[%s458 + $0x2b8] sm:$0xff]
        %v560 = vld [vmem:[%s458 + $0x2c0] sm:$0xff]
        %v561 = vld [vmem:[%s458 + $0x2c8] sm:$0xff]
        %v562 = vld [vmem:[%s458 + $0x2d0] sm:$0xff]
        %v563 = vld [vmem:[%s458 + $0x2d8] sm:$0xff]
        %v564 = vld [vmem:[%s458 + $0x2e0] sm:$0xff]
        %v565 = vld [vmem:[%s458 + $0x2e8] sm:$0xff]
        %v566 = vld [vmem:[%s458 + $0x2f0] sm:$0xff]
        %v567 = vld [vmem:[%s458 + $0x2f8] sm:$0xff]
        %v568 = vld [vmem:[%s458 + $0x300] sm:$0xff]
        %v569 = vld [vmem:[%s458 + $0x308] sm:$0xff]
        %v570 = vld [vmem:[%s458 + $0x310] sm:$0xff]
        %v571 = vld [vmem:[%s458 + $0x318] sm:$0xff]
        %v572 = vld [vmem:[%s458 + $0x320] sm:$0xff]
        %v573 = vld [vmem:[%s458 + $0x328] sm:$0xff]
        %v574 = vld [vmem:[%s458 + $0x330] sm:$0xff]
        %v575 = vld [vmem:[%s458 + $0x338] sm:$0xff]
        %v576 = vld [vmem:[%s458 + $0x340] sm:$0xff]
        %v577 = vld [vmem:[%s458 + $0x348] sm:$0xff]
        %v578 = vld [vmem:[%s458 + $0x350] sm:$0xff]
        %v579 = vld [vmem:[%s458 + $0x358] sm:$0xff]
        %v580 = vld [vmem:[%s458 + $0x360] sm:$0xff]
        %v581 = vld [vmem:[%s458 + $0x368] sm:$0xff]
        %v582 = vld [vmem:[%s458 + $0x370] sm:$0xff]
        %v583 = vld [vmem:[%s458 + $0x378] sm:$0xff]
        %v584 = vld [vmem:[%s458 + $0x380] sm:$0xff]
        %v585 = vld [vmem:[%s458 + $0x388] sm:$0xff]
        %v586 = vld [vmem:[%s458 + $0x390] sm:$0xff]
        %v587 = vld [vmem:[%s458 + $0x398] sm:$0xff]
        %v588 = vld [vmem:[%s458 + $0x3a0] sm:$0xff]
        %v589 = vld [vmem:[%s458 + $0x3a8] sm:$0xff]
        %v590 = vld [vmem:[%s458 + $0x3b0] sm:$0xff]
        %v591 = vld [vmem:[%s458 + $0x3b8] sm:$0xff]
        %v592 = vld [vmem:[%s458 + $0x3c0] sm:$0xff]
        %v593 = vld [vmem:[%s458 + $0x3c8] sm:$0xff]
        %v594 = vld [vmem:[%s458 + $0x3d0] sm:$0xff]
        %v595 = vld [vmem:[%s458 + $0x3d8] sm:$0xff]
        %v596 = vld [vmem:[%s458 + $0x3e0] sm:$0xff]
        %v597 = vld [vmem:[%s458 + $0x3e8] sm:$0xff]
        %v598 = vld [vmem:[%s458 + $0x3f0] sm:$0xff]
        %v599 = vld [vmem:[%s458 + $0x3f8] sm:$0xff]
        %v600 = vld [vmem:[%s458 + $0x400] sm:$0xff]
        %v601 = vld [vmem:[%s458 + $0x408] sm:$0xff]
        %v602 = vld [vmem:[%s458 + $0x410] sm:$0xff]
        %v603 = vld [vmem:[%s458 + $0x418] sm:$0xff]
        %v604 = vld [vmem:[%s458 + $0x420] sm:$0xff]
        %v605 = vld [vmem:[%s458 + $0x428] sm:$0xff]
        %v606 = vld [vmem:[%s458 + $0x430] sm:$0xff]
        %v607 = vld [vmem:[%s458 + $0x438] sm:$0xff]
        %v608 = vld [vmem:[%s458 + $0x440] sm:$0xff]
        %v609 = vld [vmem:[%s458 + $0x448] sm:$0xff]
        %v610 = vld [vmem:[%s458 + $0x450] sm:$0xff]
        %v611 = vld [vmem:[%s458 + $0x458] sm:$0xff]
        %v612 = vld [vmem:[%s458 + $0x460] sm:$0xff]
        %v613 = vld [vmem:[%s458 + $0x468] sm:$0xff]
        %v614 = vld [vmem:[%s458 + $0x470] sm:$0xff]
        %v615 = vld [vmem:[%s458 + $0x478] sm:$0xff]
        %v616 = vld [vmem:[%s458 + $0x480] sm:$0xff]
        %v617 = vld [vmem:[%s458 + $0x488] sm:$0xff]
        %v618 = vld [vmem:[%s458 + $0x490] sm:$0xff]
        %v619 = vld [vmem:[%s458 + $0x498] sm:$0xff]
        %v620 = vld [vmem:[%s458 + $0x4a0] sm:$0xff]
        %v621 = vld [vmem:[%s458 + $0x4a8] sm:$0xff]
        %v622 = vld [vmem:[%s458 + $0x4b0] sm:$0xff]
        %v623 = vld [vmem:[%s458 + $0x4b8] sm:$0xff]
        %v624 = vld [vmem:[%s458 + $0x4c0] sm:$0xff]
        %v625 = vld [vmem:[%s458 + $0x4c8] sm:$0xff]
        %v626 = vld [vmem:[%s458 + $0x4d0] sm:$0xff]
        %v627 = vld [vmem:[%s458 + $0x4d8] sm:$0xff]
        %v628 = vld [vmem:[%s458 + $0x4e0] sm:$0xff]
        %v629 = vld [vmem:[%s458 + $0x4e8] sm:$0xff]
        %v630 = vld [vmem:[%s458 + $0x4f0] sm:$0xff]
        %v631 = vld [vmem:[%s458 + $0x4f8] sm:$0xff]
        %v632 = vld [vmem:[%s458 + $0x500] sm:$0xff]
        %v633 = vld [vmem:[%s458 + $0x508] sm:$0xff]
        %v634 = vld [vmem:[%s458 + $0x510] sm:$0xff]
        %v635 = vld [vmem:[%s458 + $0x518] sm:$0xff]
        %v636 = vld [vmem:[%s458 + $0x520] sm:$0xff]
        %v637 = vld [vmem:[%s458 + $0x528] sm:$0xff]
        %v638 = vld [vmem:[%s458 + $0x530] sm:$0xff]
        %v639 = vld [vmem:[%s458 + $0x538] sm:$0xff]
        %v640 = vld [vmem:[%s458 + $0x540] sm:$0xff]
        %v641 = vld [vmem:[%s458 + $0x548] sm:$0xff]
        %v642 = vld [vmem:[%s458 + $0x550] sm:$0xff]
        %v643 = vld [vmem:[%s458 + $0x558] sm:$0xff]
        %v644 = vld [vmem:[%s458 + $0x560] sm:$0xff]
        %v645 = vld [vmem:[%s458 + $0x568] sm:$0xff]
        %v646 = vld [vmem:[%s458 + $0x570] sm:$0xff]
        %v647 = vld [vmem:[%s458 + $0x578] sm:$0xff]
        %v648 = vld [vmem:[%s458 + $0x580] sm:$0xff]
        %v649 = vld [vmem:[%s458 + $0x588] sm:$0xff]
        %v650 = vld [vmem:[%s458 + $0x590] sm:$0xff]
        %v651 = vld [vmem:[%s458 + $0x598] sm:$0xff]
        %v652 = vld [vmem:[%s458 + $0x5a0] sm:$0xff]
        %v653 = vld [vmem:[%s458 + $0x5a8] sm:$0xff]
        %v654 = vld [vmem:[%s458 + $0x5b0] sm:$0xff]
        %v655 = vld [vmem:[%s458 + $0x5b8] sm:$0xff]
        %v656 = vld [vmem:[%s458 + $0x5c0] sm:$0xff]
        %v657 = vld [vmem:[%s458 + $0x5c8] sm:$0xff]
        %v658 = vld [vmem:[%s458 + $0x5d0] sm:$0xff]
        %v659 = vld [vmem:[%s458 + $0x5d8] sm:$0xff]
        %v660 = vld [vmem:[%s458 + $0x5e0] sm:$0xff]
        %v661 = vld [vmem:[%s458 + $0x5e8] sm:$0xff]
        %v662 = vld [vmem:[%s458 + $0x5f0] sm:$0xff]
        %v663 = vld [vmem:[%s458 + $0x5f8] sm:$0xff]
        %v664 = vld [vmem:[%s458 + $0x600] sm:$0xff]
        %v665 = vld [vmem:[%s458 + $0x608] sm:$0xff]
        %v666 = vld [vmem:[%s458 + $0x610] sm:$0xff]
        %v667 = vld [vmem:[%s458 + $0x618] sm:$0xff]
        %v668 = vld [vmem:[%s458 + $0x620] sm:$0xff]
        %v669 = vld [vmem:[%s458 + $0x628] sm:$0xff]
        %v670 = vld [vmem:[%s458 + $0x630] sm:$0xff]
        %v671 = vld [vmem:[%s458 + $0x638] sm:$0xff]
        %v672 = vld [vmem:[%s458 + $0x640] sm:$0xff]
        %v673 = vld [vmem:[%s458 + $0x648] sm:$0xff]
        %v674 = vld [vmem:[%s458 + $0x650] sm:$0xff]
        %v675 = vld [vmem:[%s458 + $0x658] sm:$0xff]
        %v676 = vld [vmem:[%s458 + $0x660] sm:$0xff]
        %v677 = vld [vmem:[%s458 + $0x668] sm:$0xff]
        %v678 = vld [vmem:[%s458 + $0x670] sm:$0xff]
        %v679 = vld [vmem:[%s458 + $0x678] sm:$0xff]
        %v680 = vld [vmem:[%s458 + $0x680] sm:$0xff]
        %v681 = vld [vmem:[%s458 + $0x688] sm:$0xff]
        %v682 = vld [vmem:[%s458 + $0x690] sm:$0xff]
        %v683 = vld [vmem:[%s458 + $0x698] sm:$0xff]
        %v684 = vld [vmem:[%s458 + $0x6a0] sm:$0xff]
        %v685 = vld [vmem:[%s458 + $0x6a8] sm:$0xff]
        %v686 = vld [vmem:[%s458 + $0x6b0] sm:$0xff]
        %v687 = vld [vmem:[%s458 + $0x6b8] sm:$0xff]
        %v688 = vld [vmem:[%s458 + $0x6c0] sm:$0xff]
        %v689 = vld [vmem:[%s458 + $0x6c8] sm:$0xff]
        %v690 = vld [vmem:[%s458 + $0x6d0] sm:$0xff]
        %v691 = vld [vmem:[%s458 + $0x6d8] sm:$0xff]
        %v692 = vld [vmem:[%s458 + $0x6e0] sm:$0xff]
        %v693 = vld [vmem:[%s458 + $0x6e8] sm:$0xff]
        %v694 = vld [vmem:[%s458 + $0x6f0] sm:$0xff]
        %v695 = vld [vmem:[%s458 + $0x6f8] sm:$0xff]
        %v696 = vpack.c.bf16 %v479, %v472
        %v697 = vpack.c.bf16 %v480, %v473
        %v698 = vpack.c.bf16 %v481, %v474
        %v699 = vpack.c.bf16 %v482, %v475
        %v700 = vpack.c.bf16 %v483, %v476
        %v701 = vpack.c.bf16 %v484, %v477
        %v702 = vpack.c.bf16 %v485, %v478
        %v703 = vpack.c.bf16 %v493, %v486
        %v704 = vpack.c.bf16 %v494, %v487
        %v705 = vpack.c.bf16 %v495, %v488
        %v706 = vpack.c.bf16 %v496, %v489
        %v707 = vpack.c.bf16 %v497, %v490
        %v708 = vpack.c.bf16 %v498, %v491
        %v709 = vpack.c.bf16 %v499, %v492
        %v710 = vpack.c.bf16 %v507, %v500
        %v711 = vpack.c.bf16 %v508, %v501
        %v712 = vpack.c.bf16 %v509, %v502
        %v713 = vpack.c.bf16 %v510, %v503
        %v714 = vpack.c.bf16 %v511, %v504
        %v715 = vpack.c.bf16 %v512, %v505
        %v716 = vpack.c.bf16 %v513, %v506
        %v717 = vpack.c.bf16 %v521, %v514
        %v718 = vpack.c.bf16 %v522, %v515
        %v719 = vpack.c.bf16 %v523, %v516
        %v720 = vpack.c.bf16 %v524, %v517
        %v721 = vpack.c.bf16 %v525, %v518
        %v722 = vpack.c.bf16 %v526, %v519
        %v723 = vpack.c.bf16 %v527, %v520
        %v724 = vpack.c.bf16 %v535, %v528
        %v725 = vpack.c.bf16 %v536, %v529
        %v726 = vpack.c.bf16 %v537, %v530
        %v727 = vpack.c.bf16 %v538, %v531
        %v728 = vpack.c.bf16 %v539, %v532
        %v729 = vpack.c.bf16 %v540, %v533
        %v730 = vpack.c.bf16 %v541, %v534
        %v731 = vpack.c.bf16 %v549, %v542
        %v732 = vpack.c.bf16 %v550, %v543
        %v733 = vpack.c.bf16 %v551, %v544
        %v734 = vpack.c.bf16 %v552, %v545
        %v735 = vpack.c.bf16 %v553, %v546
        %v736 = vpack.c.bf16 %v554, %v547
        %v737 = vpack.c.bf16 %v555, %v548
        %v738 = vpack.c.bf16 %v563, %v556
        %v739 = vpack.c.bf16 %v564, %v557
        %v740 = vpack.c.bf16 %v565, %v558
        %v741 = vpack.c.bf16 %v566, %v559
        %v742 = vpack.c.bf16 %v567, %v560
        %v743 = vpack.c.bf16 %v568, %v561
        %v744 = vpack.c.bf16 %v569, %v562
        %v745 = vpack.c.bf16 %v577, %v570
        %v746 = vpack.c.bf16 %v578, %v571
        %v747 = vpack.c.bf16 %v579, %v572
        %v748 = vpack.c.bf16 %v580, %v573
        %v749 = vpack.c.bf16 %v581, %v574
        %v750 = vpack.c.bf16 %v582, %v575
        %v751 = vpack.c.bf16 %v583, %v576
        %v752 = vpack.c.bf16 %v591, %v584
        %v753 = vpack.c.bf16 %v592, %v585
        %v754 = vpack.c.bf16 %v593, %v586
        %v755 = vpack.c.bf16 %v594, %v587
        %v756 = vpack.c.bf16 %v595, %v588
        %v757 = vpack.c.bf16 %v596, %v589
        %v758 = vpack.c.bf16 %v597, %v590
        %v759 = vpack.c.bf16 %v605, %v598
        %v760 = vpack.c.bf16 %v606, %v599
        %v761 = vpack.c.bf16 %v607, %v600
        %v762 = vpack.c.bf16 %v608, %v601
        %v763 = vpack.c.bf16 %v609, %v602
        %v764 = vpack.c.bf16 %v610, %v603
        %v765 = vpack.c.bf16 %v611, %v604
        %v766 = vpack.c.bf16 %v619, %v612
        %v767 = vpack.c.bf16 %v620, %v613
        %v768 = vpack.c.bf16 %v621, %v614
        %v769 = vpack.c.bf16 %v622, %v615
        %v770 = vpack.c.bf16 %v623, %v616
        %v771 = vpack.c.bf16 %v624, %v617
        %v772 = vpack.c.bf16 %v625, %v618
        %v773 = vpack.c.bf16 %v633, %v626
        %v774 = vpack.c.bf16 %v634, %v627
        %v775 = vpack.c.bf16 %v635, %v628
        %v776 = vpack.c.bf16 %v636, %v629
        %v777 = vpack.c.bf16 %v637, %v630
        %v778 = vpack.c.bf16 %v638, %v631
        %v779 = vpack.c.bf16 %v639, %v632
        %v780 = vpack.c.bf16 %v647, %v640
        %v781 = vpack.c.bf16 %v648, %v641
        %v782 = vpack.c.bf16 %v649, %v642
        %v783 = vpack.c.bf16 %v650, %v643
        %v784 = vpack.c.bf16 %v651, %v644
        %v785 = vpack.c.bf16 %v652, %v645
        %v786 = vpack.c.bf16 %v653, %v646
        %v787 = vpack.c.bf16 %v661, %v654
        %v788 = vpack.c.bf16 %v662, %v655
        %v789 = vpack.c.bf16 %v663, %v656
        %v790 = vpack.c.bf16 %v664, %v657
        %v791 = vpack.c.bf16 %v665, %v658
        %v792 = vpack.c.bf16 %v666, %v659
        %v793 = vpack.c.bf16 %v667, %v660
        %v794 = vpack.c.bf16 %v675, %v668
        %v795 = vpack.c.bf16 %v676, %v669
        %v796 = vpack.c.bf16 %v677, %v670
        %v797 = vpack.c.bf16 %v678, %v671
        %v798 = vpack.c.bf16 %v679, %v672
        %v799 = vpack.c.bf16 %v680, %v673
        %v800 = vpack.c.bf16 %v681, %v674
        %v801 = vpack.c.bf16 %v689, %v682
        %v802 = vpack.c.bf16 %v690, %v683
        %v803 = vpack.c.bf16 %v691, %v684
        %v804 = vpack.c.bf16 %v692, %v685
        %v805 = vpack.c.bf16 %v693, %v686
        %v806 = vpack.c.bf16 %v694, %v687
        %v807 = vpack.c.bf16 %v695, %v688
        %v808 = vld [vmem:[%s1] sm:$0xf]
        %v809 = vld [vmem:[%s1 + $0x4] sm:$0xf]
        %v810 = vld [vmem:[%s1 + $0x8] sm:$0xf]
        %v811 = vld [vmem:[%s1 + $0xc] sm:$0xf]
        %v812 = vld [vmem:[%s1 + $0x10] sm:$0xf]
        %v813 = vld [vmem:[%s1 + $0x14] sm:$0xf]
        %v814 = vld [vmem:[%s1 + $0x18] sm:$0xf]
        %v815 = vld [vmem:[%s1 + $0x1c] sm:$0xf]
        %v816 = vld [vmem:[%s1 + $0x20] sm:$0xf]
        %v817 = vld [vmem:[%s1 + $0x24] sm:$0xf]
        %v818 = vld [vmem:[%s1 + $0x28] sm:$0xf]
        %v819 = vld [vmem:[%s1 + $0x2c] sm:$0xf]
        %v820 = vld [vmem:[%s1 + $0x30] sm:$0xf]
        %v821 = vld [vmem:[%s1 + $0x34] sm:$0xf]
        %v822 = vld [vmem:[%s1 + $0x38] sm:$0xf]
        %v823 = vld [vmem:[%s1 + $0x3c] sm:$0xf]
        %v824 = vld [vmem:[%s1 + $0x40] sm:$0xf]
        %v825 = vld [vmem:[%s1 + $0x44] sm:$0xf]
        %v826 = vld [vmem:[%s1 + $0x48] sm:$0xf]
        %v827 = vld [vmem:[%s1 + $0x4c] sm:$0xf]
        %v828 = vld [vmem:[%s1 + $0x50] sm:$0xf]
        %v829 = vld [vmem:[%s1 + $0x54] sm:$0xf]
        %v830 = vld [vmem:[%s1 + $0x58] sm:$0xf]
        %v831 = vld [vmem:[%s1 + $0x5c] sm:$0xf]
        %v832 = vld [vmem:[%s1 + $0x60] sm:$0xf]
        %v833 = vld [vmem:[%s1 + $0x64] sm:$0xf]
        %v834 = vld [vmem:[%s1 + $0x68] sm:$0xf]
        %v835 = vld [vmem:[%s1 + $0x6c] sm:$0xf]
        %v836 = vld [vmem:[%s1 + $0x70] sm:$0xf]
        %v837 = vld [vmem:[%s1 + $0x74] sm:$0xf]
        %v838 = vld [vmem:[%s1 + $0x78] sm:$0xf]
        %v839 = vld [vmem:[%s1 + $0x7c] sm:$0xf]
        %v840 = vld [vmem:[%s1 + $0x80] sm:$0xf]
        %v841 = vld [vmem:[%s1 + $0x84] sm:$0xf]
        %v842 = vld [vmem:[%s1 + $0x88] sm:$0xf]
        %v843 = vld [vmem:[%s1 + $0x8c] sm:$0xf]
        %v844 = vld [vmem:[%s1 + $0x90] sm:$0xf]
        %v845 = vld [vmem:[%s1 + $0x94] sm:$0xf]
        %v846 = vld [vmem:[%s1 + $0x98] sm:$0xf]
        %v847 = vld [vmem:[%s1 + $0x9c] sm:$0xf]
        %v848 = vld [vmem:[%s1 + $0xa0] sm:$0xf]
        %v849 = vld [vmem:[%s1 + $0xa4] sm:$0xf]
        %v850 = vld [vmem:[%s1 + $0xa8] sm:$0xf]
        %v851 = vld [vmem:[%s1 + $0xac] sm:$0xf]
        %v852 = vld [vmem:[%s1 + $0xb0] sm:$0xf]
        %v853 = vld [vmem:[%s1 + $0xb4] sm:$0xf]
        %v854 = vld [vmem:[%s1 + $0xb8] sm:$0xf]
        %v855 = vld [vmem:[%s1 + $0xbc] sm:$0xf]
        %v856 = vld [vmem:[%s1 + $0xc0] sm:$0xf]
        %v857 = vld [vmem:[%s1 + $0xc4] sm:$0xf]
        %v858 = vld [vmem:[%s1 + $0xc8] sm:$0xf]
        %v859 = vld [vmem:[%s1 + $0xcc] sm:$0xf]
        %v860 = vld [vmem:[%s1 + $0xd0] sm:$0xf]
        %v861 = vld [vmem:[%s1 + $0xd4] sm:$0xf]
        %v862 = vld [vmem:[%s1 + $0xd8] sm:$0xf]
        %v863 = vld [vmem:[%s1 + $0xdc] sm:$0xf]
        %v864 = vld [vmem:[%s1 + $0xe0] sm:$0xf]
        %v865 = vld [vmem:[%s1 + $0xe4] sm:$0xf]
        %v866 = vld [vmem:[%s1 + $0xe8] sm:$0xf]
        %v867 = vld [vmem:[%s1 + $0xec] sm:$0xf]
        %v868 = vld [vmem:[%s1 + $0xf0] sm:$0xf]
        %v869 = vld [vmem:[%s1 + $0xf4] sm:$0xf]
        %v870 = vld [vmem:[%s1 + $0xf8] sm:$0xf]
        %v871 = vld [vmem:[%s1 + $0xfc] sm:$0xf]
        %v872 = vld [vmem:[%s1 + $0x100] sm:$0xf]
        %v873 = vld [vmem:[%s1 + $0x104] sm:$0xf]
        %v874 = vld [vmem:[%s1 + $0x108] sm:$0xf]
        %v875 = vld [vmem:[%s1 + $0x10c] sm:$0xf]
        %v876 = vld [vmem:[%s1 + $0x110] sm:$0xf]
        %v877 = vld [vmem:[%s1 + $0x114] sm:$0xf]
        %v878 = vld [vmem:[%s1 + $0x118] sm:$0xf]
        %v879 = vld [vmem:[%s1 + $0x11c] sm:$0xf]
        %v880 = vld [vmem:[%s1 + $0x120] sm:$0xf]
        %v881 = vld [vmem:[%s1 + $0x124] sm:$0xf]
        %v882 = vld [vmem:[%s1 + $0x128] sm:$0xf]
        %v883 = vld [vmem:[%s1 + $0x12c] sm:$0xf]
        %v884 = vld [vmem:[%s1 + $0x130] sm:$0xf]
        %v885 = vld [vmem:[%s1 + $0x134] sm:$0xf]
        %v886 = vld [vmem:[%s1 + $0x138] sm:$0xf]
        %v887 = vld [vmem:[%s1 + $0x13c] sm:$0xf]
        %v888 = vld [vmem:[%s1 + $0x140] sm:$0xf]
        %v889 = vld [vmem:[%s1 + $0x144] sm:$0xf]
        %v890 = vld [vmem:[%s1 + $0x148] sm:$0xf]
        %v891 = vld [vmem:[%s1 + $0x14c] sm:$0xf]
        %v892 = vld [vmem:[%s1 + $0x150] sm:$0xf]
        %v893 = vld [vmem:[%s1 + $0x154] sm:$0xf]
        %v894 = vld [vmem:[%s1 + $0x158] sm:$0xf]
        %v895 = vld [vmem:[%s1 + $0x15c] sm:$0xf]
        %v896 = vld [vmem:[%s1 + $0x160] sm:$0xf]
        %v897 = vld [vmem:[%s1 + $0x164] sm:$0xf]
        %v898 = vld [vmem:[%s1 + $0x168] sm:$0xf]
        %v899 = vld [vmem:[%s1 + $0x16c] sm:$0xf]
        %v900 = vld [vmem:[%s1 + $0x170] sm:$0xf]
        %v901 = vld [vmem:[%s1 + $0x174] sm:$0xf]
        %v902 = vld [vmem:[%s1 + $0x178] sm:$0xf]
        %v903 = vld [vmem:[%s1 + $0x17c] sm:$0xf]
        %v904 = vld [vmem:[%s1 + $0x180] sm:$0xf]
        %v905 = vld [vmem:[%s1 + $0x184] sm:$0xf]
        %v906 = vld [vmem:[%s2] sm:$0x1]
        %v908 = vperm.slane %v906, 0
        %v1008 = vunpack.c.l.b16 %v808
        %v1009 = vunpack.c.l.b16 %v809
        %v1010 = vunpack.c.l.b16 %v810
        %v1011 = vunpack.c.l.b16 %v811
        %v1012 = vunpack.c.l.b16 %v812
        %v1013 = vunpack.c.l.b16 %v813
        %v1014 = vunpack.c.l.b16 %v814
        %v1015 = vunpack.c.l.b16 %v815
        %v1016 = vunpack.c.l.b16 %v816
        %v1017 = vunpack.c.l.b16 %v817
        %v1018 = vunpack.c.l.b16 %v818
        %v1019 = vunpack.c.l.b16 %v819
        %v1020 = vunpack.c.l.b16 %v820
        %v1021 = vunpack.c.l.b16 %v821
        %v1022 = vunpack.c.l.b16 %v822
        %v1023 = vunpack.c.l.b16 %v823
        %v1024 = vunpack.c.l.b16 %v824
        %v1025 = vunpack.c.l.b16 %v825
        %v1026 = vunpack.c.l.b16 %v826
        %v1027 = vunpack.c.l.b16 %v827
        %v1028 = vunpack.c.l.b16 %v828
        %v1029 = vunpack.c.l.b16 %v829
        %v1030 = vunpack.c.l.b16 %v830
        %v1031 = vunpack.c.l.b16 %v831
        %v1032 = vunpack.c.l.b16 %v832
        %v1033 = vunpack.c.l.b16 %v833
        %v1034 = vunpack.c.l.b16 %v834
        %v1035 = vunpack.c.l.b16 %v835
        %v1036 = vunpack.c.l.b16 %v836
        %v1037 = vunpack.c.l.b16 %v837
        %v1038 = vunpack.c.l.b16 %v838
        %v1039 = vunpack.c.l.b16 %v839
        %v1040 = vunpack.c.l.b16 %v840
        %v1041 = vunpack.c.l.b16 %v841
        %v1042 = vunpack.c.l.b16 %v842
        %v1043 = vunpack.c.l.b16 %v843
        %v1044 = vunpack.c.l.b16 %v844
        %v1045 = vunpack.c.l.b16 %v845
        %v1046 = vunpack.c.l.b16 %v846
        %v1047 = vunpack.c.l.b16 %v847
        %v1048 = vunpack.c.l.b16 %v848
        %v1049 = vunpack.c.l.b16 %v849
        %v1050 = vunpack.c.l.b16 %v850
        %v1051 = vunpack.c.l.b16 %v851
        %v1052 = vunpack.c.l.b16 %v852
        %v1053 = vunpack.c.l.b16 %v853
        %v1054 = vunpack.c.l.b16 %v854
        %v1055 = vunpack.c.l.b16 %v855
        %v1056 = vunpack.c.l.b16 %v856
        %v1057 = vunpack.c.l.b16 %v857
        %v1058 = vunpack.c.l.b16 %v858
        %v1059 = vunpack.c.l.b16 %v859
        %v1060 = vunpack.c.l.b16 %v860
        %v1061 = vunpack.c.l.b16 %v861
        %v1062 = vunpack.c.l.b16 %v862
        %v1063 = vunpack.c.l.b16 %v863
        %v1064 = vunpack.c.l.b16 %v864
        %v1065 = vunpack.c.l.b16 %v865
        %v1066 = vunpack.c.l.b16 %v866
        %v1067 = vunpack.c.l.b16 %v867
        %v1068 = vunpack.c.l.b16 %v868
        %v1069 = vunpack.c.l.b16 %v869
        %v1070 = vunpack.c.l.b16 %v870
        %v1071 = vunpack.c.l.b16 %v871
        %v1072 = vunpack.c.l.b16 %v872
        %v1073 = vunpack.c.l.b16 %v873
        %v1074 = vunpack.c.l.b16 %v874
        %v1075 = vunpack.c.l.b16 %v875
        %v1076 = vunpack.c.l.b16 %v876
        %v1077 = vunpack.c.l.b16 %v877
        %v1078 = vunpack.c.l.b16 %v878
        %v1079 = vunpack.c.l.b16 %v879
        %v1080 = vunpack.c.l.b16 %v880
        %v1081 = vunpack.c.l.b16 %v881
        %v1082 = vunpack.c.l.b16 %v882
        %v1083 = vunpack.c.l.b16 %v883
        %v1084 = vunpack.c.l.b16 %v884
        %v1085 = vunpack.c.l.b16 %v885
        %v1086 = vunpack.c.l.b16 %v886
        %v1087 = vunpack.c.l.b16 %v887
        %v1088 = vunpack.c.l.b16 %v888
        %v1089 = vunpack.c.l.b16 %v889
        %v1090 = vunpack.c.l.b16 %v890
        %v1091 = vunpack.c.l.b16 %v891
        %v1092 = vunpack.c.l.b16 %v892
        %v1093 = vunpack.c.l.b16 %v893
        %v1094 = vunpack.c.l.b16 %v894
        %v1095 = vunpack.c.l.b16 %v895
        %v1096 = vunpack.c.l.b16 %v896
        %v1097 = vunpack.c.l.b16 %v897
        %v1098 = vunpack.c.l.b16 %v898
        %v1099 = vunpack.c.l.b16 %v899
        %v1100 = vunpack.c.l.b16 %v900
        %v1101 = vunpack.c.l.b16 %v901
        %v1102 = vunpack.c.l.b16 %v902
        %v1103 = vunpack.c.l.b16 %v903
        %v1104 = vunpack.c.l.b16 %v904
        %v1105 = vunpack.c.l.b16 %v905
        %v1106 = vpack.c.b16 %v1009, %v1008
        %v1107 = vpack.c.b16 %v1011, %v1010
        %v1108 = vpack.c.b16 %v1013, %v1012
        %v1109 = vpack.c.b16 %v1015, %v1014
        %v1110 = vpack.c.b16 %v1017, %v1016
        %v1111 = vpack.c.b16 %v1019, %v1018
        %v1112 = vpack.c.b16 %v1021, %v1020
        %v1113 = vpack.c.b16 %v1023, %v1022
        %v1114 = vpack.c.b16 %v1025, %v1024
        %v1115 = vpack.c.b16 %v1027, %v1026
        %v1116 = vpack.c.b16 %v1029, %v1028
        %v1117 = vpack.c.b16 %v1031, %v1030
        %v1118 = vpack.c.b16 %v1033, %v1032
        %v1119 = vpack.c.b16 %v1035, %v1034
        %v1120 = vpack.c.b16 %v1037, %v1036
        %v1121 = vpack.c.b16 %v1039, %v1038
        %v1122 = vpack.c.b16 %v1041, %v1040
        %v1123 = vpack.c.b16 %v1043, %v1042
        %v1124 = vpack.c.b16 %v1045, %v1044
        %v1125 = vpack.c.b16 %v1047, %v1046
        %v1126 = vpack.c.b16 %v1049, %v1048
        %v1127 = vpack.c.b16 %v1051, %v1050
        %v1128 = vpack.c.b16 %v1053, %v1052
        %v1129 = vpack.c.b16 %v1055, %v1054
        %v1130 = vpack.c.b16 %v1057, %v1056
        %v1131 = vpack.c.b16 %v1059, %v1058
        %v1132 = vpack.c.b16 %v1061, %v1060
        %v1133 = vpack.c.b16 %v1063, %v1062
        %v1134 = vpack.c.b16 %v1065, %v1064
        %v1135 = vpack.c.b16 %v1067, %v1066
        %v1136 = vpack.c.b16 %v1069, %v1068
        %v1137 = vpack.c.b16 %v1071, %v1070
        %v1138 = vpack.c.b16 %v1073, %v1072
        %v1139 = vpack.c.b16 %v1075, %v1074
        %v1140 = vpack.c.b16 %v1077, %v1076
        %v1141 = vpack.c.b16 %v1079, %v1078
        %v1142 = vpack.c.b16 %v1081, %v1080
        %v1143 = vpack.c.b16 %v1083, %v1082
        %v1144 = vpack.c.b16 %v1085, %v1084
        %v1145 = vpack.c.b16 %v1087, %v1086
        %v1146 = vpack.c.b16 %v1089, %v1088
        %v1147 = vpack.c.b16 %v1091, %v1090
        %v1148 = vpack.c.b16 %v1093, %v1092
        %v1149 = vpack.c.b16 %v1095, %v1094
        %v1150 = vpack.c.b16 %v1097, %v1096
        %v1151 = vpack.c.b16 %v1099, %v1098
        %v1152 = vpack.c.b16 %v1101, %v1100
        %v1153 = vpack.c.b16 %v1103, %v1102
        %v1154 = vpack.c.b16 %v1105, %v1104
        %vm1204 = vcmask 130048
        %v1206 = vsel %vm1204, %v702, 0
        %v1209 = vsel %vm1204, %v709, 0
        %v1212 = vsel %vm1204, %v716, 0
        %v1215 = vsel %vm1204, %v723, 0
        %v1218 = vsel %vm1204, %v730, 0
        %v1221 = vsel %vm1204, %v737, 0
        %v1224 = vsel %vm1204, %v744, 0
        %v1227 = vsel %vm1204, %v751, 0
        %v1230 = vsel %vm1204, %v758, 0
        %v1233 = vsel %vm1204, %v765, 0
        %v1236 = vsel %vm1204, %v772, 0
        %v1239 = vsel %vm1204, %v779, 0
        %v1242 = vsel %vm1204, %v786, 0
        %v1245 = vsel %vm1204, %v793, 0
        %v1248 = vsel %vm1204, %v800, 0
        %v1251 = vsel %vm1204, %v807, 0
        %1253 = vmatpush.bf16.msra.mxu0 %v1113
        %1254 = vmatpush.bf16.msra.mxu0 %v1112
        %1255 = vmatpush.bf16.msra.mxu0 %v1111
        %1256 = vmatpush.bf16.msra.mxu0 %v1110
        %1257 = vmatpush.bf16.msra.mxu0 %v1109
        %1258 = vmatpush.bf16.msra.mxu0 %v1108
        %1259 = vmatpush.bf16.msra.mxu0 %v1107
        %1260 = vmatpush.bf16.msra.mxu0 %v1106
        %1261 = vmatmul.bf16.gmra.mxu0 %v696
        %v1262 = vpop.f32.mrf.mxu0
        %v1263 = vadd.f32 %v908, %v1262
        %v1264 = vpop.f32.mrf.mxu0
        %v1265 = vadd.f32 %v908, %v1264
        %1266 = vmatmul.bf16.gmra.mxu0 %v703
        %v1267 = vpop.f32.mrf.mxu0
        %v1268 = vadd.f32 %v908, %v1267
        %v1269 = vpop.f32.mrf.mxu0
        %v1270 = vadd.f32 %v908, %v1269
        %1271 = vmatmul.bf16.gmra.mxu0 %v710
        %v1272 = vpop.f32.mrf.mxu0
        %v1273 = vadd.f32 %v908, %v1272
        %v1274 = vpop.f32.mrf.mxu0
        %v1275 = vadd.f32 %v908, %v1274
        %1276 = vmatmul.bf16.gmra.mxu0 %v717
        %v1277 = vpop.f32.mrf.mxu0
        %v1278 = vadd.f32 %v908, %v1277
        %v1279 = vpop.f32.mrf.mxu0
        %v1280 = vadd.f32 %v908, %v1279
        %1281 = vmatmul.bf16.gmra.mxu0 %v724
        %v1282 = vpop.f32.mrf.mxu0
        %v1283 = vadd.f32 %v908, %v1282
        %v1284 = vpop.f32.mrf.mxu0
        %v1285 = vadd.f32 %v908, %v1284
        %1286 = vmatmul.bf16.gmra.mxu0 %v731
        %v1287 = vpop.f32.mrf.mxu0
        %v1288 = vadd.f32 %v908, %v1287
        %v1289 = vpop.f32.mrf.mxu0
        %v1290 = vadd.f32 %v908, %v1289
        %1291 = vmatmul.bf16.gmra.mxu0 %v738
        %v1292 = vpop.f32.mrf.mxu0
        %v1293 = vadd.f32 %v908, %v1292
        %v1294 = vpop.f32.mrf.mxu0
        %v1295 = vadd.f32 %v908, %v1294
        %1296 = vmatmul.bf16.gmra.mxu0 %v745
        %v1297 = vpop.f32.mrf.mxu0
        %v1298 = vadd.f32 %v908, %v1297
        %v1299 = vpop.f32.mrf.mxu0
        %v1300 = vadd.f32 %v908, %v1299
        %1301 = vmatmul.bf16.gmra.mxu0 %v752
        %v1302 = vpop.f32.mrf.mxu0
        %v1303 = vadd.f32 %v908, %v1302
        %v1304 = vpop.f32.mrf.mxu0
        %v1305 = vadd.f32 %v908, %v1304
        %1306 = vmatmul.bf16.gmra.mxu0 %v759
        %v1307 = vpop.f32.mrf.mxu0
        %v1308 = vadd.f32 %v908, %v1307
        %v1309 = vpop.f32.mrf.mxu0
        %v1310 = vadd.f32 %v908, %v1309
        %1311 = vmatmul.bf16.gmra.mxu0 %v766
        %v1312 = vpop.f32.mrf.mxu0
        %v1313 = vadd.f32 %v908, %v1312
        %v1314 = vpop.f32.mrf.mxu0
        %v1315 = vadd.f32 %v908, %v1314
        %1316 = vmatmul.bf16.gmra.mxu0 %v773
        %v1317 = vpop.f32.mrf.mxu0
        %v1318 = vadd.f32 %v908, %v1317
        %v1319 = vpop.f32.mrf.mxu0
        %v1320 = vadd.f32 %v908, %v1319
        %1321 = vmatmul.bf16.gmra.mxu0 %v780
        %v1322 = vpop.f32.mrf.mxu0
        %v1323 = vadd.f32 %v908, %v1322
        %v1324 = vpop.f32.mrf.mxu0
        %v1325 = vadd.f32 %v908, %v1324
        %1326 = vmatmul.bf16.gmra.mxu0 %v787
        %v1327 = vpop.f32.mrf.mxu0
        %v1328 = vadd.f32 %v908, %v1327
        %v1329 = vpop.f32.mrf.mxu0
        %v1330 = vadd.f32 %v908, %v1329
        %1331 = vmatmul.bf16.gmra.mxu0 %v794
        %v1332 = vpop.f32.mrf.mxu0
        %v1333 = vadd.f32 %v908, %v1332
        %v1334 = vpop.f32.mrf.mxu0
        %v1335 = vadd.f32 %v908, %v1334
        %1336 = vmatmul.bf16.gmra.mxu0 %v801
        %v1337 = vpop.f32.mrf.mxu0
        %v1338 = vadd.f32 %v908, %v1337
        %v1339 = vpop.f32.mrf.mxu0
        %v1340 = vadd.f32 %v908, %v1339
        %1341 = vdwg.mxu0
        %1342 = vmatpush.bf16.msra.mxu0 %v1121
        %1343 = vmatpush.bf16.msra.mxu0 %v1120
        %1344 = vmatpush.bf16.msra.mxu0 %v1119
        %1345 = vmatpush.bf16.msra.mxu0 %v1118
        %1346 = vmatpush.bf16.msra.mxu0 %v1117
        %1347 = vmatpush.bf16.msra.mxu0 %v1116
        %1348 = vmatpush.bf16.msra.mxu0 %v1115
        %1349 = vmatpush.bf16.msra.mxu0 %v1114
        %1350 = vmatmul.bf16.gmra.mxu0 %v697
        %v1351 = vpop.f32.mrf.mxu0
        %v1352 = vadd.f32 %v1263, %v1351
        %v1353 = vpop.f32.mrf.mxu0
        %v1354 = vadd.f32 %v1265, %v1353
        %1355 = vmatmul.bf16.gmra.mxu0 %v704
        %v1356 = vpop.f32.mrf.mxu0
        %v1357 = vadd.f32 %v1268, %v1356
        %v1358 = vpop.f32.mrf.mxu0
        %v1359 = vadd.f32 %v1270, %v1358
        %1360 = vmatmul.bf16.gmra.mxu0 %v711
        %v1361 = vpop.f32.mrf.mxu0
        %v1362 = vadd.f32 %v1273, %v1361
        %v1363 = vpop.f32.mrf.mxu0
        %v1364 = vadd.f32 %v1275, %v1363
        %1365 = vmatmul.bf16.gmra.mxu0 %v718
        %v1366 = vpop.f32.mrf.mxu0
        %v1367 = vadd.f32 %v1278, %v1366
        %v1368 = vpop.f32.mrf.mxu0
        %v1369 = vadd.f32 %v1280, %v1368
        %1370 = vmatmul.bf16.gmra.mxu0 %v725
        %v1371 = vpop.f32.mrf.mxu0
        %v1372 = vadd.f32 %v1283, %v1371
        %v1373 = vpop.f32.mrf.mxu0
        %v1374 = vadd.f32 %v1285, %v1373
        %1375 = vmatmul.bf16.gmra.mxu0 %v732
        %v1376 = vpop.f32.mrf.mxu0
        %v1377 = vadd.f32 %v1288, %v1376
        %v1378 = vpop.f32.mrf.mxu0
        %v1379 = vadd.f32 %v1290, %v1378
        %1380 = vmatmul.bf16.gmra.mxu0 %v739
        %v1381 = vpop.f32.mrf.mxu0
        %v1382 = vadd.f32 %v1293, %v1381
        %v1383 = vpop.f32.mrf.mxu0
        %v1384 = vadd.f32 %v1295, %v1383
        %1385 = vmatmul.bf16.gmra.mxu0 %v746
        %v1386 = vpop.f32.mrf.mxu0
        %v1387 = vadd.f32 %v1298, %v1386
        %v1388 = vpop.f32.mrf.mxu0
        %v1389 = vadd.f32 %v1300, %v1388
        %1390 = vmatmul.bf16.gmra.mxu0 %v753
        %v1391 = vpop.f32.mrf.mxu0
        %v1392 = vadd.f32 %v1303, %v1391
        %v1393 = vpop.f32.mrf.mxu0
        %v1394 = vadd.f32 %v1305, %v1393
        %1395 = vmatmul.bf16.gmra.mxu0 %v760
        %v1396 = vpop.f32.mrf.mxu0
        %v1397 = vadd.f32 %v1308, %v1396
        %v1398 = vpop.f32.mrf.mxu0
        %v1399 = vadd.f32 %v1310, %v1398
        %1400 = vmatmul.bf16.gmra.mxu0 %v767
        %v1401 = vpop.f32.mrf.mxu0
        %v1402 = vadd.f32 %v1313, %v1401
        %v1403 = vpop.f32.mrf.mxu0
        %v1404 = vadd.f32 %v1315, %v1403
        %1405 = vmatmul.bf16.gmra.mxu0 %v774
        %v1406 = vpop.f32.mrf.mxu0
        %v1407 = vadd.f32 %v1318, %v1406
        %v1408 = vpop.f32.mrf.mxu0
        %v1409 = vadd.f32 %v1320, %v1408
        %1410 = vmatmul.bf16.gmra.mxu0 %v781
        %v1411 = vpop.f32.mrf.mxu0
        %v1412 = vadd.f32 %v1323, %v1411
        %v1413 = vpop.f32.mrf.mxu0
        %v1414 = vadd.f32 %v1325, %v1413
        %1415 = vmatmul.bf16.gmra.mxu0 %v788
        %v1416 = vpop.f32.mrf.mxu0
        %v1417 = vadd.f32 %v1328, %v1416
        %v1418 = vpop.f32.mrf.mxu0
        %v1419 = vadd.f32 %v1330, %v1418
        %1420 = vmatmul.bf16.gmra.mxu0 %v795
        %v1421 = vpop.f32.mrf.mxu0
        %v1422 = vadd.f32 %v1333, %v1421
        %v1423 = vpop.f32.mrf.mxu0
        %v1424 = vadd.f32 %v1335, %v1423
        %1425 = vmatmul.bf16.gmra.mxu0 %v802
        %v1426 = vpop.f32.mrf.mxu0
        %v1427 = vadd.f32 %v1338, %v1426
        %v1428 = vpop.f32.mrf.mxu0
        %v1429 = vadd.f32 %v1340, %v1428
        %1430 = vdwg.mxu0
        %1431 = vmatpush.bf16.msra.mxu0 %v1129
        %1432 = vmatpush.bf16.msra.mxu0 %v1128
        %1433 = vmatpush.bf16.msra.mxu0 %v1127
        %1434 = vmatpush.bf16.msra.mxu0 %v1126
        %1435 = vmatpush.bf16.msra.mxu0 %v1125
        %1436 = vmatpush.bf16.msra.mxu0 %v1124
        %1437 = vmatpush.bf16.msra.mxu0 %v1123
        %1438 = vmatpush.bf16.msra.mxu0 %v1122
        %1439 = vmatmul.bf16.gmra.mxu0 %v698
        %v1440 = vpop.f32.mrf.mxu0
        %v1441 = vadd.f32 %v1352, %v1440
        %v1442 = vpop.f32.mrf.mxu0
        %v1443 = vadd.f32 %v1354, %v1442
        %1444 = vmatmul.bf16.gmra.mxu0 %v705
        %v1445 = vpop.f32.mrf.mxu0
        %v1446 = vadd.f32 %v1357, %v1445
        %v1447 = vpop.f32.mrf.mxu0
        %v1448 = vadd.f32 %v1359, %v1447
        %1449 = vmatmul.bf16.gmra.mxu0 %v712
        %v1450 = vpop.f32.mrf.mxu0
        %v1451 = vadd.f32 %v1362, %v1450
        %v1452 = vpop.f32.mrf.mxu0
        %v1453 = vadd.f32 %v1364, %v1452
        %1454 = vmatmul.bf16.gmra.mxu0 %v719
        %v1455 = vpop.f32.mrf.mxu0
        %v1456 = vadd.f32 %v1367, %v1455
        %v1457 = vpop.f32.mrf.mxu0
        %v1458 = vadd.f32 %v1369, %v1457
        %1459 = vmatmul.bf16.gmra.mxu0 %v726
        %v1460 = vpop.f32.mrf.mxu0
        %v1461 = vadd.f32 %v1372, %v1460
        %v1462 = vpop.f32.mrf.mxu0
        %v1463 = vadd.f32 %v1374, %v1462
        %1464 = vmatmul.bf16.gmra.mxu0 %v733
        %v1465 = vpop.f32.mrf.mxu0
        %v1466 = vadd.f32 %v1377, %v1465
        %v1467 = vpop.f32.mrf.mxu0
        %v1468 = vadd.f32 %v1379, %v1467
        %1469 = vmatmul.bf16.gmra.mxu0 %v740
        %v1470 = vpop.f32.mrf.mxu0
        %v1471 = vadd.f32 %v1382, %v1470
        %v1472 = vpop.f32.mrf.mxu0
        %v1473 = vadd.f32 %v1384, %v1472
        %1474 = vmatmul.bf16.gmra.mxu0 %v747
        %v1475 = vpop.f32.mrf.mxu0
        %v1476 = vadd.f32 %v1387, %v1475
        %v1477 = vpop.f32.mrf.mxu0
        %v1478 = vadd.f32 %v1389, %v1477
        %1479 = vmatmul.bf16.gmra.mxu0 %v754
        %v1480 = vpop.f32.mrf.mxu0
        %v1481 = vadd.f32 %v1392, %v1480
        %v1482 = vpop.f32.mrf.mxu0
        %v1483 = vadd.f32 %v1394, %v1482
        %1484 = vmatmul.bf16.gmra.mxu0 %v761
        %v1485 = vpop.f32.mrf.mxu0
        %v1486 = vadd.f32 %v1397, %v1485
        %v1487 = vpop.f32.mrf.mxu0
        %v1488 = vadd.f32 %v1399, %v1487
        %1489 = vmatmul.bf16.gmra.mxu0 %v768
        %v1490 = vpop.f32.mrf.mxu0
        %v1491 = vadd.f32 %v1402, %v1490
        %v1492 = vpop.f32.mrf.mxu0
        %v1493 = vadd.f32 %v1404, %v1492
        %1494 = vmatmul.bf16.gmra.mxu0 %v775
        %v1495 = vpop.f32.mrf.mxu0
        %v1496 = vadd.f32 %v1407, %v1495
        %v1497 = vpop.f32.mrf.mxu0
        %v1498 = vadd.f32 %v1409, %v1497
        %1499 = vmatmul.bf16.gmra.mxu0 %v782
        %v1500 = vpop.f32.mrf.mxu0
        %v1501 = vadd.f32 %v1412, %v1500
        %v1502 = vpop.f32.mrf.mxu0
        %v1503 = vadd.f32 %v1414, %v1502
        %1504 = vmatmul.bf16.gmra.mxu0 %v789
        %v1505 = vpop.f32.mrf.mxu0
        %v1506 = vadd.f32 %v1417, %v1505
        %v1507 = vpop.f32.mrf.mxu0
        %v1508 = vadd.f32 %v1419, %v1507
        %1509 = vmatmul.bf16.gmra.mxu0 %v796
        %v1510 = vpop.f32.mrf.mxu0
        %v1511 = vadd.f32 %v1422, %v1510
        %v1512 = vpop.f32.mrf.mxu0
        %v1513 = vadd.f32 %v1424, %v1512
        %1514 = vmatmul.bf16.gmra.mxu0 %v803
        %v1515 = vpop.f32.mrf.mxu0
        %v1516 = vadd.f32 %v1427, %v1515
        %v1517 = vpop.f32.mrf.mxu0
        %v1518 = vadd.f32 %v1429, %v1517
        %1519 = vdwg.mxu0
        %1520 = vmatpush.bf16.msra.mxu0 %v1137
        %1521 = vmatpush.bf16.msra.mxu0 %v1136
        %1522 = vmatpush.bf16.msra.mxu0 %v1135
        %1523 = vmatpush.bf16.msra.mxu0 %v1134
        %1524 = vmatpush.bf16.msra.mxu0 %v1133
        %1525 = vmatpush.bf16.msra.mxu0 %v1132
        %1526 = vmatpush.bf16.msra.mxu0 %v1131
        %1527 = vmatpush.bf16.msra.mxu0 %v1130
        %1528 = vmatmul.bf16.gmra.mxu0 %v699
        %v1529 = vpop.f32.mrf.mxu0
        %v1530 = vadd.f32 %v1441, %v1529
        %v1531 = vpop.f32.mrf.mxu0
        %v1532 = vadd.f32 %v1443, %v1531
        %1533 = vmatmul.bf16.gmra.mxu0 %v706
        %v1534 = vpop.f32.mrf.mxu0
        %v1535 = vadd.f32 %v1446, %v1534
        %v1536 = vpop.f32.mrf.mxu0
        %v1537 = vadd.f32 %v1448, %v1536
        %1538 = vmatmul.bf16.gmra.mxu0 %v713
        %v1539 = vpop.f32.mrf.mxu0
        %v1540 = vadd.f32 %v1451, %v1539
        %v1541 = vpop.f32.mrf.mxu0
        %v1542 = vadd.f32 %v1453, %v1541
        %1543 = vmatmul.bf16.gmra.mxu0 %v720
        %v1544 = vpop.f32.mrf.mxu0
        %v1545 = vadd.f32 %v1456, %v1544
        %v1546 = vpop.f32.mrf.mxu0
        %v1547 = vadd.f32 %v1458, %v1546
        %1548 = vmatmul.bf16.gmra.mxu0 %v727
        %v1549 = vpop.f32.mrf.mxu0
        %v1550 = vadd.f32 %v1461, %v1549
        %v1551 = vpop.f32.mrf.mxu0
        %v1552 = vadd.f32 %v1463, %v1551
        %1553 = vmatmul.bf16.gmra.mxu0 %v734
        %v1554 = vpop.f32.mrf.mxu0
        %v1555 = vadd.f32 %v1466, %v1554
        %v1556 = vpop.f32.mrf.mxu0
        %v1557 = vadd.f32 %v1468, %v1556
        %1558 = vmatmul.bf16.gmra.mxu0 %v741
        %v1559 = vpop.f32.mrf.mxu0
        %v1560 = vadd.f32 %v1471, %v1559
        %v1561 = vpop.f32.mrf.mxu0
        %v1562 = vadd.f32 %v1473, %v1561
        %1563 = vmatmul.bf16.gmra.mxu0 %v748
        %v1564 = vpop.f32.mrf.mxu0
        %v1565 = vadd.f32 %v1476, %v1564
        %v1566 = vpop.f32.mrf.mxu0
        %v1567 = vadd.f32 %v1478, %v1566
        %1568 = vmatmul.bf16.gmra.mxu0 %v755
        %v1569 = vpop.f32.mrf.mxu0
        %v1570 = vadd.f32 %v1481, %v1569
        %v1571 = vpop.f32.mrf.mxu0
        %v1572 = vadd.f32 %v1483, %v1571
        %1573 = vmatmul.bf16.gmra.mxu0 %v762
        %v1574 = vpop.f32.mrf.mxu0
        %v1575 = vadd.f32 %v1486, %v1574
        %v1576 = vpop.f32.mrf.mxu0
        %v1577 = vadd.f32 %v1488, %v1576
        %1578 = vmatmul.bf16.gmra.mxu0 %v769
        %v1579 = vpop.f32.mrf.mxu0
        %v1580 = vadd.f32 %v1491, %v1579
        %v1581 = vpop.f32.mrf.mxu0
        %v1582 = vadd.f32 %v1493, %v1581
        %1583 = vmatmul.bf16.gmra.mxu0 %v776
        %v1584 = vpop.f32.mrf.mxu0
        %v1585 = vadd.f32 %v1496, %v1584
        %v1586 = vpop.f32.mrf.mxu0
        %v1587 = vadd.f32 %v1498, %v1586
        %1588 = vmatmul.bf16.gmra.mxu0 %v783
        %v1589 = vpop.f32.mrf.mxu0
        %v1590 = vadd.f32 %v1501, %v1589
        %v1591 = vpop.f32.mrf.mxu0
        %v1592 = vadd.f32 %v1503, %v1591
        %1593 = vmatmul.bf16.gmra.mxu0 %v790
        %v1594 = vpop.f32.mrf.mxu0
        %v1595 = vadd.f32 %v1506, %v1594
        %v1596 = vpop.f32.mrf.mxu0
        %v1597 = vadd.f32 %v1508, %v1596
        %1598 = vmatmul.bf16.gmra.mxu0 %v797
        %v1599 = vpop.f32.mrf.mxu0
        %v1600 = vadd.f32 %v1511, %v1599
        %v1601 = vpop.f32.mrf.mxu0
        %v1602 = vadd.f32 %v1513, %v1601
        %1603 = vmatmul.bf16.gmra.mxu0 %v804
        %v1604 = vpop.f32.mrf.mxu0
        %v1605 = vadd.f32 %v1516, %v1604
        %v1606 = vpop.f32.mrf.mxu0
        %v1607 = vadd.f32 %v1518, %v1606
        %1608 = vdwg.mxu0
        %1609 = vmatpush.bf16.msra.mxu0 %v1145
        %1610 = vmatpush.bf16.msra.mxu0 %v1144
        %1611 = vmatpush.bf16.msra.mxu0 %v1143
        %1612 = vmatpush.bf16.msra.mxu0 %v1142
        %1613 = vmatpush.bf16.msra.mxu0 %v1141
        %1614 = vmatpush.bf16.msra.mxu0 %v1140
        %1615 = vmatpush.bf16.msra.mxu0 %v1139
        %1616 = vmatpush.bf16.msra.mxu0 %v1138
        %1617 = vmatmul.bf16.gmra.mxu0 %v700
        %v1618 = vpop.f32.mrf.mxu0
        %v1619 = vadd.f32 %v1530, %v1618
        %v1620 = vpop.f32.mrf.mxu0
        %v1621 = vadd.f32 %v1532, %v1620
        %1622 = vmatmul.bf16.gmra.mxu0 %v707
        %v1623 = vpop.f32.mrf.mxu0
        %v1624 = vadd.f32 %v1535, %v1623
        %v1625 = vpop.f32.mrf.mxu0
        %v1626 = vadd.f32 %v1537, %v1625
        %1627 = vmatmul.bf16.gmra.mxu0 %v714
        %v1628 = vpop.f32.mrf.mxu0
        %v1629 = vadd.f32 %v1540, %v1628
        %v1630 = vpop.f32.mrf.mxu0
        %v1631 = vadd.f32 %v1542, %v1630
        %1632 = vmatmul.bf16.gmra.mxu0 %v721
        %v1633 = vpop.f32.mrf.mxu0
        %v1634 = vadd.f32 %v1545, %v1633
        %v1635 = vpop.f32.mrf.mxu0
        %v1636 = vadd.f32 %v1547, %v1635
        %1637 = vmatmul.bf16.gmra.mxu0 %v728
        %v1638 = vpop.f32.mrf.mxu0
        %v1639 = vadd.f32 %v1550, %v1638
        %v1640 = vpop.f32.mrf.mxu0
        %v1641 = vadd.f32 %v1552, %v1640
        %1642 = vmatmul.bf16.gmra.mxu0 %v735
        %v1643 = vpop.f32.mrf.mxu0
        %v1644 = vadd.f32 %v1555, %v1643
        %v1645 = vpop.f32.mrf.mxu0
        %v1646 = vadd.f32 %v1557, %v1645
        %1647 = vmatmul.bf16.gmra.mxu0 %v742
        %v1648 = vpop.f32.mrf.mxu0
        %v1649 = vadd.f32 %v1560, %v1648
        %v1650 = vpop.f32.mrf.mxu0
        %v1651 = vadd.f32 %v1562, %v1650
        %1652 = vmatmul.bf16.gmra.mxu0 %v749
        %v1653 = vpop.f32.mrf.mxu0
        %v1654 = vadd.f32 %v1565, %v1653
        %v1655 = vpop.f32.mrf.mxu0
        %v1656 = vadd.f32 %v1567, %v1655
        %1657 = vmatmul.bf16.gmra.mxu0 %v756
        %v1658 = vpop.f32.mrf.mxu0
        %v1659 = vadd.f32 %v1570, %v1658
        %v1660 = vpop.f32.mrf.mxu0
        %v1661 = vadd.f32 %v1572, %v1660
        %1662 = vmatmul.bf16.gmra.mxu0 %v763
        %v1663 = vpop.f32.mrf.mxu0
        %v1664 = vadd.f32 %v1575, %v1663
        %v1665 = vpop.f32.mrf.mxu0
        %v1666 = vadd.f32 %v1577, %v1665
        %1667 = vmatmul.bf16.gmra.mxu0 %v770
        %v1668 = vpop.f32.mrf.mxu0
        %v1669 = vadd.f32 %v1580, %v1668
        %v1670 = vpop.f32.mrf.mxu0
        %v1671 = vadd.f32 %v1582, %v1670
        %1672 = vmatmul.bf16.gmra.mxu0 %v777
        %v1673 = vpop.f32.mrf.mxu0
        %v1674 = vadd.f32 %v1585, %v1673
        %v1675 = vpop.f32.mrf.mxu0
        %v1676 = vadd.f32 %v1587, %v1675
        %1677 = vmatmul.bf16.gmra.mxu0 %v784
        %v1678 = vpop.f32.mrf.mxu0
        %v1679 = vadd.f32 %v1590, %v1678
        %v1680 = vpop.f32.mrf.mxu0
        %v1681 = vadd.f32 %v1592, %v1680
        %1682 = vmatmul.bf16.gmra.mxu0 %v791
        %v1683 = vpop.f32.mrf.mxu0
        %v1684 = vadd.f32 %v1595, %v1683
        %v1685 = vpop.f32.mrf.mxu0
        %v1686 = vadd.f32 %v1597, %v1685
        %1687 = vmatmul.bf16.gmra.mxu0 %v798
        %v1688 = vpop.f32.mrf.mxu0
        %v1689 = vadd.f32 %v1600, %v1688
        %v1690 = vpop.f32.mrf.mxu0
        %v1691 = vadd.f32 %v1602, %v1690
        %1692 = vmatmul.bf16.gmra.mxu0 %v805
        %v1693 = vpop.f32.mrf.mxu0
        %v1694 = vadd.f32 %v1605, %v1693
        %v1695 = vpop.f32.mrf.mxu0
        %v1696 = vadd.f32 %v1607, %v1695
        %1697 = vdwg.mxu0
        %1698 = vmatpush.bf16.msra.mxu0 %v1153
        %1699 = vmatpush.bf16.msra.mxu0 %v1152
        %1700 = vmatpush.bf16.msra.mxu0 %v1151
        %1701 = vmatpush.bf16.msra.mxu0 %v1150
        %1702 = vmatpush.bf16.msra.mxu0 %v1149
        %1703 = vmatpush.bf16.msra.mxu0 %v1148
        %1704 = vmatpush.bf16.msra.mxu0 %v1147
        %1705 = vmatpush.bf16.msra.mxu0 %v1146
        %1706 = vmatmul.bf16.gmra.mxu0 %v701
        %v1707 = vpop.f32.mrf.mxu0
        %v1708 = vadd.f32 %v1619, %v1707
        %v1709 = vpop.f32.mrf.mxu0
        %v1710 = vadd.f32 %v1621, %v1709
        %1711 = vmatmul.bf16.gmra.mxu0 %v708
        %v1712 = vpop.f32.mrf.mxu0
        %v1713 = vadd.f32 %v1624, %v1712
        %v1714 = vpop.f32.mrf.mxu0
        %v1715 = vadd.f32 %v1626, %v1714
        %1716 = vmatmul.bf16.gmra.mxu0 %v715
        %v1717 = vpop.f32.mrf.mxu0
        %v1718 = vadd.f32 %v1629, %v1717
        %v1719 = vpop.f32.mrf.mxu0
        %v1720 = vadd.f32 %v1631, %v1719
        %1721 = vmatmul.bf16.gmra.mxu0 %v722
        %v1722 = vpop.f32.mrf.mxu0
        %v1723 = vadd.f32 %v1634, %v1722
        %v1724 = vpop.f32.mrf.mxu0
        %v1725 = vadd.f32 %v1636, %v1724
        %1726 = vmatmul.bf16.gmra.mxu0 %v729
        %v1727 = vpop.f32.mrf.mxu0
        %v1728 = vadd.f32 %v1639, %v1727
        %v1729 = vpop.f32.mrf.mxu0
        %v1730 = vadd.f32 %v1641, %v1729
        %1731 = vmatmul.bf16.gmra.mxu0 %v736
        %v1732 = vpop.f32.mrf.mxu0
        %v1733 = vadd.f32 %v1644, %v1732
        %v1734 = vpop.f32.mrf.mxu0
        %v1735 = vadd.f32 %v1646, %v1734
        %1736 = vmatmul.bf16.gmra.mxu0 %v743
        %v1737 = vpop.f32.mrf.mxu0
        %v1738 = vadd.f32 %v1649, %v1737
        %v1739 = vpop.f32.mrf.mxu0
        %v1740 = vadd.f32 %v1651, %v1739
        %1741 = vmatmul.bf16.gmra.mxu0 %v750
        %v1742 = vpop.f32.mrf.mxu0
        %v1743 = vadd.f32 %v1654, %v1742
        %v1744 = vpop.f32.mrf.mxu0
        %v1745 = vadd.f32 %v1656, %v1744
        %1746 = vmatmul.bf16.gmra.mxu0 %v757
        %v1747 = vpop.f32.mrf.mxu0
        %v1748 = vadd.f32 %v1659, %v1747
        %v1749 = vpop.f32.mrf.mxu0
        %v1750 = vadd.f32 %v1661, %v1749
        %1751 = vmatmul.bf16.gmra.mxu0 %v764
        %v1752 = vpop.f32.mrf.mxu0
        %v1753 = vadd.f32 %v1664, %v1752
        %v1754 = vpop.f32.mrf.mxu0
        %v1755 = vadd.f32 %v1666, %v1754
        %1756 = vmatmul.bf16.gmra.mxu0 %v771
        %v1757 = vpop.f32.mrf.mxu0
        %v1758 = vadd.f32 %v1669, %v1757
        %v1759 = vpop.f32.mrf.mxu0
        %v1760 = vadd.f32 %v1671, %v1759
        %1761 = vmatmul.bf16.gmra.mxu0 %v778
        %v1762 = vpop.f32.mrf.mxu0
        %v1763 = vadd.f32 %v1674, %v1762
        %v1764 = vpop.f32.mrf.mxu0
        %v1765 = vadd.f32 %v1676, %v1764
        %1766 = vmatmul.bf16.gmra.mxu0 %v785
        %v1767 = vpop.f32.mrf.mxu0
        %v1768 = vadd.f32 %v1679, %v1767
        %v1769 = vpop.f32.mrf.mxu0
        %v1770 = vadd.f32 %v1681, %v1769
        %1771 = vmatmul.bf16.gmra.mxu0 %v792
        %v1772 = vpop.f32.mrf.mxu0
        %v1773 = vadd.f32 %v1684, %v1772
        %v1774 = vpop.f32.mrf.mxu0
        %v1775 = vadd.f32 %v1686, %v1774
        %1776 = vmatmul.bf16.gmra.mxu0 %v799
        %v1777 = vpop.f32.mrf.mxu0
        %v1778 = vadd.f32 %v1689, %v1777
        %v1779 = vpop.f32.mrf.mxu0
        %v1780 = vadd.f32 %v1691, %v1779
        %1781 = vmatmul.bf16.gmra.mxu0 %v806
        %v1782 = vpop.f32.mrf.mxu0
        %v1783 = vadd.f32 %v1694, %v1782
        %v1784 = vpop.f32.mrf.mxu0
        %v1785 = vadd.f32 %v1696, %v1784
        %1786 = vdwg.mxu0
        %1787 = vmatpush.bf16.msra.mxu0 0
        %1788 = vmatpush.bf16.msra.mxu0 0
        %1789 = vmatpush.bf16.msra.mxu0 0
        %1790 = vmatpush.bf16.msra.mxu0 0
        %1791 = vmatpush.bf16.msra.mxu0 0
        %1792 = vmatpush.bf16.msra.mxu0 0
        %1793 = vmatpush.bf16.msra.mxu0 0
        %1794 = vmatpush.bf16.msra.mxu0 %v1154
        %1795 = vmatmul.bf16.gmra.mxu0 %v1206
        %v1796 = vpop.f32.mrf.mxu0
        %v1797 = vadd.f32 %v1708, %v1796
        %v1798 = vpop.f32.mrf.mxu0
        %v1799 = vadd.f32 %v1710, %v1798
        %1800 = vmatmul.bf16.gmra.mxu0 %v1209
        %v1801 = vpop.f32.mrf.mxu0
        %v1802 = vadd.f32 %v1713, %v1801
        %v1803 = vpop.f32.mrf.mxu0
        %v1804 = vadd.f32 %v1715, %v1803
        %1805 = vmatmul.bf16.gmra.mxu0 %v1212
        %v1806 = vpop.f32.mrf.mxu0
        %v1807 = vadd.f32 %v1718, %v1806
        %v1808 = vpop.f32.mrf.mxu0
        %v1809 = vadd.f32 %v1720, %v1808
        %1810 = vmatmul.bf16.gmra.mxu0 %v1215
        %v1811 = vpop.f32.mrf.mxu0
        %v1812 = vadd.f32 %v1723, %v1811
        %v1813 = vpop.f32.mrf.mxu0
        %v1814 = vadd.f32 %v1725, %v1813
        %1815 = vmatmul.bf16.gmra.mxu0 %v1218
        %v1816 = vpop.f32.mrf.mxu0
        %v1817 = vadd.f32 %v1728, %v1816
        %v1818 = vpop.f32.mrf.mxu0
        %v1819 = vadd.f32 %v1730, %v1818
        %1820 = vmatmul.bf16.gmra.mxu0 %v1221
        %v1821 = vpop.f32.mrf.mxu0
        %v1822 = vadd.f32 %v1733, %v1821
        %v1823 = vpop.f32.mrf.mxu0
        %v1824 = vadd.f32 %v1735, %v1823
        %1825 = vmatmul.bf16.gmra.mxu0 %v1224
        %v1826 = vpop.f32.mrf.mxu0
        %v1827 = vadd.f32 %v1738, %v1826
        %v1828 = vpop.f32.mrf.mxu0
        %v1829 = vadd.f32 %v1740, %v1828
        %1830 = vmatmul.bf16.gmra.mxu0 %v1227
        %v1831 = vpop.f32.mrf.mxu0
        %v1832 = vadd.f32 %v1743, %v1831
        %v1833 = vpop.f32.mrf.mxu0
        %v1834 = vadd.f32 %v1745, %v1833
        %1835 = vmatmul.bf16.gmra.mxu0 %v1230
        %v1836 = vpop.f32.mrf.mxu0
        %v1837 = vadd.f32 %v1748, %v1836
        %v1838 = vpop.f32.mrf.mxu0
        %v1839 = vadd.f32 %v1750, %v1838
        %1840 = vmatmul.bf16.gmra.mxu0 %v1233
        %v1841 = vpop.f32.mrf.mxu0
        %v1842 = vadd.f32 %v1753, %v1841
        %v1843 = vpop.f32.mrf.mxu0
        %v1844 = vadd.f32 %v1755, %v1843
        %1845 = vmatmul.bf16.gmra.mxu0 %v1236
        %v1846 = vpop.f32.mrf.mxu0
        %v1847 = vadd.f32 %v1758, %v1846
        %v1848 = vpop.f32.mrf.mxu0
        %v1849 = vadd.f32 %v1760, %v1848
        %1850 = vmatmul.bf16.gmra.mxu0 %v1239
        %v1851 = vpop.f32.mrf.mxu0
        %v1852 = vadd.f32 %v1763, %v1851
        %v1853 = vpop.f32.mrf.mxu0
        %v1854 = vadd.f32 %v1765, %v1853
        %1855 = vmatmul.bf16.gmra.mxu0 %v1242
        %v1856 = vpop.f32.mrf.mxu0
        %v1857 = vadd.f32 %v1768, %v1856
        %v1858 = vpop.f32.mrf.mxu0
        %v1859 = vadd.f32 %v1770, %v1858
        %1860 = vmatmul.bf16.gmra.mxu0 %v1245
        %v1861 = vpop.f32.mrf.mxu0
        %v1862 = vadd.f32 %v1773, %v1861
        %v1863 = vpop.f32.mrf.mxu0
        %v1864 = vadd.f32 %v1775, %v1863
        %1865 = vmatmul.bf16.gmra.mxu0 %v1248
        %v1866 = vpop.f32.mrf.mxu0
        %v1867 = vadd.f32 %v1778, %v1866
        %v1868 = vpop.f32.mrf.mxu0
        %v1869 = vadd.f32 %v1780, %v1868
        %1870 = vmatmul.bf16.gmra.mxu0 %v1251
        %v1871 = vpop.f32.mrf.mxu0
        %v1872 = vadd.f32 %v1783, %v1871
        %v1873 = vpop.f32.mrf.mxu0
        %v1874 = vadd.f32 %v1785, %v1873
        %1875 = vdwg.mxu0
        %v1876 = vmax.f32 %v1797, 0.0
        %v1877 = vmax.f32 %v1799, 0.0
        %v1878 = vmax.f32 %v1802, 0.0
        %v1879 = vmax.f32 %v1804, 0.0
        %v1880 = vmax.f32 %v1807, 0.0
        %v1881 = vmax.f32 %v1809, 0.0
        %v1882 = vmax.f32 %v1812, 0.0
        %v1883 = vmax.f32 %v1814, 0.0
        %v1884 = vmax.f32 %v1817, 0.0
        %v1885 = vmax.f32 %v1819, 0.0
        %v1886 = vmax.f32 %v1822, 0.0
        %v1887 = vmax.f32 %v1824, 0.0
        %v1888 = vmax.f32 %v1827, 0.0
        %v1889 = vmax.f32 %v1829, 0.0
        %v1890 = vmax.f32 %v1832, 0.0
        %v1891 = vmax.f32 %v1834, 0.0
        %v1892 = vmax.f32 %v1837, 0.0
        %v1893 = vmax.f32 %v1839, 0.0
        %v1894 = vmax.f32 %v1842, 0.0
        %v1895 = vmax.f32 %v1844, 0.0
        %v1896 = vmax.f32 %v1847, 0.0
        %v1897 = vmax.f32 %v1849, 0.0
        %v1898 = vmax.f32 %v1852, 0.0
        %v1899 = vmax.f32 %v1854, 0.0
        %v1900 = vmax.f32 %v1857, 0.0
        %v1901 = vmax.f32 %v1859, 0.0
        %v1902 = vmax.f32 %v1862, 0.0
        %v1903 = vmax.f32 %v1864, 0.0
        %v1904 = vmax.f32 %v1867, 0.0
        %v1905 = vmax.f32 %v1869, 0.0
        %v1906 = vmax.f32 %v1872, 0.0
        %v1907 = vmax.f32 %v1874, 0.0
        %v1908 = vpack.c.bf16 %v1877, %v1876
        %v1909 = vpack.c.bf16 %v1879, %v1878
        %v1910 = vpack.c.bf16 %v1881, %v1880
        %v1911 = vpack.c.bf16 %v1883, %v1882
        %v1912 = vpack.c.bf16 %v1885, %v1884
        %v1913 = vpack.c.bf16 %v1887, %v1886
        %v1914 = vpack.c.bf16 %v1889, %v1888
        %v1915 = vpack.c.bf16 %v1891, %v1890
        %v1916 = vpack.c.bf16 %v1893, %v1892
        %v1917 = vpack.c.bf16 %v1895, %v1894
        %v1918 = vpack.c.bf16 %v1897, %v1896
        %v1919 = vpack.c.bf16 %v1899, %v1898
        %v1920 = vpack.c.bf16 %v1901, %v1900
        %v1921 = vpack.c.bf16 %v1903, %v1902
        %v1922 = vpack.c.bf16 %v1905, %v1904
        %v1923 = vpack.c.bf16 %v1907, %v1906
        %v1924 = vld [vmem:[%s3] sm:$0xf]
        %v1925 = vld [vmem:[%s3 + $0x4] sm:$0xf]
        %v1926 = vld [vmem:[%s3 + $0x8] sm:$0xf]
        %v1927 = vld [vmem:[%s3 + $0xc] sm:$0xf]
        %v1928 = vld [vmem:[%s3 + $0x10] sm:$0xf]
        %v1929 = vld [vmem:[%s3 + $0x14] sm:$0xf]
        %v1930 = vld [vmem:[%s3 + $0x18] sm:$0xf]
        %v1931 = vld [vmem:[%s3 + $0x1c] sm:$0xf]
        %v1932 = vld [vmem:[%s3 + $0x20] sm:$0xf]
        %v1933 = vld [vmem:[%s3 + $0x24] sm:$0xf]
        %v1934 = vld [vmem:[%s3 + $0x28] sm:$0xf]
        %v1935 = vld [vmem:[%s3 + $0x2c] sm:$0xf]
        %v1936 = vld [vmem:[%s3 + $0x30] sm:$0xf]
        %v1937 = vld [vmem:[%s3 + $0x34] sm:$0xf]
        %v1938 = vld [vmem:[%s3 + $0x38] sm:$0xf]
        %v1939 = vld [vmem:[%s3 + $0x3c] sm:$0xf]
        %v1940 = vld [vmem:[%s4] sm:$0x1]
        %v1942 = vperm.slane %v1940, 0
        %v1960 = vunpack.c.l.b16 %v1924
        %v1961 = vunpack.c.l.b16 %v1925
        %v1962 = vunpack.c.l.b16 %v1926
        %v1963 = vunpack.c.l.b16 %v1927
        %v1964 = vunpack.c.l.b16 %v1928
        %v1965 = vunpack.c.l.b16 %v1929
        %v1966 = vunpack.c.l.b16 %v1930
        %v1967 = vunpack.c.l.b16 %v1931
        %v1968 = vunpack.c.l.b16 %v1932
        %v1969 = vunpack.c.l.b16 %v1933
        %v1970 = vunpack.c.l.b16 %v1934
        %v1971 = vunpack.c.l.b16 %v1935
        %v1972 = vunpack.c.l.b16 %v1936
        %v1973 = vunpack.c.l.b16 %v1937
        %v1974 = vunpack.c.l.b16 %v1938
        %v1975 = vunpack.c.l.b16 %v1939
        %v1976 = vpack.c.b16 %v1961, %v1960
        %v1977 = vpack.c.b16 %v1963, %v1962
        %v1978 = vpack.c.b16 %v1965, %v1964
        %v1979 = vpack.c.b16 %v1967, %v1966
        %v1980 = vpack.c.b16 %v1969, %v1968
        %v1981 = vpack.c.b16 %v1971, %v1970
        %v1982 = vpack.c.b16 %v1973, %v1972
        %v1983 = vpack.c.b16 %v1975, %v1974
        %1992 = vmatpush.bf16.msra.mxu0 %v1983
        %1993 = vmatpush.bf16.msra.mxu0 %v1982
        %1994 = vmatpush.bf16.msra.mxu0 %v1981
        %1995 = vmatpush.bf16.msra.mxu0 %v1980
        %1996 = vmatpush.bf16.msra.mxu0 %v1979
        %1997 = vmatpush.bf16.msra.mxu0 %v1978
        %1998 = vmatpush.bf16.msra.mxu0 %v1977
        %1999 = vmatpush.bf16.msra.mxu0 %v1976
        %2000 = vmatmul.bf16.gmra.mxu0 %v1908
        %v2001 = vpop.f32.mrf.mxu0
        %v2002 = vadd.f32 %v1942, %v2001
        %v2003 = vpop.f32.mrf.mxu0
        %v2004 = vadd.f32 %v1942, %v2003
        %2005 = vmatmul.bf16.gmra.mxu0 %v1909
        %v2006 = vpop.f32.mrf.mxu0
        %v2007 = vadd.f32 %v1942, %v2006
        %v2008 = vpop.f32.mrf.mxu0
        %v2009 = vadd.f32 %v1942, %v2008
        %2010 = vmatmul.bf16.gmra.mxu0 %v1910
        %v2011 = vpop.f32.mrf.mxu0
        %v2012 = vadd.f32 %v1942, %v2011
        %v2013 = vpop.f32.mrf.mxu0
        %v2014 = vadd.f32 %v1942, %v2013
        %2015 = vmatmul.bf16.gmra.mxu0 %v1911
        %v2016 = vpop.f32.mrf.mxu0
        %v2017 = vadd.f32 %v1942, %v2016
        %v2018 = vpop.f32.mrf.mxu0
        %v2019 = vadd.f32 %v1942, %v2018
        %2020 = vmatmul.bf16.gmra.mxu0 %v1912
        %v2021 = vpop.f32.mrf.mxu0
        %v2022 = vadd.f32 %v1942, %v2021
        %v2023 = vpop.f32.mrf.mxu0
        %v2024 = vadd.f32 %v1942, %v2023
        %2025 = vmatmul.bf16.gmra.mxu0 %v1913
        %v2026 = vpop.f32.mrf.mxu0
        %v2027 = vadd.f32 %v1942, %v2026
        %v2028 = vpop.f32.mrf.mxu0
        %v2029 = vadd.f32 %v1942, %v2028
        %2030 = vmatmul.bf16.gmra.mxu0 %v1914
        %v2031 = vpop.f32.mrf.mxu0
        %v2032 = vadd.f32 %v1942, %v2031
        %v2033 = vpop.f32.mrf.mxu0
        %v2034 = vadd.f32 %v1942, %v2033
        %2035 = vmatmul.bf16.gmra.mxu0 %v1915
        %v2036 = vpop.f32.mrf.mxu0
        %v2037 = vadd.f32 %v1942, %v2036
        %v2038 = vpop.f32.mrf.mxu0
        %v2039 = vadd.f32 %v1942, %v2038
        %2040 = vmatmul.bf16.gmra.mxu0 %v1916
        %v2041 = vpop.f32.mrf.mxu0
        %v2042 = vadd.f32 %v1942, %v2041
        %v2043 = vpop.f32.mrf.mxu0
        %v2044 = vadd.f32 %v1942, %v2043
        %2045 = vmatmul.bf16.gmra.mxu0 %v1917
        %v2046 = vpop.f32.mrf.mxu0
        %v2047 = vadd.f32 %v1942, %v2046
        %v2048 = vpop.f32.mrf.mxu0
        %v2049 = vadd.f32 %v1942, %v2048
        %2050 = vmatmul.bf16.gmra.mxu0 %v1918
        %v2051 = vpop.f32.mrf.mxu0
        %v2052 = vadd.f32 %v1942, %v2051
        %v2053 = vpop.f32.mrf.mxu0
        %v2054 = vadd.f32 %v1942, %v2053
        %2055 = vmatmul.bf16.gmra.mxu0 %v1919
        %v2056 = vpop.f32.mrf.mxu0
        %v2057 = vadd.f32 %v1942, %v2056
        %v2058 = vpop.f32.mrf.mxu0
        %v2059 = vadd.f32 %v1942, %v2058
        %2060 = vmatmul.bf16.gmra.mxu0 %v1920
        %v2061 = vpop.f32.mrf.mxu0
        %v2062 = vadd.f32 %v1942, %v2061
        %v2063 = vpop.f32.mrf.mxu0
        %v2064 = vadd.f32 %v1942, %v2063
        %2065 = vmatmul.bf16.gmra.mxu0 %v1921
        %v2066 = vpop.f32.mrf.mxu0
        %v2067 = vadd.f32 %v1942, %v2066
        %v2068 = vpop.f32.mrf.mxu0
        %v2069 = vadd.f32 %v1942, %v2068
        %2070 = vmatmul.bf16.gmra.mxu0 %v1922
        %v2071 = vpop.f32.mrf.mxu0
        %v2072 = vadd.f32 %v1942, %v2071
        %v2073 = vpop.f32.mrf.mxu0
        %v2074 = vadd.f32 %v1942, %v2073
        %2075 = vmatmul.bf16.gmra.mxu0 %v1923
        %v2076 = vpop.f32.mrf.mxu0
        %v2077 = vadd.f32 %v1942, %v2076
        %v2078 = vpop.f32.mrf.mxu0
        %v2079 = vadd.f32 %v1942, %v2078
        %2080 = vdwg.mxu0
        %v2081 = vmax.f32 %v2002, 0.0
        %v2082 = vmax.f32 %v2004, 0.0
        %v2083 = vmax.f32 %v2007, 0.0
        %v2084 = vmax.f32 %v2009, 0.0
        %v2085 = vmax.f32 %v2012, 0.0
        %v2086 = vmax.f32 %v2014, 0.0
        %v2087 = vmax.f32 %v2017, 0.0
        %v2088 = vmax.f32 %v2019, 0.0
        %v2089 = vmax.f32 %v2022, 0.0
        %v2090 = vmax.f32 %v2024, 0.0
        %v2091 = vmax.f32 %v2027, 0.0
        %v2092 = vmax.f32 %v2029, 0.0
        %v2093 = vmax.f32 %v2032, 0.0
        %v2094 = vmax.f32 %v2034, 0.0
        %v2095 = vmax.f32 %v2037, 0.0
        %v2096 = vmax.f32 %v2039, 0.0
        %v2097 = vmax.f32 %v2042, 0.0
        %v2098 = vmax.f32 %v2044, 0.0
        %v2099 = vmax.f32 %v2047, 0.0
        %v2100 = vmax.f32 %v2049, 0.0
        %v2101 = vmax.f32 %v2052, 0.0
        %v2102 = vmax.f32 %v2054, 0.0
        %v2103 = vmax.f32 %v2057, 0.0
        %v2104 = vmax.f32 %v2059, 0.0
        %v2105 = vmax.f32 %v2062, 0.0
        %v2106 = vmax.f32 %v2064, 0.0
        %v2107 = vmax.f32 %v2067, 0.0
        %v2108 = vmax.f32 %v2069, 0.0
        %v2109 = vmax.f32 %v2072, 0.0
        %v2110 = vmax.f32 %v2074, 0.0
        %v2111 = vmax.f32 %v2077, 0.0
        %v2112 = vmax.f32 %v2079, 0.0
        %v2113 = vpack.c.bf16 %v2082, %v2081
        %v2114 = vpack.c.bf16 %v2084, %v2083
        %v2115 = vpack.c.bf16 %v2086, %v2085
        %v2116 = vpack.c.bf16 %v2088, %v2087
        %v2117 = vpack.c.bf16 %v2090, %v2089
        %v2118 = vpack.c.bf16 %v2092, %v2091
        %v2119 = vpack.c.bf16 %v2094, %v2093
        %v2120 = vpack.c.bf16 %v2096, %v2095
        %v2121 = vpack.c.bf16 %v2098, %v2097
        %v2122 = vpack.c.bf16 %v2100, %v2099
        %v2123 = vpack.c.bf16 %v2102, %v2101
        %v2124 = vpack.c.bf16 %v2104, %v2103
        %v2125 = vpack.c.bf16 %v2106, %v2105
        %v2126 = vpack.c.bf16 %v2108, %v2107
        %v2127 = vpack.c.bf16 %v2110, %v2109
        %v2128 = vpack.c.bf16 %v2112, %v2111
        %v2129 = vld [vmem:[%s5] sm:$0xf]
        %v2130 = vld [vmem:[%s5 + $0x4] sm:$0xf]
        %v2131 = vld [vmem:[%s5 + $0x8] sm:$0xf]
        %v2132 = vld [vmem:[%s5 + $0xc] sm:$0xf]
        %v2133 = vld [vmem:[%s5 + $0x10] sm:$0xf]
        %v2134 = vld [vmem:[%s5 + $0x14] sm:$0xf]
        %v2135 = vld [vmem:[%s5 + $0x18] sm:$0xf]
        %v2136 = vld [vmem:[%s5 + $0x1c] sm:$0xf]
        %v2137 = vld [vmem:[%s6] sm:$0x1]
        %v2139 = vperm.slane %v2137, 0
        %v2149 = vunpack.c.l.b16 %v2129
        %v2150 = vunpack.c.l.b16 %v2130
        %v2151 = vunpack.c.l.b16 %v2131
        %v2152 = vunpack.c.l.b16 %v2132
        %v2153 = vunpack.c.l.b16 %v2133
        %v2154 = vunpack.c.l.b16 %v2134
        %v2155 = vunpack.c.l.b16 %v2135
        %v2156 = vunpack.c.l.b16 %v2136
        %v2157 = vpack.c.b16 %v2150, %v2149
        %v2158 = vpack.c.b16 %v2152, %v2151
        %v2159 = vpack.c.b16 %v2154, %v2153
        %v2160 = vpack.c.b16 %v2156, %v2155
        %vm2165 = vcmask 523264
        %v2167 = vsel %vm2165, %v2113, 0
        %v2170 = vsel %vm2165, %v2114, 0
        %v2173 = vsel %vm2165, %v2115, 0
        %v2176 = vsel %vm2165, %v2116, 0
        %v2179 = vsel %vm2165, %v2117, 0
        %v2182 = vsel %vm2165, %v2118, 0
        %v2185 = vsel %vm2165, %v2119, 0
        %v2188 = vsel %vm2165, %v2120, 0
        %v2191 = vsel %vm2165, %v2121, 0
        %v2194 = vsel %vm2165, %v2122, 0
        %v2197 = vsel %vm2165, %v2123, 0
        %v2200 = vsel %vm2165, %v2124, 0
        %v2203 = vsel %vm2165, %v2125, 0
        %v2206 = vsel %vm2165, %v2126, 0
        %v2209 = vsel %vm2165, %v2127, 0
        %v2212 = vsel %vm2165, %v2128, 0
        %2214 = vmatpush.bf16.msra.mxu0 0
        %2215 = vmatpush.bf16.msra.mxu0 0
        %2216 = vmatpush.bf16.msra.mxu0 0
        %2217 = vmatpush.bf16.msra.mxu0 0
        %2218 = vmatpush.bf16.msra.mxu0 %v2160
        %2219 = vmatpush.bf16.msra.mxu0 %v2159
        %2220 = vmatpush.bf16.msra.mxu0 %v2158
        %2221 = vmatpush.bf16.msra.mxu0 %v2157
        %2222 = vmatmul.bf16.gmra.mxu0 %v2167
        %v2223 = vpop.f32.mrf.mxu0
        %v2224 = vadd.f32 %v2139, %v2223
        %v2225 = vpop.f32.mrf.mxu0
        %v2226 = vadd.f32 %v2139, %v2225
        %2227 = vmatmul.bf16.gmra.mxu0 %v2170
        %v2228 = vpop.f32.mrf.mxu0
        %v2229 = vadd.f32 %v2139, %v2228
        %v2230 = vpop.f32.mrf.mxu0
        %v2231 = vadd.f32 %v2139, %v2230
        %2232 = vmatmul.bf16.gmra.mxu0 %v2173
        %v2233 = vpop.f32.mrf.mxu0
        %v2234 = vadd.f32 %v2139, %v2233
        %v2235 = vpop.f32.mrf.mxu0
        %v2236 = vadd.f32 %v2139, %v2235
        %2237 = vmatmul.bf16.gmra.mxu0 %v2176
        %v2238 = vpop.f32.mrf.mxu0
        %v2239 = vadd.f32 %v2139, %v2238
        %v2240 = vpop.f32.mrf.mxu0
        %v2241 = vadd.f32 %v2139, %v2240
        %2242 = vmatmul.bf16.gmra.mxu0 %v2179
        %v2243 = vpop.f32.mrf.mxu0
        %v2244 = vadd.f32 %v2139, %v2243
        %v2245 = vpop.f32.mrf.mxu0
        %v2246 = vadd.f32 %v2139, %v2245
        %2247 = vmatmul.bf16.gmra.mxu0 %v2182
        %v2248 = vpop.f32.mrf.mxu0
        %v2249 = vadd.f32 %v2139, %v2248
        %v2250 = vpop.f32.mrf.mxu0
        %v2251 = vadd.f32 %v2139, %v2250
        %2252 = vmatmul.bf16.gmra.mxu0 %v2185
        %v2253 = vpop.f32.mrf.mxu0
        %v2254 = vadd.f32 %v2139, %v2253
        %v2255 = vpop.f32.mrf.mxu0
        %v2256 = vadd.f32 %v2139, %v2255
        %2257 = vmatmul.bf16.gmra.mxu0 %v2188
        %v2258 = vpop.f32.mrf.mxu0
        %v2259 = vadd.f32 %v2139, %v2258
        %v2260 = vpop.f32.mrf.mxu0
        %v2261 = vadd.f32 %v2139, %v2260
        %2262 = vmatmul.bf16.gmra.mxu0 %v2191
        %v2263 = vpop.f32.mrf.mxu0
        %v2264 = vadd.f32 %v2139, %v2263
        %v2265 = vpop.f32.mrf.mxu0
        %v2266 = vadd.f32 %v2139, %v2265
        %2267 = vmatmul.bf16.gmra.mxu0 %v2194
        %v2268 = vpop.f32.mrf.mxu0
        %v2269 = vadd.f32 %v2139, %v2268
        %v2270 = vpop.f32.mrf.mxu0
        %v2271 = vadd.f32 %v2139, %v2270
        %2272 = vmatmul.bf16.gmra.mxu0 %v2197
        %v2273 = vpop.f32.mrf.mxu0
        %v2274 = vadd.f32 %v2139, %v2273
        %v2275 = vpop.f32.mrf.mxu0
        %v2276 = vadd.f32 %v2139, %v2275
        %2277 = vmatmul.bf16.gmra.mxu0 %v2200
        %v2278 = vpop.f32.mrf.mxu0
        %v2279 = vadd.f32 %v2139, %v2278
        %v2280 = vpop.f32.mrf.mxu0
        %v2281 = vadd.f32 %v2139, %v2280
        %2282 = vmatmul.bf16.gmra.mxu0 %v2203
        %v2283 = vpop.f32.mrf.mxu0
        %v2284 = vadd.f32 %v2139, %v2283
        %v2285 = vpop.f32.mrf.mxu0
        %v2286 = vadd.f32 %v2139, %v2285
        %2287 = vmatmul.bf16.gmra.mxu0 %v2206
        %v2288 = vpop.f32.mrf.mxu0
        %v2289 = vadd.f32 %v2139, %v2288
        %v2290 = vpop.f32.mrf.mxu0
        %v2291 = vadd.f32 %v2139, %v2290
        %2292 = vmatmul.bf16.gmra.mxu0 %v2209
        %v2293 = vpop.f32.mrf.mxu0
        %v2294 = vadd.f32 %v2139, %v2293
        %v2295 = vpop.f32.mrf.mxu0
        %v2296 = vadd.f32 %v2139, %v2295
        %2297 = vmatmul.bf16.gmra.mxu0 %v2212
        %v2298 = vpop.f32.mrf.mxu0
        %v2299 = vadd.f32 %v2139, %v2298
        %v2300 = vpop.f32.mrf.mxu0
        %v2301 = vadd.f32 %v2139, %v2300
        %2302 = vdwg.mxu0
        %v2303 = vmax.f32 %v2224, 0.0
        %v2304 = vmax.f32 %v2226, 0.0
        %v2305 = vmax.f32 %v2229, 0.0
        %v2306 = vmax.f32 %v2231, 0.0
        %v2307 = vmax.f32 %v2234, 0.0
        %v2308 = vmax.f32 %v2236, 0.0
        %v2309 = vmax.f32 %v2239, 0.0
        %v2310 = vmax.f32 %v2241, 0.0
        %v2311 = vmax.f32 %v2244, 0.0
        %v2312 = vmax.f32 %v2246, 0.0
        %v2313 = vmax.f32 %v2249, 0.0
        %v2314 = vmax.f32 %v2251, 0.0
        %v2315 = vmax.f32 %v2254, 0.0
        %v2316 = vmax.f32 %v2256, 0.0
        %v2317 = vmax.f32 %v2259, 0.0
        %v2318 = vmax.f32 %v2261, 0.0
        %v2319 = vmax.f32 %v2264, 0.0
        %v2320 = vmax.f32 %v2266, 0.0
        %v2321 = vmax.f32 %v2269, 0.0
        %v2322 = vmax.f32 %v2271, 0.0
        %v2323 = vmax.f32 %v2274, 0.0
        %v2324 = vmax.f32 %v2276, 0.0
        %v2325 = vmax.f32 %v2279, 0.0
        %v2326 = vmax.f32 %v2281, 0.0
        %v2327 = vmax.f32 %v2284, 0.0
        %v2328 = vmax.f32 %v2286, 0.0
        %v2329 = vmax.f32 %v2289, 0.0
        %v2330 = vmax.f32 %v2291, 0.0
        %v2331 = vmax.f32 %v2294, 0.0
        %v2332 = vmax.f32 %v2296, 0.0
        %v2333 = vmax.f32 %v2299, 0.0
        %v2334 = vmax.f32 %v2301, 0.0
        %v2335 = vpack.c.bf16 %v2304, %v2303
        %v2336 = vpack.c.bf16 %v2306, %v2305
        %v2337 = vpack.c.bf16 %v2308, %v2307
        %v2338 = vpack.c.bf16 %v2310, %v2309
        %v2339 = vpack.c.bf16 %v2312, %v2311
        %v2340 = vpack.c.bf16 %v2314, %v2313
        %v2341 = vpack.c.bf16 %v2316, %v2315
        %v2342 = vpack.c.bf16 %v2318, %v2317
        %v2343 = vpack.c.bf16 %v2320, %v2319
        %v2344 = vpack.c.bf16 %v2322, %v2321
        %v2345 = vpack.c.bf16 %v2324, %v2323
        %v2346 = vpack.c.bf16 %v2326, %v2325
        %v2347 = vpack.c.bf16 %v2328, %v2327
        %v2348 = vpack.c.bf16 %v2330, %v2329
        %v2349 = vpack.c.bf16 %v2332, %v2331
        %v2350 = vpack.c.bf16 %v2334, %v2333
        %v2351 = vld [vmem:[%s7] sm:$0xf]
        %v2352 = vld [vmem:[%s7 + $0x4] sm:$0xf]
        %v2353 = vld [vmem:[%s7 + $0x8] sm:$0xf]
        %v2354 = vld [vmem:[%s7 + $0xc] sm:$0xf]
        %v2355 = vld [vmem:[%s8] sm:$0x1]
        %v2357 = vperm.slane %v2355, 0
        %v2363 = vunpack.c.l.b16 %v2351
        %v2364 = vunpack.c.l.b16 %v2352
        %v2365 = vunpack.c.l.b16 %v2353
        %v2366 = vunpack.c.l.b16 %v2354
        %v2367 = vpack.c.b16 %v2364, %v2363
        %v2368 = vpack.c.b16 %v2366, %v2365
        %vm2371 = vcmask 261120
        %v2373 = vsel %vm2371, %v2335, 0
        %v2376 = vsel %vm2371, %v2336, 0
        %v2379 = vsel %vm2371, %v2337, 0
        %v2382 = vsel %vm2371, %v2338, 0
        %v2385 = vsel %vm2371, %v2339, 0
        %v2388 = vsel %vm2371, %v2340, 0
        %v2391 = vsel %vm2371, %v2341, 0
        %v2394 = vsel %vm2371, %v2342, 0
        %v2397 = vsel %vm2371, %v2343, 0
        %v2400 = vsel %vm2371, %v2344, 0
        %v2403 = vsel %vm2371, %v2345, 0
        %v2406 = vsel %vm2371, %v2346, 0
        %v2409 = vsel %vm2371, %v2347, 0
        %v2412 = vsel %vm2371, %v2348, 0
        %v2415 = vsel %vm2371, %v2349, 0
        %v2418 = vsel %vm2371, %v2350, 0
        %2420 = vmatpush.bf16.msra.mxu0 0
        %2421 = vmatpush.bf16.msra.mxu0 0
        %2422 = vmatpush.bf16.msra.mxu0 0
        %2423 = vmatpush.bf16.msra.mxu0 0
        %2424 = vmatpush.bf16.msra.mxu0 0
        %2425 = vmatpush.bf16.msra.mxu0 0
        %2426 = vmatpush.bf16.msra.mxu0 %v2368
        %2427 = vmatpush.bf16.msra.mxu0 %v2367
        %2428 = vmatmul.bf16.gmra.mxu0 %v2373
        %v2429 = vpop.f32.mrf.mxu0
        %v2430 = vadd.f32 %v2357, %v2429
        %v2431 = vpop.f32.mrf.mxu0
        %v2432 = vadd.f32 %v2357, %v2431
        %2433 = vmatmul.bf16.gmra.mxu0 %v2376
        %v2434 = vpop.f32.mrf.mxu0
        %v2435 = vadd.f32 %v2357, %v2434
        %v2436 = vpop.f32.mrf.mxu0
        %v2437 = vadd.f32 %v2357, %v2436
        %2438 = vmatmul.bf16.gmra.mxu0 %v2379
        %v2439 = vpop.f32.mrf.mxu0
        %v2440 = vadd.f32 %v2357, %v2439
        %v2441 = vpop.f32.mrf.mxu0
        %v2442 = vadd.f32 %v2357, %v2441
        %2443 = vmatmul.bf16.gmra.mxu0 %v2382
        %v2444 = vpop.f32.mrf.mxu0
        %v2445 = vadd.f32 %v2357, %v2444
        %v2446 = vpop.f32.mrf.mxu0
        %v2447 = vadd.f32 %v2357, %v2446
        %2448 = vmatmul.bf16.gmra.mxu0 %v2385
        %v2449 = vpop.f32.mrf.mxu0
        %v2450 = vadd.f32 %v2357, %v2449
        %v2451 = vpop.f32.mrf.mxu0
        %v2452 = vadd.f32 %v2357, %v2451
        %2453 = vmatmul.bf16.gmra.mxu0 %v2388
        %v2454 = vpop.f32.mrf.mxu0
        %v2455 = vadd.f32 %v2357, %v2454
        %v2456 = vpop.f32.mrf.mxu0
        %v2457 = vadd.f32 %v2357, %v2456
        %2458 = vmatmul.bf16.gmra.mxu0 %v2391
        %v2459 = vpop.f32.mrf.mxu0
        %v2460 = vadd.f32 %v2357, %v2459
        %v2461 = vpop.f32.mrf.mxu0
        %v2462 = vadd.f32 %v2357, %v2461
        %2463 = vmatmul.bf16.gmra.mxu0 %v2394
        %v2464 = vpop.f32.mrf.mxu0
        %v2465 = vadd.f32 %v2357, %v2464
        %v2466 = vpop.f32.mrf.mxu0
        %v2467 = vadd.f32 %v2357, %v2466
        %2468 = vmatmul.bf16.gmra.mxu0 %v2397
        %v2469 = vpop.f32.mrf.mxu0
        %v2470 = vadd.f32 %v2357, %v2469
        %v2471 = vpop.f32.mrf.mxu0
        %v2472 = vadd.f32 %v2357, %v2471
        %2473 = vmatmul.bf16.gmra.mxu0 %v2400
        %v2474 = vpop.f32.mrf.mxu0
        %v2475 = vadd.f32 %v2357, %v2474
        %v2476 = vpop.f32.mrf.mxu0
        %v2477 = vadd.f32 %v2357, %v2476
        %2478 = vmatmul.bf16.gmra.mxu0 %v2403
        %v2479 = vpop.f32.mrf.mxu0
        %v2480 = vadd.f32 %v2357, %v2479
        %v2481 = vpop.f32.mrf.mxu0
        %v2482 = vadd.f32 %v2357, %v2481
        %2483 = vmatmul.bf16.gmra.mxu0 %v2406
        %v2484 = vpop.f32.mrf.mxu0
        %v2485 = vadd.f32 %v2357, %v2484
        %v2486 = vpop.f32.mrf.mxu0
        %v2487 = vadd.f32 %v2357, %v2486
        %2488 = vmatmul.bf16.gmra.mxu0 %v2409
        %v2489 = vpop.f32.mrf.mxu0
        %v2490 = vadd.f32 %v2357, %v2489
        %v2491 = vpop.f32.mrf.mxu0
        %v2492 = vadd.f32 %v2357, %v2491
        %2493 = vmatmul.bf16.gmra.mxu0 %v2412
        %v2494 = vpop.f32.mrf.mxu0
        %v2495 = vadd.f32 %v2357, %v2494
        %v2496 = vpop.f32.mrf.mxu0
        %v2497 = vadd.f32 %v2357, %v2496
        %2498 = vmatmul.bf16.gmra.mxu0 %v2415
        %v2499 = vpop.f32.mrf.mxu0
        %v2500 = vadd.f32 %v2357, %v2499
        %v2501 = vpop.f32.mrf.mxu0
        %v2502 = vadd.f32 %v2357, %v2501
        %2503 = vmatmul.bf16.gmra.mxu0 %v2418
        %v2504 = vpop.f32.mrf.mxu0
        %v2505 = vadd.f32 %v2357, %v2504
        %v2506 = vpop.f32.mrf.mxu0
        %v2507 = vadd.f32 %v2357, %v2506
        %2508 = vdwg.mxu0
        %v2509 = vmax.f32 %v2430, 0.0
        %v2510 = vmax.f32 %v2432, 0.0
        %v2511 = vmax.f32 %v2435, 0.0
        %v2512 = vmax.f32 %v2437, 0.0
        %v2513 = vmax.f32 %v2440, 0.0
        %v2514 = vmax.f32 %v2442, 0.0
        %v2515 = vmax.f32 %v2445, 0.0
        %v2516 = vmax.f32 %v2447, 0.0
        %v2517 = vmax.f32 %v2450, 0.0
        %v2518 = vmax.f32 %v2452, 0.0
        %v2519 = vmax.f32 %v2455, 0.0
        %v2520 = vmax.f32 %v2457, 0.0
        %v2521 = vmax.f32 %v2460, 0.0
        %v2522 = vmax.f32 %v2462, 0.0
        %v2523 = vmax.f32 %v2465, 0.0
        %v2524 = vmax.f32 %v2467, 0.0
        %v2525 = vmax.f32 %v2470, 0.0
        %v2526 = vmax.f32 %v2472, 0.0
        %v2527 = vmax.f32 %v2475, 0.0
        %v2528 = vmax.f32 %v2477, 0.0
        %v2529 = vmax.f32 %v2480, 0.0
        %v2530 = vmax.f32 %v2482, 0.0
        %v2531 = vmax.f32 %v2485, 0.0
        %v2532 = vmax.f32 %v2487, 0.0
        %v2533 = vmax.f32 %v2490, 0.0
        %v2534 = vmax.f32 %v2492, 0.0
        %v2535 = vmax.f32 %v2495, 0.0
        %v2536 = vmax.f32 %v2497, 0.0
        %v2537 = vmax.f32 %v2500, 0.0
        %v2538 = vmax.f32 %v2502, 0.0
        %v2539 = vmax.f32 %v2505, 0.0
        %v2540 = vmax.f32 %v2507, 0.0
        %v2541 = vpack.c.bf16 %v2510, %v2509
        %v2542 = vpack.c.bf16 %v2512, %v2511
        %v2543 = vpack.c.bf16 %v2514, %v2513
        %v2544 = vpack.c.bf16 %v2516, %v2515
        %v2545 = vpack.c.bf16 %v2518, %v2517
        %v2546 = vpack.c.bf16 %v2520, %v2519
        %v2547 = vpack.c.bf16 %v2522, %v2521
        %v2548 = vpack.c.bf16 %v2524, %v2523
        %v2549 = vpack.c.bf16 %v2526, %v2525
        %v2550 = vpack.c.bf16 %v2528, %v2527
        %v2551 = vpack.c.bf16 %v2530, %v2529
        %v2552 = vpack.c.bf16 %v2532, %v2531
        %v2553 = vpack.c.bf16 %v2534, %v2533
        %v2554 = vpack.c.bf16 %v2536, %v2535
        %v2555 = vpack.c.bf16 %v2538, %v2537
        %v2556 = vpack.c.bf16 %v2540, %v2539
        %v2557 = vld [vmem:[%s9] sm:$0xf]
        %v2558 = vld [vmem:[%s9 + $0x4] sm:$0xf]
        %v2559 = vld [vmem:[%s9 + $0x8] sm:$0xf]
        %v2560 = vld [vmem:[%s9 + $0xc] sm:$0xf]
        %v2561 = vld [vmem:[%s9 + $0x10] sm:$0xf]
        %v2562 = vld [vmem:[%s9 + $0x14] sm:$0xf]
        %v2563 = vld [vmem:[%s9 + $0x18] sm:$0xf]
        %v2564 = vld [vmem:[%s9 + $0x1c] sm:$0xf]
        %v2565 = vld [vmem:[%s10] sm:$0x1]
        %v2567 = vperm.slane %v2565, 0
        %v2577 = vunpack.c.l.b16 %v2557
        %v2578 = vunpack.c.l.b16 %v2558
        %v2579 = vunpack.c.l.b16 %v2559
        %v2580 = vunpack.c.l.b16 %v2560
        %v2581 = vunpack.c.l.b16 %v2561
        %v2582 = vunpack.c.l.b16 %v2562
        %v2583 = vunpack.c.l.b16 %v2563
        %v2584 = vunpack.c.l.b16 %v2564
        %v2585 = vpack.c.b16 %v2578, %v2577
        %v2586 = vpack.c.b16 %v2580, %v2579
        %v2587 = vpack.c.b16 %v2582, %v2581
        %v2588 = vpack.c.b16 %v2584, %v2583
        %v2594 = vsel %vm2165, %v2541, 0
        %v2597 = vsel %vm2165, %v2542, 0
        %v2600 = vsel %vm2165, %v2543, 0
        %v2603 = vsel %vm2165, %v2544, 0
        %v2606 = vsel %vm2165, %v2545, 0
        %v2609 = vsel %vm2165, %v2546, 0
        %v2612 = vsel %vm2165, %v2547, 0
        %v2615 = vsel %vm2165, %v2548, 0
        %v2618 = vsel %vm2165, %v2549, 0
        %v2621 = vsel %vm2165, %v2550, 0
        %v2624 = vsel %vm2165, %v2551, 0
        %v2627 = vsel %vm2165, %v2552, 0
        %v2630 = vsel %vm2165, %v2553, 0
        %v2633 = vsel %vm2165, %v2554, 0
        %v2636 = vsel %vm2165, %v2555, 0
        %v2639 = vsel %vm2165, %v2556, 0
        %2641 = vmatpush.bf16.msra.mxu0 0
        %2642 = vmatpush.bf16.msra.mxu0 0
        %2643 = vmatpush.bf16.msra.mxu0 0
        %2644 = vmatpush.bf16.msra.mxu0 0
        %2645 = vmatpush.bf16.msra.mxu0 %v2588
        %2646 = vmatpush.bf16.msra.mxu0 %v2587
        %2647 = vmatpush.bf16.msra.mxu0 %v2586
        %2648 = vmatpush.bf16.msra.mxu0 %v2585
        %2649 = vmatmul.bf16.gmra.mxu0 %v2594
        %v2650 = vpop.f32.mrf.mxu0
        %v2651 = vadd.f32 %v2567, %v2650
        %v2652 = vpop.f32.mrf.mxu0
        %v2653 = vadd.f32 %v2567, %v2652
        %2654 = vmatmul.bf16.gmra.mxu0 %v2597
        %v2655 = vpop.f32.mrf.mxu0
        %v2656 = vadd.f32 %v2567, %v2655
        %v2657 = vpop.f32.mrf.mxu0
        %v2658 = vadd.f32 %v2567, %v2657
        %2659 = vmatmul.bf16.gmra.mxu0 %v2600
        %v2660 = vpop.f32.mrf.mxu0
        %v2661 = vadd.f32 %v2567, %v2660
        %v2662 = vpop.f32.mrf.mxu0
        %v2663 = vadd.f32 %v2567, %v2662
        %2664 = vmatmul.bf16.gmra.mxu0 %v2603
        %v2665 = vpop.f32.mrf.mxu0
        %v2666 = vadd.f32 %v2567, %v2665
        %v2667 = vpop.f32.mrf.mxu0
        %v2668 = vadd.f32 %v2567, %v2667
        %2669 = vmatmul.bf16.gmra.mxu0 %v2606
        %v2670 = vpop.f32.mrf.mxu0
        %v2671 = vadd.f32 %v2567, %v2670
        %v2672 = vpop.f32.mrf.mxu0
        %v2673 = vadd.f32 %v2567, %v2672
        %2674 = vmatmul.bf16.gmra.mxu0 %v2609
        %v2675 = vpop.f32.mrf.mxu0
        %v2676 = vadd.f32 %v2567, %v2675
        %v2677 = vpop.f32.mrf.mxu0
        %v2678 = vadd.f32 %v2567, %v2677
        %2679 = vmatmul.bf16.gmra.mxu0 %v2612
        %v2680 = vpop.f32.mrf.mxu0
        %v2681 = vadd.f32 %v2567, %v2680
        %v2682 = vpop.f32.mrf.mxu0
        %v2683 = vadd.f32 %v2567, %v2682
        %2684 = vmatmul.bf16.gmra.mxu0 %v2615
        %v2685 = vpop.f32.mrf.mxu0
        %v2686 = vadd.f32 %v2567, %v2685
        %v2687 = vpop.f32.mrf.mxu0
        %v2688 = vadd.f32 %v2567, %v2687
        %2689 = vmatmul.bf16.gmra.mxu0 %v2618
        %v2690 = vpop.f32.mrf.mxu0
        %v2691 = vadd.f32 %v2567, %v2690
        %v2692 = vpop.f32.mrf.mxu0
        %v2693 = vadd.f32 %v2567, %v2692
        %2694 = vmatmul.bf16.gmra.mxu0 %v2621
        %v2695 = vpop.f32.mrf.mxu0
        %v2696 = vadd.f32 %v2567, %v2695
        %v2697 = vpop.f32.mrf.mxu0
        %v2698 = vadd.f32 %v2567, %v2697
        %2699 = vmatmul.bf16.gmra.mxu0 %v2624
        %v2700 = vpop.f32.mrf.mxu0
        %v2701 = vadd.f32 %v2567, %v2700
        %v2702 = vpop.f32.mrf.mxu0
        %v2703 = vadd.f32 %v2567, %v2702
        %2704 = vmatmul.bf16.gmra.mxu0 %v2627
        %v2705 = vpop.f32.mrf.mxu0
        %v2706 = vadd.f32 %v2567, %v2705
        %v2707 = vpop.f32.mrf.mxu0
        %v2708 = vadd.f32 %v2567, %v2707
        %2709 = vmatmul.bf16.gmra.mxu0 %v2630
        %v2710 = vpop.f32.mrf.mxu0
        %v2711 = vadd.f32 %v2567, %v2710
        %v2712 = vpop.f32.mrf.mxu0
        %v2713 = vadd.f32 %v2567, %v2712
        %2714 = vmatmul.bf16.gmra.mxu0 %v2633
        %v2715 = vpop.f32.mrf.mxu0
        %v2716 = vadd.f32 %v2567, %v2715
        %v2717 = vpop.f32.mrf.mxu0
        %v2718 = vadd.f32 %v2567, %v2717
        %2719 = vmatmul.bf16.gmra.mxu0 %v2636
        %v2720 = vpop.f32.mrf.mxu0
        %v2721 = vadd.f32 %v2567, %v2720
        %v2722 = vpop.f32.mrf.mxu0
        %v2723 = vadd.f32 %v2567, %v2722
        %2724 = vmatmul.bf16.gmra.mxu0 %v2639
        %v2725 = vpop.f32.mrf.mxu0
        %v2726 = vadd.f32 %v2567, %v2725
        %v2727 = vpop.f32.mrf.mxu0
        %v2728 = vadd.f32 %v2567, %v2727
        %2729 = vdwg.mxu0
        %v2730 = vmax.f32 %v2651, 0.0
        %v2731 = vmax.f32 %v2653, 0.0
        %v2732 = vmax.f32 %v2656, 0.0
        %v2733 = vmax.f32 %v2658, 0.0
        %v2734 = vmax.f32 %v2661, 0.0
        %v2735 = vmax.f32 %v2663, 0.0
        %v2736 = vmax.f32 %v2666, 0.0
        %v2737 = vmax.f32 %v2668, 0.0
        %v2738 = vmax.f32 %v2671, 0.0
        %v2739 = vmax.f32 %v2673, 0.0
        %v2740 = vmax.f32 %v2676, 0.0
        %v2741 = vmax.f32 %v2678, 0.0
        %v2742 = vmax.f32 %v2681, 0.0
        %v2743 = vmax.f32 %v2683, 0.0
        %v2744 = vmax.f32 %v2686, 0.0
        %v2745 = vmax.f32 %v2688, 0.0
        %v2746 = vmax.f32 %v2691, 0.0
        %v2747 = vmax.f32 %v2693, 0.0
        %v2748 = vmax.f32 %v2696, 0.0
        %v2749 = vmax.f32 %v2698, 0.0
        %v2750 = vmax.f32 %v2701, 0.0
        %v2751 = vmax.f32 %v2703, 0.0
        %v2752 = vmax.f32 %v2706, 0.0
        %v2753 = vmax.f32 %v2708, 0.0
        %v2754 = vmax.f32 %v2711, 0.0
        %v2755 = vmax.f32 %v2713, 0.0
        %v2756 = vmax.f32 %v2716, 0.0
        %v2757 = vmax.f32 %v2718, 0.0
        %v2758 = vmax.f32 %v2721, 0.0
        %v2759 = vmax.f32 %v2723, 0.0
        %v2760 = vmax.f32 %v2726, 0.0
        %v2761 = vmax.f32 %v2728, 0.0
        %v2762 = vpack.c.bf16 %v2731, %v2730
        %v2763 = vpack.c.bf16 %v2733, %v2732
        %v2764 = vpack.c.bf16 %v2735, %v2734
        %v2765 = vpack.c.bf16 %v2737, %v2736
        %v2766 = vpack.c.bf16 %v2739, %v2738
        %v2767 = vpack.c.bf16 %v2741, %v2740
        %v2768 = vpack.c.bf16 %v2743, %v2742
        %v2769 = vpack.c.bf16 %v2745, %v2744
        %v2770 = vpack.c.bf16 %v2747, %v2746
        %v2771 = vpack.c.bf16 %v2749, %v2748
        %v2772 = vpack.c.bf16 %v2751, %v2750
        %v2773 = vpack.c.bf16 %v2753, %v2752
        %v2774 = vpack.c.bf16 %v2755, %v2754
        %v2775 = vpack.c.bf16 %v2757, %v2756
        %v2776 = vpack.c.bf16 %v2759, %v2758
        %v2777 = vpack.c.bf16 %v2761, %v2760
        %v2778 = vld [vmem:[%s11] sm:$0xff]
        %v2779 = vld [vmem:[%s11 + $0x8] sm:$0xff]
        %v2780 = vld [vmem:[%s11 + $0x10] sm:$0xff]
        %v2781 = vld [vmem:[%s11 + $0x18] sm:$0xf]
        %v2782 = vld [vmem:[%s11 + $0x1c] sm:$0xff]
        %v2783 = vld [vmem:[%s11 + $0x24] sm:$0xff]
        %v2784 = vld [vmem:[%s11 + $0x2c] sm:$0xff]
        %v2785 = vld [vmem:[%s11 + $0x34] sm:$0xf]
        %v2786 = vld [vmem:[%s11 + $0x38] sm:$0xff]
        %v2787 = vld [vmem:[%s11 + $0x40] sm:$0xff]
        %v2788 = vld [vmem:[%s11 + $0x48] sm:$0xff]
        %v2789 = vld [vmem:[%s11 + $0x50] sm:$0xf]
        %v2790 = vld [vmem:[%s11 + $0x54] sm:$0xff]
        %v2791 = vld [vmem:[%s11 + $0x5c] sm:$0xff]
        %v2792 = vld [vmem:[%s11 + $0x64] sm:$0xff]
        %v2793 = vld [vmem:[%s11 + $0x6c] sm:$0xf]
        %v2794 = vld [vmem:[%s11 + $0x70] sm:$0xff]
        %v2795 = vld [vmem:[%s11 + $0x78] sm:$0xff]
        %v2796 = vld [vmem:[%s11 + $0x80] sm:$0xff]
        %v2797 = vld [vmem:[%s11 + $0x88] sm:$0xf]
        %v2798 = vld [vmem:[%s11 + $0x8c] sm:$0xff]
        %v2799 = vld [vmem:[%s11 + $0x94] sm:$0xff]
        %v2800 = vld [vmem:[%s11 + $0x9c] sm:$0xff]
        %v2801 = vld [vmem:[%s11 + $0xa4] sm:$0xf]
        %v2802 = vld [vmem:[%s11 + $0xa8] sm:$0xff]
        %v2803 = vld [vmem:[%s11 + $0xb0] sm:$0xff]
        %v2804 = vld [vmem:[%s11 + $0xb8] sm:$0xff]
        %v2805 = vld [vmem:[%s11 + $0xc0] sm:$0xf]
        %v2806 = vld [vmem:[%s11 + $0xc4] sm:$0xff]
        %v2807 = vld [vmem:[%s11 + $0xcc] sm:$0xff]
        %v2808 = vld [vmem:[%s11 + $0xd4] sm:$0xff]
        %v2809 = vld [vmem:[%s11 + $0xdc] sm:$0xf]
        %v2810 = vld [vmem:[%s11 + $0xe0] sm:$0xff]
        %v2811 = vld [vmem:[%s11 + $0xe8] sm:$0xff]
        %v2812 = vld [vmem:[%s11 + $0xf0] sm:$0xff]
        %v2813 = vld [vmem:[%s11 + $0xf8] sm:$0xf]
        %v2814 = vld [vmem:[%s11 + $0xfc] sm:$0xff]
        %v2815 = vld [vmem:[%s11 + $0x104] sm:$0xff]
        %v2816 = vld [vmem:[%s11 + $0x10c] sm:$0xff]
        %v2817 = vld [vmem:[%s11 + $0x114] sm:$0xf]
        %v2818 = vld [vmem:[%s11 + $0x118] sm:$0xff]
        %v2819 = vld [vmem:[%s11 + $0x120] sm:$0xff]
        %v2820 = vld [vmem:[%s11 + $0x128] sm:$0xff]
        %v2821 = vld [vmem:[%s11 + $0x130] sm:$0xf]
        %v2822 = vld [vmem:[%s11 + $0x134] sm:$0xff]
        %v2823 = vld [vmem:[%s11 + $0x13c] sm:$0xff]
        %v2824 = vld [vmem:[%s11 + $0x144] sm:$0xff]
        %v2825 = vld [vmem:[%s11 + $0x14c] sm:$0xf]
        %v2826 = vld [vmem:[%s11 + $0x150] sm:$0xff]
        %v2827 = vld [vmem:[%s11 + $0x158] sm:$0xff]
        %v2828 = vld [vmem:[%s11 + $0x160] sm:$0xff]
        %v2829 = vld [vmem:[%s11 + $0x168] sm:$0xf]
        %v2830 = vld [vmem:[%s11 + $0x16c] sm:$0xff]
        %v2831 = vld [vmem:[%s11 + $0x174] sm:$0xff]
        %v2832 = vld [vmem:[%s11 + $0x17c] sm:$0xff]
        %v2833 = vld [vmem:[%s11 + $0x184] sm:$0xf]
        %v2834 = vld [vmem:[%s11 + $0x188] sm:$0xff]
        %v2835 = vld [vmem:[%s11 + $0x190] sm:$0xff]
        %v2836 = vld [vmem:[%s11 + $0x198] sm:$0xff]
        %v2837 = vld [vmem:[%s11 + $0x1a0] sm:$0xf]
        %v2838 = vld [vmem:[%s11 + $0x1a4] sm:$0xff]
        %v2839 = vld [vmem:[%s11 + $0x1ac] sm:$0xff]
        %v2840 = vld [vmem:[%s11 + $0x1b4] sm:$0xff]
        %v2841 = vld [vmem:[%s11 + $0x1bc] sm:$0xf]
        %v2842 = vld [vmem:[%s12] sm:$0x7f]
        %v2844 = vperm.slane %v2842, 0
        %v2845 = vperm.slane %v2842, 1
        %v2846 = vperm.slane %v2842, 2
        %v2847 = vperm.slane %v2842, 3
        %v2848 = vperm.slane %v2842, 4
        %v2849 = vperm.slane %v2842, 5
        %v2850 = vperm.slane %v2842, 6
        %v2922 = vunpack.c.l.b16 %v2778
        %v2923 = vunpack.c.h.b16 %v2778
        %v2924 = vunpack.c.l.b16 %v2779
        %v2925 = vunpack.c.h.b16 %v2779
        %v2926 = vunpack.c.l.b16 %v2780
        %v2927 = vunpack.c.h.b16 %v2780
        %v2928 = vunpack.c.l.b16 %v2781
        %v2929 = vunpack.c.l.b16 %v2782
        %v2930 = vunpack.c.h.b16 %v2782
        %v2931 = vunpack.c.l.b16 %v2783
        %v2932 = vunpack.c.h.b16 %v2783
        %v2933 = vunpack.c.l.b16 %v2784
        %v2934 = vunpack.c.h.b16 %v2784
        %v2935 = vunpack.c.l.b16 %v2785
        %v2936 = vunpack.c.l.b16 %v2786
        %v2937 = vunpack.c.h.b16 %v2786
        %v2938 = vunpack.c.l.b16 %v2787
        %v2939 = vunpack.c.h.b16 %v2787
        %v2940 = vunpack.c.l.b16 %v2788
        %v2941 = vunpack.c.h.b16 %v2788
        %v2942 = vunpack.c.l.b16 %v2789
        %v2943 = vunpack.c.l.b16 %v2790
        %v2944 = vunpack.c.h.b16 %v2790
        %v2945 = vunpack.c.l.b16 %v2791
        %v2946 = vunpack.c.h.b16 %v2791
        %v2947 = vunpack.c.l.b16 %v2792
        %v2948 = vunpack.c.h.b16 %v2792
        %v2949 = vunpack.c.l.b16 %v2793
        %v2950 = vunpack.c.l.b16 %v2794
        %v2951 = vunpack.c.h.b16 %v2794
        %v2952 = vunpack.c.l.b16 %v2795
        %v2953 = vunpack.c.h.b16 %v2795
        %v2954 = vunpack.c.l.b16 %v2796
        %v2955 = vunpack.c.h.b16 %v2796
        %v2956 = vunpack.c.l.b16 %v2797
        %v2957 = vunpack.c.l.b16 %v2798
        %v2958 = vunpack.c.h.b16 %v2798
        %v2959 = vunpack.c.l.b16 %v2799
        %v2960 = vunpack.c.h.b16 %v2799
        %v2961 = vunpack.c.l.b16 %v2800
        %v2962 = vunpack.c.h.b16 %v2800
        %v2963 = vunpack.c.l.b16 %v2801
        %v2964 = vunpack.c.l.b16 %v2802
        %v2965 = vunpack.c.h.b16 %v2802
        %v2966 = vunpack.c.l.b16 %v2803
        %v2967 = vunpack.c.h.b16 %v2803
        %v2968 = vunpack.c.l.b16 %v2804
        %v2969 = vunpack.c.h.b16 %v2804
        %v2970 = vunpack.c.l.b16 %v2805
        %v2971 = vunpack.c.l.b16 %v2806
        %v2972 = vunpack.c.h.b16 %v2806
        %v2973 = vunpack.c.l.b16 %v2807
        %v2974 = vunpack.c.h.b16 %v2807
        %v2975 = vunpack.c.l.b16 %v2808
        %v2976 = vunpack.c.h.b16 %v2808
        %v2977 = vunpack.c.l.b16 %v2809
        %v2978 = vunpack.c.l.b16 %v2810
        %v2979 = vunpack.c.h.b16 %v2810
        %v2980 = vunpack.c.l.b16 %v2811
        %v2981 = vunpack.c.h.b16 %v2811
        %v2982 = vunpack.c.l.b16 %v2812
        %v2983 = vunpack.c.h.b16 %v2812
        %v2984 = vunpack.c.l.b16 %v2813
        %v2985 = vunpack.c.l.b16 %v2814
        %v2986 = vunpack.c.h.b16 %v2814
        %v2987 = vunpack.c.l.b16 %v2815
        %v2988 = vunpack.c.h.b16 %v2815
        %v2989 = vunpack.c.l.b16 %v2816
        %v2990 = vunpack.c.h.b16 %v2816
        %v2991 = vunpack.c.l.b16 %v2817
        %v2992 = vunpack.c.l.b16 %v2818
        %v2993 = vunpack.c.h.b16 %v2818
        %v2994 = vunpack.c.l.b16 %v2819
        %v2995 = vunpack.c.h.b16 %v2819
        %v2996 = vunpack.c.l.b16 %v2820
        %v2997 = vunpack.c.h.b16 %v2820
        %v2998 = vunpack.c.l.b16 %v2821
        %v2999 = vunpack.c.l.b16 %v2822
        %v3000 = vunpack.c.h.b16 %v2822
        %v3001 = vunpack.c.l.b16 %v2823
        %v3002 = vunpack.c.h.b16 %v2823
        %v3003 = vunpack.c.l.b16 %v2824
        %v3004 = vunpack.c.h.b16 %v2824
        %v3005 = vunpack.c.l.b16 %v2825
        %v3006 = vunpack.c.l.b16 %v2826
        %v3007 = vunpack.c.h.b16 %v2826
        %v3008 = vunpack.c.l.b16 %v2827
        %v3009 = vunpack.c.h.b16 %v2827
        %v3010 = vunpack.c.l.b16 %v2828
        %v3011 = vunpack.c.h.b16 %v2828
        %v3012 = vunpack.c.l.b16 %v2829
        %v3013 = vunpack.c.l.b16 %v2830
        %v3014 = vunpack.c.h.b16 %v2830
        %v3015 = vunpack.c.l.b16 %v2831
        %v3016 = vunpack.c.h.b16 %v2831
        %v3017 = vunpack.c.l.b16 %v2832
        %v3018 = vunpack.c.h.b16 %v2832
        %v3019 = vunpack.c.l.b16 %v2833
        %v3020 = vunpack.c.l.b16 %v2834
        %v3021 = vunpack.c.h.b16 %v2834
        %v3022 = vunpack.c.l.b16 %v2835
        %v3023 = vunpack.c.h.b16 %v2835
        %v3024 = vunpack.c.l.b16 %v2836
        %v3025 = vunpack.c.h.b16 %v2836
        %v3026 = vunpack.c.l.b16 %v2837
        %v3027 = vunpack.c.l.b16 %v2838
        %v3028 = vunpack.c.h.b16 %v2838
        %v3029 = vunpack.c.l.b16 %v2839
        %v3030 = vunpack.c.h.b16 %v2839
        %v3031 = vunpack.c.l.b16 %v2840
        %v3032 = vunpack.c.h.b16 %v2840
        %v3033 = vunpack.c.l.b16 %v2841
        %v3034 = vpack.c.b16 %v2929, %v2922
        %v3035 = vpack.c.b16 %v2930, %v2923
        %v3036 = vpack.c.b16 %v2931, %v2924
        %v3037 = vpack.c.b16 %v2932, %v2925
        %v3038 = vpack.c.b16 %v2933, %v2926
        %v3039 = vpack.c.b16 %v2934, %v2927
        %v3040 = vpack.c.b16 %v2935, %v2928
        %v3041 = vpack.c.b16 %v2943, %v2936
        %v3042 = vpack.c.b16 %v2944, %v2937
        %v3043 = vpack.c.b16 %v2945, %v2938
        %v3044 = vpack.c.b16 %v2946, %v2939
        %v3045 = vpack.c.b16 %v2947, %v2940
        %v3046 = vpack.c.b16 %v2948, %v2941
        %v3047 = vpack.c.b16 %v2949, %v2942
        %v3048 = vpack.c.b16 %v2957, %v2950
        %v3049 = vpack.c.b16 %v2958, %v2951
        %v3050 = vpack.c.b16 %v2959, %v2952
        %v3051 = vpack.c.b16 %v2960, %v2953
        %v3052 = vpack.c.b16 %v2961, %v2954
        %v3053 = vpack.c.b16 %v2962, %v2955
        %v3054 = vpack.c.b16 %v2963, %v2956
        %v3055 = vpack.c.b16 %v2971, %v2964
        %v3056 = vpack.c.b16 %v2972, %v2965
        %v3057 = vpack.c.b16 %v2973, %v2966
        %v3058 = vpack.c.b16 %v2974, %v2967
        %v3059 = vpack.c.b16 %v2975, %v2968
        %v3060 = vpack.c.b16 %v2976, %v2969
        %v3061 = vpack.c.b16 %v2977, %v2970
        %v3062 = vpack.c.b16 %v2985, %v2978
        %v3063 = vpack.c.b16 %v2986, %v2979
        %v3064 = vpack.c.b16 %v2987, %v2980
        %v3065 = vpack.c.b16 %v2988, %v2981
        %v3066 = vpack.c.b16 %v2989, %v2982
        %v3067 = vpack.c.b16 %v2990, %v2983
        %v3068 = vpack.c.b16 %v2991, %v2984
        %v3069 = vpack.c.b16 %v2999, %v2992
        %v3070 = vpack.c.b16 %v3000, %v2993
        %v3071 = vpack.c.b16 %v3001, %v2994
        %v3072 = vpack.c.b16 %v3002, %v2995
        %v3073 = vpack.c.b16 %v3003, %v2996
        %v3074 = vpack.c.b16 %v3004, %v2997
        %v3075 = vpack.c.b16 %v3005, %v2998
        %v3076 = vpack.c.b16 %v3013, %v3006
        %v3077 = vpack.c.b16 %v3014, %v3007
        %v3078 = vpack.c.b16 %v3015, %v3008
        %v3079 = vpack.c.b16 %v3016, %v3009
        %v3080 = vpack.c.b16 %v3017, %v3010
        %v3081 = vpack.c.b16 %v3018, %v3011
        %v3082 = vpack.c.b16 %v3019, %v3012
        %v3083 = vpack.c.b16 %v3027, %v3020
        %v3084 = vpack.c.b16 %v3028, %v3021
        %v3085 = vpack.c.b16 %v3029, %v3022
        %v3086 = vpack.c.b16 %v3030, %v3023
        %v3087 = vpack.c.b16 %v3031, %v3024
        %v3088 = vpack.c.b16 %v3032, %v3025
        %v3089 = vpack.c.b16 %v3033, %v3026
        %3146 = vmatpush.bf16.msra.mxu0 %v3083
        %3147 = vmatpush.bf16.msra.mxu0 %v3076
        %3148 = vmatpush.bf16.msra.mxu0 %v3069
        %3149 = vmatpush.bf16.msra.mxu0 %v3062
        %3150 = vmatpush.bf16.msra.mxu0 %v3055
        %3151 = vmatpush.bf16.msra.mxu0 %v3048
        %3152 = vmatpush.bf16.msra.mxu0 %v3041
        %3153 = vmatpush.bf16.msra.mxu0 %v3034
        %3154 = vmatmul.bf16.gmra.mxu0 %v2762
        %v3155 = vpop.f32.mrf.mxu0
        %v3156 = vadd.f32 %v2844, %v3155
        %v3157 = vpop.f32.mrf.mxu0
        %v3158 = vadd.f32 %v2844, %v3157
        %3159 = vmatmul.bf16.gmra.mxu0 %v2763
        %v3160 = vpop.f32.mrf.mxu0
        %v3161 = vadd.f32 %v2844, %v3160
        %v3162 = vpop.f32.mrf.mxu0
        %v3163 = vadd.f32 %v2844, %v3162
        %3164 = vmatmul.bf16.gmra.mxu0 %v2764
        %v3165 = vpop.f32.mrf.mxu0
        %v3166 = vadd.f32 %v2844, %v3165
        %v3167 = vpop.f32.mrf.mxu0
        %v3168 = vadd.f32 %v2844, %v3167
        %3169 = vmatmul.bf16.gmra.mxu0 %v2765
        %v3170 = vpop.f32.mrf.mxu0
        %v3171 = vadd.f32 %v2844, %v3170
        %v3172 = vpop.f32.mrf.mxu0
        %v3173 = vadd.f32 %v2844, %v3172
        %3174 = vmatmul.bf16.gmra.mxu0 %v2766
        %v3175 = vpop.f32.mrf.mxu0
        %v3176 = vadd.f32 %v2844, %v3175
        %v3177 = vpop.f32.mrf.mxu0
        %v3178 = vadd.f32 %v2844, %v3177
        %3179 = vmatmul.bf16.gmra.mxu0 %v2767
        %v3180 = vpop.f32.mrf.mxu0
        %v3181 = vadd.f32 %v2844, %v3180
        %v3182 = vpop.f32.mrf.mxu0
        %v3183 = vadd.f32 %v2844, %v3182
        %3184 = vmatmul.bf16.gmra.mxu0 %v2768
        %v3185 = vpop.f32.mrf.mxu0
        %v3186 = vadd.f32 %v2844, %v3185
        %v3187 = vpop.f32.mrf.mxu0
        %v3188 = vadd.f32 %v2844, %v3187
        %3189 = vmatmul.bf16.gmra.mxu0 %v2769
        %v3190 = vpop.f32.mrf.mxu0
        %v3191 = vadd.f32 %v2844, %v3190
        %v3192 = vpop.f32.mrf.mxu0
        %v3193 = vadd.f32 %v2844, %v3192
        %3194 = vmatmul.bf16.gmra.mxu0 %v2770
        %v3195 = vpop.f32.mrf.mxu0
        %v3196 = vadd.f32 %v2844, %v3195
        %v3197 = vpop.f32.mrf.mxu0
        %v3198 = vadd.f32 %v2844, %v3197
        %3199 = vmatmul.bf16.gmra.mxu0 %v2771
        %v3200 = vpop.f32.mrf.mxu0
        %v3201 = vadd.f32 %v2844, %v3200
        %v3202 = vpop.f32.mrf.mxu0
        %v3203 = vadd.f32 %v2844, %v3202
        %3204 = vmatmul.bf16.gmra.mxu0 %v2772
        %v3205 = vpop.f32.mrf.mxu0
        %v3206 = vadd.f32 %v2844, %v3205
        %v3207 = vpop.f32.mrf.mxu0
        %v3208 = vadd.f32 %v2844, %v3207
        %3209 = vmatmul.bf16.gmra.mxu0 %v2773
        %v3210 = vpop.f32.mrf.mxu0
        %v3211 = vadd.f32 %v2844, %v3210
        %v3212 = vpop.f32.mrf.mxu0
        %v3213 = vadd.f32 %v2844, %v3212
        %3214 = vmatmul.bf16.gmra.mxu0 %v2774
        %v3215 = vpop.f32.mrf.mxu0
        %v3216 = vadd.f32 %v2844, %v3215
        %v3217 = vpop.f32.mrf.mxu0
        %v3218 = vadd.f32 %v2844, %v3217
        %3219 = vmatmul.bf16.gmra.mxu0 %v2775
        %v3220 = vpop.f32.mrf.mxu0
        %v3221 = vadd.f32 %v2844, %v3220
        %v3222 = vpop.f32.mrf.mxu0
        %v3223 = vadd.f32 %v2844, %v3222
        %3224 = vmatmul.bf16.gmra.mxu0 %v2776
        %v3225 = vpop.f32.mrf.mxu0
        %v3226 = vadd.f32 %v2844, %v3225
        %v3227 = vpop.f32.mrf.mxu0
        %v3228 = vadd.f32 %v2844, %v3227
        %3229 = vmatmul.bf16.gmra.mxu0 %v2777
        %v3230 = vpop.f32.mrf.mxu0
        %v3231 = vadd.f32 %v2844, %v3230
        %v3232 = vpop.f32.mrf.mxu0
        %v3233 = vadd.f32 %v2844, %v3232
        %3234 = vdwg.mxu0
        %3235 = vmatpush.bf16.msra.mxu0 %v3084
        %3236 = vmatpush.bf16.msra.mxu0 %v3077
        %3237 = vmatpush.bf16.msra.mxu0 %v3070
        %3238 = vmatpush.bf16.msra.mxu0 %v3063
        %3239 = vmatpush.bf16.msra.mxu0 %v3056
        %3240 = vmatpush.bf16.msra.mxu0 %v3049
        %3241 = vmatpush.bf16.msra.mxu0 %v3042
        %3242 = vmatpush.bf16.msra.mxu0 %v3035
        %3243 = vmatmul.bf16.gmra.mxu0 %v2762
        %v3244 = vpop.f32.mrf.mxu0
        %v3245 = vadd.f32 %v2845, %v3244
        %v3246 = vpop.f32.mrf.mxu0
        %v3247 = vadd.f32 %v2845, %v3246
        %3248 = vmatmul.bf16.gmra.mxu0 %v2763
        %v3249 = vpop.f32.mrf.mxu0
        %v3250 = vadd.f32 %v2845, %v3249
        %v3251 = vpop.f32.mrf.mxu0
        %v3252 = vadd.f32 %v2845, %v3251
        %3253 = vmatmul.bf16.gmra.mxu0 %v2764
        %v3254 = vpop.f32.mrf.mxu0
        %v3255 = vadd.f32 %v2845, %v3254
        %v3256 = vpop.f32.mrf.mxu0
        %v3257 = vadd.f32 %v2845, %v3256
        %3258 = vmatmul.bf16.gmra.mxu0 %v2765
        %v3259 = vpop.f32.mrf.mxu0
        %v3260 = vadd.f32 %v2845, %v3259
        %v3261 = vpop.f32.mrf.mxu0
        %v3262 = vadd.f32 %v2845, %v3261
        %3263 = vmatmul.bf16.gmra.mxu0 %v2766
        %v3264 = vpop.f32.mrf.mxu0
        %v3265 = vadd.f32 %v2845, %v3264
        %v3266 = vpop.f32.mrf.mxu0
        %v3267 = vadd.f32 %v2845, %v3266
        %3268 = vmatmul.bf16.gmra.mxu0 %v2767
        %v3269 = vpop.f32.mrf.mxu0
        %v3270 = vadd.f32 %v2845, %v3269
        %v3271 = vpop.f32.mrf.mxu0
        %v3272 = vadd.f32 %v2845, %v3271
        %3273 = vmatmul.bf16.gmra.mxu0 %v2768
        %v3274 = vpop.f32.mrf.mxu0
        %v3275 = vadd.f32 %v2845, %v3274
        %v3276 = vpop.f32.mrf.mxu0
        %v3277 = vadd.f32 %v2845, %v3276
        %3278 = vmatmul.bf16.gmra.mxu0 %v2769
        %v3279 = vpop.f32.mrf.mxu0
        %v3280 = vadd.f32 %v2845, %v3279
        %v3281 = vpop.f32.mrf.mxu0
        %v3282 = vadd.f32 %v2845, %v3281
        %3283 = vmatmul.bf16.gmra.mxu0 %v2770
        %v3284 = vpop.f32.mrf.mxu0
        %v3285 = vadd.f32 %v2845, %v3284
        %v3286 = vpop.f32.mrf.mxu0
        %v3287 = vadd.f32 %v2845, %v3286
        %3288 = vmatmul.bf16.gmra.mxu0 %v2771
        %v3289 = vpop.f32.mrf.mxu0
        %v3290 = vadd.f32 %v2845, %v3289
        %v3291 = vpop.f32.mrf.mxu0
        %v3292 = vadd.f32 %v2845, %v3291
        %3293 = vmatmul.bf16.gmra.mxu0 %v2772
        %v3294 = vpop.f32.mrf.mxu0
        %v3295 = vadd.f32 %v2845, %v3294
        %v3296 = vpop.f32.mrf.mxu0
        %v3297 = vadd.f32 %v2845, %v3296
        %3298 = vmatmul.bf16.gmra.mxu0 %v2773
        %v3299 = vpop.f32.mrf.mxu0
        %v3300 = vadd.f32 %v2845, %v3299
        %v3301 = vpop.f32.mrf.mxu0
        %v3302 = vadd.f32 %v2845, %v3301
        %3303 = vmatmul.bf16.gmra.mxu0 %v2774
        %v3304 = vpop.f32.mrf.mxu0
        %v3305 = vadd.f32 %v2845, %v3304
        %v3306 = vpop.f32.mrf.mxu0
        %v3307 = vadd.f32 %v2845, %v3306
        %3308 = vmatmul.bf16.gmra.mxu0 %v2775
        %v3309 = vpop.f32.mrf.mxu0
        %v3310 = vadd.f32 %v2845, %v3309
        %v3311 = vpop.f32.mrf.mxu0
        %v3312 = vadd.f32 %v2845, %v3311
        %3313 = vmatmul.bf16.gmra.mxu0 %v2776
        %v3314 = vpop.f32.mrf.mxu0
        %v3315 = vadd.f32 %v2845, %v3314
        %v3316 = vpop.f32.mrf.mxu0
        %v3317 = vadd.f32 %v2845, %v3316
        %3318 = vmatmul.bf16.gmra.mxu0 %v2777
        %v3319 = vpop.f32.mrf.mxu0
        %v3320 = vadd.f32 %v2845, %v3319
        %v3321 = vpop.f32.mrf.mxu0
        %v3322 = vadd.f32 %v2845, %v3321
        %3323 = vdwg.mxu0
        %3324 = vmatpush.bf16.msra.mxu0 %v3085
        %3325 = vmatpush.bf16.msra.mxu0 %v3078
        %3326 = vmatpush.bf16.msra.mxu0 %v3071
        %3327 = vmatpush.bf16.msra.mxu0 %v3064
        %3328 = vmatpush.bf16.msra.mxu0 %v3057
        %3329 = vmatpush.bf16.msra.mxu0 %v3050
        %3330 = vmatpush.bf16.msra.mxu0 %v3043
        %3331 = vmatpush.bf16.msra.mxu0 %v3036
        %3332 = vmatmul.bf16.gmra.mxu0 %v2762
        %v3333 = vpop.f32.mrf.mxu0
        %v3334 = vadd.f32 %v2846, %v3333
        %v3335 = vpop.f32.mrf.mxu0
        %v3336 = vadd.f32 %v2846, %v3335
        %3337 = vmatmul.bf16.gmra.mxu0 %v2763
        %v3338 = vpop.f32.mrf.mxu0
        %v3339 = vadd.f32 %v2846, %v3338
        %v3340 = vpop.f32.mrf.mxu0
        %v3341 = vadd.f32 %v2846, %v3340
        %3342 = vmatmul.bf16.gmra.mxu0 %v2764
        %v3343 = vpop.f32.mrf.mxu0
        %v3344 = vadd.f32 %v2846, %v3343
        %v3345 = vpop.f32.mrf.mxu0
        %v3346 = vadd.f32 %v2846, %v3345
        %3347 = vmatmul.bf16.gmra.mxu0 %v2765
        %v3348 = vpop.f32.mrf.mxu0
        %v3349 = vadd.f32 %v2846, %v3348
        %v3350 = vpop.f32.mrf.mxu0
        %v3351 = vadd.f32 %v2846, %v3350
        %3352 = vmatmul.bf16.gmra.mxu0 %v2766
        %v3353 = vpop.f32.mrf.mxu0
        %v3354 = vadd.f32 %v2846, %v3353
        %v3355 = vpop.f32.mrf.mxu0
        %v3356 = vadd.f32 %v2846, %v3355
        %3357 = vmatmul.bf16.gmra.mxu0 %v2767
        %v3358 = vpop.f32.mrf.mxu0
        %v3359 = vadd.f32 %v2846, %v3358
        %v3360 = vpop.f32.mrf.mxu0
        %v3361 = vadd.f32 %v2846, %v3360
        %3362 = vmatmul.bf16.gmra.mxu0 %v2768
        %v3363 = vpop.f32.mrf.mxu0
        %v3364 = vadd.f32 %v2846, %v3363
        %v3365 = vpop.f32.mrf.mxu0
        %v3366 = vadd.f32 %v2846, %v3365
        %3367 = vmatmul.bf16.gmra.mxu0 %v2769
        %v3368 = vpop.f32.mrf.mxu0
        %v3369 = vadd.f32 %v2846, %v3368
        %v3370 = vpop.f32.mrf.mxu0
        %v3371 = vadd.f32 %v2846, %v3370
        %3372 = vmatmul.bf16.gmra.mxu0 %v2770
        %v3373 = vpop.f32.mrf.mxu0
        %v3374 = vadd.f32 %v2846, %v3373
        %v3375 = vpop.f32.mrf.mxu0
        %v3376 = vadd.f32 %v2846, %v3375
        %3377 = vmatmul.bf16.gmra.mxu0 %v2771
        %v3378 = vpop.f32.mrf.mxu0
        %v3379 = vadd.f32 %v2846, %v3378
        %v3380 = vpop.f32.mrf.mxu0
        %v3381 = vadd.f32 %v2846, %v3380
        %3382 = vmatmul.bf16.gmra.mxu0 %v2772
        %v3383 = vpop.f32.mrf.mxu0
        %v3384 = vadd.f32 %v2846, %v3383
        %v3385 = vpop.f32.mrf.mxu0
        %v3386 = vadd.f32 %v2846, %v3385
        %3387 = vmatmul.bf16.gmra.mxu0 %v2773
        %v3388 = vpop.f32.mrf.mxu0
        %v3389 = vadd.f32 %v2846, %v3388
        %v3390 = vpop.f32.mrf.mxu0
        %v3391 = vadd.f32 %v2846, %v3390
        %3392 = vmatmul.bf16.gmra.mxu0 %v2774
        %v3393 = vpop.f32.mrf.mxu0
        %v3394 = vadd.f32 %v2846, %v3393
        %v3395 = vpop.f32.mrf.mxu0
        %v3396 = vadd.f32 %v2846, %v3395
        %3397 = vmatmul.bf16.gmra.mxu0 %v2775
        %v3398 = vpop.f32.mrf.mxu0
        %v3399 = vadd.f32 %v2846, %v3398
        %v3400 = vpop.f32.mrf.mxu0
        %v3401 = vadd.f32 %v2846, %v3400
        %3402 = vmatmul.bf16.gmra.mxu0 %v2776
        %v3403 = vpop.f32.mrf.mxu0
        %v3404 = vadd.f32 %v2846, %v3403
        %v3405 = vpop.f32.mrf.mxu0
        %v3406 = vadd.f32 %v2846, %v3405
        %3407 = vmatmul.bf16.gmra.mxu0 %v2777
        %v3408 = vpop.f32.mrf.mxu0
        %v3409 = vadd.f32 %v2846, %v3408
        %v3410 = vpop.f32.mrf.mxu0
        %v3411 = vadd.f32 %v2846, %v3410
        %3412 = vdwg.mxu0
        %3413 = vmatpush.bf16.msra.mxu0 %v3086
        %3414 = vmatpush.bf16.msra.mxu0 %v3079
        %3415 = vmatpush.bf16.msra.mxu0 %v3072
        %3416 = vmatpush.bf16.msra.mxu0 %v3065
        %3417 = vmatpush.bf16.msra.mxu0 %v3058
        %3418 = vmatpush.bf16.msra.mxu0 %v3051
        %3419 = vmatpush.bf16.msra.mxu0 %v3044
        %3420 = vmatpush.bf16.msra.mxu0 %v3037
        %3421 = vmatmul.bf16.gmra.mxu0 %v2762
        %v3422 = vpop.f32.mrf.mxu0
        %v3423 = vadd.f32 %v2847, %v3422
        %v3424 = vpop.f32.mrf.mxu0
        %v3425 = vadd.f32 %v2847, %v3424
        %3426 = vmatmul.bf16.gmra.mxu0 %v2763
        %v3427 = vpop.f32.mrf.mxu0
        %v3428 = vadd.f32 %v2847, %v3427
        %v3429 = vpop.f32.mrf.mxu0
        %v3430 = vadd.f32 %v2847, %v3429
        %3431 = vmatmul.bf16.gmra.mxu0 %v2764
        %v3432 = vpop.f32.mrf.mxu0
        %v3433 = vadd.f32 %v2847, %v3432
        %v3434 = vpop.f32.mrf.mxu0
        %v3435 = vadd.f32 %v2847, %v3434
        %3436 = vmatmul.bf16.gmra.mxu0 %v2765
        %v3437 = vpop.f32.mrf.mxu0
        %v3438 = vadd.f32 %v2847, %v3437
        %v3439 = vpop.f32.mrf.mxu0
        %v3440 = vadd.f32 %v2847, %v3439
        %3441 = vmatmul.bf16.gmra.mxu0 %v2766
        %v3442 = vpop.f32.mrf.mxu0
        %v3443 = vadd.f32 %v2847, %v3442
        %v3444 = vpop.f32.mrf.mxu0
        %v3445 = vadd.f32 %v2847, %v3444
        %3446 = vmatmul.bf16.gmra.mxu0 %v2767
        %v3447 = vpop.f32.mrf.mxu0
        %v3448 = vadd.f32 %v2847, %v3447
        %v3449 = vpop.f32.mrf.mxu0
        %v3450 = vadd.f32 %v2847, %v3449
        %3451 = vmatmul.bf16.gmra.mxu0 %v2768
        %v3452 = vpop.f32.mrf.mxu0
        %v3453 = vadd.f32 %v2847, %v3452
        %v3454 = vpop.f32.mrf.mxu0
        %v3455 = vadd.f32 %v2847, %v3454
        %3456 = vmatmul.bf16.gmra.mxu0 %v2769
        %v3457 = vpop.f32.mrf.mxu0
        %v3458 = vadd.f32 %v2847, %v3457
        %v3459 = vpop.f32.mrf.mxu0
        %v3460 = vadd.f32 %v2847, %v3459
        %3461 = vmatmul.bf16.gmra.mxu0 %v2770
        %v3462 = vpop.f32.mrf.mxu0
        %v3463 = vadd.f32 %v2847, %v3462
        %v3464 = vpop.f32.mrf.mxu0
        %v3465 = vadd.f32 %v2847, %v3464
        %3466 = vmatmul.bf16.gmra.mxu0 %v2771
        %v3467 = vpop.f32.mrf.mxu0
        %v3468 = vadd.f32 %v2847, %v3467
        %v3469 = vpop.f32.mrf.mxu0
        %v3470 = vadd.f32 %v2847, %v3469
        %3471 = vmatmul.bf16.gmra.mxu0 %v2772
        %v3472 = vpop.f32.mrf.mxu0
        %v3473 = vadd.f32 %v2847, %v3472
        %v3474 = vpop.f32.mrf.mxu0
        %v3475 = vadd.f32 %v2847, %v3474
        %3476 = vmatmul.bf16.gmra.mxu0 %v2773
        %v3477 = vpop.f32.mrf.mxu0
        %v3478 = vadd.f32 %v2847, %v3477
        %v3479 = vpop.f32.mrf.mxu0
        %v3480 = vadd.f32 %v2847, %v3479
        %3481 = vmatmul.bf16.gmra.mxu0 %v2774
        %v3482 = vpop.f32.mrf.mxu0
        %v3483 = vadd.f32 %v2847, %v3482
        %v3484 = vpop.f32.mrf.mxu0
        %v3485 = vadd.f32 %v2847, %v3484
        %3486 = vmatmul.bf16.gmra.mxu0 %v2775
        %v3487 = vpop.f32.mrf.mxu0
        %v3488 = vadd.f32 %v2847, %v3487
        %v3489 = vpop.f32.mrf.mxu0
        %v3490 = vadd.f32 %v2847, %v3489
        %3491 = vmatmul.bf16.gmra.mxu0 %v2776
        %v3492 = vpop.f32.mrf.mxu0
        %v3493 = vadd.f32 %v2847, %v3492
        %v3494 = vpop.f32.mrf.mxu0
        %v3495 = vadd.f32 %v2847, %v3494
        %3496 = vmatmul.bf16.gmra.mxu0 %v2777
        %v3497 = vpop.f32.mrf.mxu0
        %v3498 = vadd.f32 %v2847, %v3497
        %v3499 = vpop.f32.mrf.mxu0
        %v3500 = vadd.f32 %v2847, %v3499
        %3501 = vdwg.mxu0
        %3502 = vmatpush.bf16.msra.mxu0 %v3087
        %3503 = vmatpush.bf16.msra.mxu0 %v3080
        %3504 = vmatpush.bf16.msra.mxu0 %v3073
        %3505 = vmatpush.bf16.msra.mxu0 %v3066
        %3506 = vmatpush.bf16.msra.mxu0 %v3059
        %3507 = vmatpush.bf16.msra.mxu0 %v3052
        %3508 = vmatpush.bf16.msra.mxu0 %v3045
        %3509 = vmatpush.bf16.msra.mxu0 %v3038
        %3510 = vmatmul.bf16.gmra.mxu0 %v2762
        %v3511 = vpop.f32.mrf.mxu0
        %v3512 = vadd.f32 %v2848, %v3511
        %v3513 = vpop.f32.mrf.mxu0
        %v3514 = vadd.f32 %v2848, %v3513
        %3515 = vmatmul.bf16.gmra.mxu0 %v2763
        %v3516 = vpop.f32.mrf.mxu0
        %v3517 = vadd.f32 %v2848, %v3516
        %v3518 = vpop.f32.mrf.mxu0
        %v3519 = vadd.f32 %v2848, %v3518
        %3520 = vmatmul.bf16.gmra.mxu0 %v2764
        %v3521 = vpop.f32.mrf.mxu0
        %v3522 = vadd.f32 %v2848, %v3521
        %v3523 = vpop.f32.mrf.mxu0
        %v3524 = vadd.f32 %v2848, %v3523
        %3525 = vmatmul.bf16.gmra.mxu0 %v2765
        %v3526 = vpop.f32.mrf.mxu0
        %v3527 = vadd.f32 %v2848, %v3526
        %v3528 = vpop.f32.mrf.mxu0
        %v3529 = vadd.f32 %v2848, %v3528
        %3530 = vmatmul.bf16.gmra.mxu0 %v2766
        %v3531 = vpop.f32.mrf.mxu0
        %v3532 = vadd.f32 %v2848, %v3531
        %v3533 = vpop.f32.mrf.mxu0
        %v3534 = vadd.f32 %v2848, %v3533
        %3535 = vmatmul.bf16.gmra.mxu0 %v2767
        %v3536 = vpop.f32.mrf.mxu0
        %v3537 = vadd.f32 %v2848, %v3536
        %v3538 = vpop.f32.mrf.mxu0
        %v3539 = vadd.f32 %v2848, %v3538
        %3540 = vmatmul.bf16.gmra.mxu0 %v2768
        %v3541 = vpop.f32.mrf.mxu0
        %v3542 = vadd.f32 %v2848, %v3541
        %v3543 = vpop.f32.mrf.mxu0
        %v3544 = vadd.f32 %v2848, %v3543
        %3545 = vmatmul.bf16.gmra.mxu0 %v2769
        %v3546 = vpop.f32.mrf.mxu0
        %v3547 = vadd.f32 %v2848, %v3546
        %v3548 = vpop.f32.mrf.mxu0
        %v3549 = vadd.f32 %v2848, %v3548
        %3550 = vmatmul.bf16.gmra.mxu0 %v2770
        %v3551 = vpop.f32.mrf.mxu0
        %v3552 = vadd.f32 %v2848, %v3551
        %v3553 = vpop.f32.mrf.mxu0
        %v3554 = vadd.f32 %v2848, %v3553
        %3555 = vmatmul.bf16.gmra.mxu0 %v2771
        %v3556 = vpop.f32.mrf.mxu0
        %v3557 = vadd.f32 %v2848, %v3556
        %v3558 = vpop.f32.mrf.mxu0
        %v3559 = vadd.f32 %v2848, %v3558
        %3560 = vmatmul.bf16.gmra.mxu0 %v2772
        %v3561 = vpop.f32.mrf.mxu0
        %v3562 = vadd.f32 %v2848, %v3561
        %v3563 = vpop.f32.mrf.mxu0
        %v3564 = vadd.f32 %v2848, %v3563
        %3565 = vmatmul.bf16.gmra.mxu0 %v2773
        %v3566 = vpop.f32.mrf.mxu0
        %v3567 = vadd.f32 %v2848, %v3566
        %v3568 = vpop.f32.mrf.mxu0
        %v3569 = vadd.f32 %v2848, %v3568
        %3570 = vmatmul.bf16.gmra.mxu0 %v2774
        %v3571 = vpop.f32.mrf.mxu0
        %v3572 = vadd.f32 %v2848, %v3571
        %v3573 = vpop.f32.mrf.mxu0
        %v3574 = vadd.f32 %v2848, %v3573
        %3575 = vmatmul.bf16.gmra.mxu0 %v2775
        %v3576 = vpop.f32.mrf.mxu0
        %v3577 = vadd.f32 %v2848, %v3576
        %v3578 = vpop.f32.mrf.mxu0
        %v3579 = vadd.f32 %v2848, %v3578
        %3580 = vmatmul.bf16.gmra.mxu0 %v2776
        %v3581 = vpop.f32.mrf.mxu0
        %v3582 = vadd.f32 %v2848, %v3581
        %v3583 = vpop.f32.mrf.mxu0
        %v3584 = vadd.f32 %v2848, %v3583
        %3585 = vmatmul.bf16.gmra.mxu0 %v2777
        %v3586 = vpop.f32.mrf.mxu0
        %v3587 = vadd.f32 %v2848, %v3586
        %v3588 = vpop.f32.mrf.mxu0
        %v3589 = vadd.f32 %v2848, %v3588
        %3590 = vdwg.mxu0
        %3591 = vmatpush.bf16.msra.mxu0 %v3088
        %3592 = vmatpush.bf16.msra.mxu0 %v3081
        %3593 = vmatpush.bf16.msra.mxu0 %v3074
        %3594 = vmatpush.bf16.msra.mxu0 %v3067
        %3595 = vmatpush.bf16.msra.mxu0 %v3060
        %3596 = vmatpush.bf16.msra.mxu0 %v3053
        %3597 = vmatpush.bf16.msra.mxu0 %v3046
        %3598 = vmatpush.bf16.msra.mxu0 %v3039
        %3599 = vmatmul.bf16.gmra.mxu0 %v2762
        %v3600 = vpop.f32.mrf.mxu0
        %v3601 = vadd.f32 %v2849, %v3600
        %v3602 = vpop.f32.mrf.mxu0
        %v3603 = vadd.f32 %v2849, %v3602
        %3604 = vmatmul.bf16.gmra.mxu0 %v2763
        %v3605 = vpop.f32.mrf.mxu0
        %v3606 = vadd.f32 %v2849, %v3605
        %v3607 = vpop.f32.mrf.mxu0
        %v3608 = vadd.f32 %v2849, %v3607
        %3609 = vmatmul.bf16.gmra.mxu0 %v2764
        %v3610 = vpop.f32.mrf.mxu0
        %v3611 = vadd.f32 %v2849, %v3610
        %v3612 = vpop.f32.mrf.mxu0
        %v3613 = vadd.f32 %v2849, %v3612
        %3614 = vmatmul.bf16.gmra.mxu0 %v2765
        %v3615 = vpop.f32.mrf.mxu0
        %v3616 = vadd.f32 %v2849, %v3615
        %v3617 = vpop.f32.mrf.mxu0
        %v3618 = vadd.f32 %v2849, %v3617
        %3619 = vmatmul.bf16.gmra.mxu0 %v2766
        %v3620 = vpop.f32.mrf.mxu0
        %v3621 = vadd.f32 %v2849, %v3620
        %v3622 = vpop.f32.mrf.mxu0
        %v3623 = vadd.f32 %v2849, %v3622
        %3624 = vmatmul.bf16.gmra.mxu0 %v2767
        %v3625 = vpop.f32.mrf.mxu0
        %v3626 = vadd.f32 %v2849, %v3625
        %v3627 = vpop.f32.mrf.mxu0
        %v3628 = vadd.f32 %v2849, %v3627
        %3629 = vmatmul.bf16.gmra.mxu0 %v2768
        %v3630 = vpop.f32.mrf.mxu0
        %v3631 = vadd.f32 %v2849, %v3630
        %v3632 = vpop.f32.mrf.mxu0
        %v3633 = vadd.f32 %v2849, %v3632
        %3634 = vmatmul.bf16.gmra.mxu0 %v2769
        %v3635 = vpop.f32.mrf.mxu0
        %v3636 = vadd.f32 %v2849, %v3635
        %v3637 = vpop.f32.mrf.mxu0
        %v3638 = vadd.f32 %v2849, %v3637
        %3639 = vmatmul.bf16.gmra.mxu0 %v2770
        %v3640 = vpop.f32.mrf.mxu0
        %v3641 = vadd.f32 %v2849, %v3640
        %v3642 = vpop.f32.mrf.mxu0
        %v3643 = vadd.f32 %v2849, %v3642
        %3644 = vmatmul.bf16.gmra.mxu0 %v2771
        %v3645 = vpop.f32.mrf.mxu0
        %v3646 = vadd.f32 %v2849, %v3645
        %v3647 = vpop.f32.mrf.mxu0
        %v3648 = vadd.f32 %v2849, %v3647
        %3649 = vmatmul.bf16.gmra.mxu0 %v2772
        %v3650 = vpop.f32.mrf.mxu0
        %v3651 = vadd.f32 %v2849, %v3650
        %v3652 = vpop.f32.mrf.mxu0
        %v3653 = vadd.f32 %v2849, %v3652
        %3654 = vmatmul.bf16.gmra.mxu0 %v2773
        %v3655 = vpop.f32.mrf.mxu0
        %v3656 = vadd.f32 %v2849, %v3655
        %v3657 = vpop.f32.mrf.mxu0
        %v3658 = vadd.f32 %v2849, %v3657
        %3659 = vmatmul.bf16.gmra.mxu0 %v2774
        %v3660 = vpop.f32.mrf.mxu0
        %v3661 = vadd.f32 %v2849, %v3660
        %v3662 = vpop.f32.mrf.mxu0
        %v3663 = vadd.f32 %v2849, %v3662
        %3664 = vmatmul.bf16.gmra.mxu0 %v2775
        %v3665 = vpop.f32.mrf.mxu0
        %v3666 = vadd.f32 %v2849, %v3665
        %v3667 = vpop.f32.mrf.mxu0
        %v3668 = vadd.f32 %v2849, %v3667
        %3669 = vmatmul.bf16.gmra.mxu0 %v2776
        %v3670 = vpop.f32.mrf.mxu0
        %v3671 = vadd.f32 %v2849, %v3670
        %v3672 = vpop.f32.mrf.mxu0
        %v3673 = vadd.f32 %v2849, %v3672
        %3674 = vmatmul.bf16.gmra.mxu0 %v2777
        %v3675 = vpop.f32.mrf.mxu0
        %v3676 = vadd.f32 %v2849, %v3675
        %v3677 = vpop.f32.mrf.mxu0
        %v3678 = vadd.f32 %v2849, %v3677
        %3679 = vdwg.mxu0
        %3680 = vmatpush.bf16.msra.mxu0 %v3089
        %3681 = vmatpush.bf16.msra.mxu0 %v3082
        %3682 = vmatpush.bf16.msra.mxu0 %v3075
        %3683 = vmatpush.bf16.msra.mxu0 %v3068
        %3684 = vmatpush.bf16.msra.mxu0 %v3061
        %3685 = vmatpush.bf16.msra.mxu0 %v3054
        %3686 = vmatpush.bf16.msra.mxu0 %v3047
        %3687 = vmatpush.bf16.msra.mxu0 %v3040
        %3688 = vmatmul.bf16.gmra.mxu0 %v2762
        %v3689 = vpop.f32.mrf.mxu0
        %v3690 = vadd.f32 %v2850, %v3689
        %v3691 = vpop.f32.mrf.mxu0
        %v3692 = vadd.f32 %v2850, %v3691
        %3693 = vmatmul.bf16.gmra.mxu0 %v2763
        %v3694 = vpop.f32.mrf.mxu0
        %v3695 = vadd.f32 %v2850, %v3694
        %v3696 = vpop.f32.mrf.mxu0
        %v3697 = vadd.f32 %v2850, %v3696
        %3698 = vmatmul.bf16.gmra.mxu0 %v2764
        %v3699 = vpop.f32.mrf.mxu0
        %v3700 = vadd.f32 %v2850, %v3699
        %v3701 = vpop.f32.mrf.mxu0
        %v3702 = vadd.f32 %v2850, %v3701
        %3703 = vmatmul.bf16.gmra.mxu0 %v2765
        %v3704 = vpop.f32.mrf.mxu0
        %v3705 = vadd.f32 %v2850, %v3704
        %v3706 = vpop.f32.mrf.mxu0
        %v3707 = vadd.f32 %v2850, %v3706
        %3708 = vmatmul.bf16.gmra.mxu0 %v2766
        %v3709 = vpop.f32.mrf.mxu0
        %v3710 = vadd.f32 %v2850, %v3709
        %v3711 = vpop.f32.mrf.mxu0
        %v3712 = vadd.f32 %v2850, %v3711
        %3713 = vmatmul.bf16.gmra.mxu0 %v2767
        %v3714 = vpop.f32.mrf.mxu0
        %v3715 = vadd.f32 %v2850, %v3714
        %v3716 = vpop.f32.mrf.mxu0
        %v3717 = vadd.f32 %v2850, %v3716
        %3718 = vmatmul.bf16.gmra.mxu0 %v2768
        %v3719 = vpop.f32.mrf.mxu0
        %v3720 = vadd.f32 %v2850, %v3719
        %v3721 = vpop.f32.mrf.mxu0
        %v3722 = vadd.f32 %v2850, %v3721
        %3723 = vmatmul.bf16.gmra.mxu0 %v2769
        %v3724 = vpop.f32.mrf.mxu0
        %v3725 = vadd.f32 %v2850, %v3724
        %v3726 = vpop.f32.mrf.mxu0
        %v3727 = vadd.f32 %v2850, %v3726
        %3728 = vmatmul.bf16.gmra.mxu0 %v2770
        %v3729 = vpop.f32.mrf.mxu0
        %v3730 = vadd.f32 %v2850, %v3729
        %v3731 = vpop.f32.mrf.mxu0
        %v3732 = vadd.f32 %v2850, %v3731
        %3733 = vmatmul.bf16.gmra.mxu0 %v2771
        %v3734 = vpop.f32.mrf.mxu0
        %v3735 = vadd.f32 %v2850, %v3734
        %v3736 = vpop.f32.mrf.mxu0
        %v3737 = vadd.f32 %v2850, %v3736
        %3738 = vmatmul.bf16.gmra.mxu0 %v2772
        %v3739 = vpop.f32.mrf.mxu0
        %v3740 = vadd.f32 %v2850, %v3739
        %v3741 = vpop.f32.mrf.mxu0
        %v3742 = vadd.f32 %v2850, %v3741
        %3743 = vmatmul.bf16.gmra.mxu0 %v2773
        %v3744 = vpop.f32.mrf.mxu0
        %v3745 = vadd.f32 %v2850, %v3744
        %v3746 = vpop.f32.mrf.mxu0
        %v3747 = vadd.f32 %v2850, %v3746
        %3748 = vmatmul.bf16.gmra.mxu0 %v2774
        %v3749 = vpop.f32.mrf.mxu0
        %v3750 = vadd.f32 %v2850, %v3749
        %v3751 = vpop.f32.mrf.mxu0
        %v3752 = vadd.f32 %v2850, %v3751
        %3753 = vmatmul.bf16.gmra.mxu0 %v2775
        %v3754 = vpop.f32.mrf.mxu0
        %v3755 = vadd.f32 %v2850, %v3754
        %v3756 = vpop.f32.mrf.mxu0
        %v3757 = vadd.f32 %v2850, %v3756
        %3758 = vmatmul.bf16.gmra.mxu0 %v2776
        %v3759 = vpop.f32.mrf.mxu0
        %v3760 = vadd.f32 %v2850, %v3759
        %v3761 = vpop.f32.mrf.mxu0
        %v3762 = vadd.f32 %v2850, %v3761
        %3763 = vmatmul.bf16.gmra.mxu0 %v2777
        %v3764 = vpop.f32.mrf.mxu0
        %v3765 = vadd.f32 %v2850, %v3764
        %v3766 = vpop.f32.mrf.mxu0
        %v3767 = vadd.f32 %v2850, %v3766
        %3768 = vdwg.mxu0
        %v3769 = vsub.f32 0.0, %v3156
        %v3770 = vsub.f32 0.0, %v3245
        %v3771 = vsub.f32 0.0, %v3334
        %v3772 = vsub.f32 0.0, %v3423
        %v3773 = vsub.f32 0.0, %v3512
        %v3774 = vsub.f32 0.0, %v3601
        %v3775 = vsub.f32 0.0, %v3690
        %v3776 = vsub.f32 0.0, %v3158
        %v3777 = vsub.f32 0.0, %v3247
        %v3778 = vsub.f32 0.0, %v3336
        %v3779 = vsub.f32 0.0, %v3425
        %v3780 = vsub.f32 0.0, %v3514
        %v3781 = vsub.f32 0.0, %v3603
        %v3782 = vsub.f32 0.0, %v3692
        %v3783 = vsub.f32 0.0, %v3161
        %v3784 = vsub.f32 0.0, %v3250
        %v3785 = vsub.f32 0.0, %v3339
        %v3786 = vsub.f32 0.0, %v3428
        %v3787 = vsub.f32 0.0, %v3517
        %v3788 = vsub.f32 0.0, %v3606
        %v3789 = vsub.f32 0.0, %v3695
        %v3790 = vsub.f32 0.0, %v3163
        %v3791 = vsub.f32 0.0, %v3252
        %v3792 = vsub.f32 0.0, %v3341
        %v3793 = vsub.f32 0.0, %v3430
        %v3794 = vsub.f32 0.0, %v3519
        %v3795 = vsub.f32 0.0, %v3608
        %v3796 = vsub.f32 0.0, %v3697
        %v3797 = vsub.f32 0.0, %v3166
        %v3798 = vsub.f32 0.0, %v3255
        %v3799 = vsub.f32 0.0, %v3344
        %v3800 = vsub.f32 0.0, %v3433
        %v3801 = vsub.f32 0.0, %v3522
        %v3802 = vsub.f32 0.0, %v3611
        %v3803 = vsub.f32 0.0, %v3700
        %v3804 = vsub.f32 0.0, %v3168
        %v3805 = vsub.f32 0.0, %v3257
        %v3806 = vsub.f32 0.0, %v3346
        %v3807 = vsub.f32 0.0, %v3435
        %v3808 = vsub.f32 0.0, %v3524
        %v3809 = vsub.f32 0.0, %v3613
        %v3810 = vsub.f32 0.0, %v3702
        %v3811 = vsub.f32 0.0, %v3171
        %v3812 = vsub.f32 0.0, %v3260
        %v3813 = vsub.f32 0.0, %v3349
        %v3814 = vsub.f32 0.0, %v3438
        %v3815 = vsub.f32 0.0, %v3527
        %v3816 = vsub.f32 0.0, %v3616
        %v3817 = vsub.f32 0.0, %v3705
        %v3818 = vsub.f32 0.0, %v3173
        %v3819 = vsub.f32 0.0, %v3262
        %v3820 = vsub.f32 0.0, %v3351
        %v3821 = vsub.f32 0.0, %v3440
        %v3822 = vsub.f32 0.0, %v3529
        %v3823 = vsub.f32 0.0, %v3618
        %v3824 = vsub.f32 0.0, %v3707
        %v3825 = vsub.f32 0.0, %v3176
        %v3826 = vsub.f32 0.0, %v3265
        %v3827 = vsub.f32 0.0, %v3354
        %v3828 = vsub.f32 0.0, %v3443
        %v3829 = vsub.f32 0.0, %v3532
        %v3830 = vsub.f32 0.0, %v3621
        %v3831 = vsub.f32 0.0, %v3710
        %v3832 = vsub.f32 0.0, %v3178
        %v3833 = vsub.f32 0.0, %v3267
        %v3834 = vsub.f32 0.0, %v3356
        %v3835 = vsub.f32 0.0, %v3445
        %v3836 = vsub.f32 0.0, %v3534
        %v3837 = vsub.f32 0.0, %v3623
        %v3838 = vsub.f32 0.0, %v3712
        %v3839 = vsub.f32 0.0, %v3181
        %v3840 = vsub.f32 0.0, %v3270
        %v3841 = vsub.f32 0.0, %v3359
        %v3842 = vsub.f32 0.0, %v3448
        %v3843 = vsub.f32 0.0, %v3537
        %v3844 = vsub.f32 0.0, %v3626
        %v3845 = vsub.f32 0.0, %v3715
        %v3846 = vsub.f32 0.0, %v3183
        %v3847 = vsub.f32 0.0, %v3272
        %v3848 = vsub.f32 0.0, %v3361
        %v3849 = vsub.f32 0.0, %v3450
        %v3850 = vsub.f32 0.0, %v3539
        %v3851 = vsub.f32 0.0, %v3628
        %v3852 = vsub.f32 0.0, %v3717
        %v3853 = vsub.f32 0.0, %v3186
        %v3854 = vsub.f32 0.0, %v3275
        %v3855 = vsub.f32 0.0, %v3364
        %v3856 = vsub.f32 0.0, %v3453
        %v3857 = vsub.f32 0.0, %v3542
        %v3858 = vsub.f32 0.0, %v3631
        %v3859 = vsub.f32 0.0, %v3720
        %v3860 = vsub.f32 0.0, %v3188
        %v3861 = vsub.f32 0.0, %v3277
        %v3862 = vsub.f32 0.0, %v3366
        %v3863 = vsub.f32 0.0, %v3455
        %v3864 = vsub.f32 0.0, %v3544
        %v3865 = vsub.f32 0.0, %v3633
        %v3866 = vsub.f32 0.0, %v3722
        %v3867 = vsub.f32 0.0, %v3191
        %v3868 = vsub.f32 0.0, %v3280
        %v3869 = vsub.f32 0.0, %v3369
        %v3870 = vsub.f32 0.0, %v3458
        %v3871 = vsub.f32 0.0, %v3547
        %v3872 = vsub.f32 0.0, %v3636
        %v3873 = vsub.f32 0.0, %v3725
        %v3874 = vsub.f32 0.0, %v3193
        %v3875 = vsub.f32 0.0, %v3282
        %v3876 = vsub.f32 0.0, %v3371
        %v3877 = vsub.f32 0.0, %v3460
        %v3878 = vsub.f32 0.0, %v3549
        %v3879 = vsub.f32 0.0, %v3638
        %v3880 = vsub.f32 0.0, %v3727
        %v3881 = vsub.f32 0.0, %v3196
        %v3882 = vsub.f32 0.0, %v3285
        %v3883 = vsub.f32 0.0, %v3374
        %v3884 = vsub.f32 0.0, %v3463
        %v3885 = vsub.f32 0.0, %v3552
        %v3886 = vsub.f32 0.0, %v3641
        %v3887 = vsub.f32 0.0, %v3730
        %v3888 = vsub.f32 0.0, %v3198
        %v3889 = vsub.f32 0.0, %v3287
        %v3890 = vsub.f32 0.0, %v3376
        %v3891 = vsub.f32 0.0, %v3465
        %v3892 = vsub.f32 0.0, %v3554
        %v3893 = vsub.f32 0.0, %v3643
        %v3894 = vsub.f32 0.0, %v3732
        %v3895 = vsub.f32 0.0, %v3201
        %v3896 = vsub.f32 0.0, %v3290
        %v3897 = vsub.f32 0.0, %v3379
        %v3898 = vsub.f32 0.0, %v3468
        %v3899 = vsub.f32 0.0, %v3557
        %v3900 = vsub.f32 0.0, %v3646
        %v3901 = vsub.f32 0.0, %v3735
        %v3902 = vsub.f32 0.0, %v3203
        %v3903 = vsub.f32 0.0, %v3292
        %v3904 = vsub.f32 0.0, %v3381
        %v3905 = vsub.f32 0.0, %v3470
        %v3906 = vsub.f32 0.0, %v3559
        %v3907 = vsub.f32 0.0, %v3648
        %v3908 = vsub.f32 0.0, %v3737
        %v3909 = vsub.f32 0.0, %v3206
        %v3910 = vsub.f32 0.0, %v3295
        %v3911 = vsub.f32 0.0, %v3384
        %v3912 = vsub.f32 0.0, %v3473
        %v3913 = vsub.f32 0.0, %v3562
        %v3914 = vsub.f32 0.0, %v3651
        %v3915 = vsub.f32 0.0, %v3740
        %v3916 = vsub.f32 0.0, %v3208
        %v3917 = vsub.f32 0.0, %v3297
        %v3918 = vsub.f32 0.0, %v3386
        %v3919 = vsub.f32 0.0, %v3475
        %v3920 = vsub.f32 0.0, %v3564
        %v3921 = vsub.f32 0.0, %v3653
        %v3922 = vsub.f32 0.0, %v3742
        %v3923 = vsub.f32 0.0, %v3211
        %v3924 = vsub.f32 0.0, %v3300
        %v3925 = vsub.f32 0.0, %v3389
        %v3926 = vsub.f32 0.0, %v3478
        %v3927 = vsub.f32 0.0, %v3567
        %v3928 = vsub.f32 0.0, %v3656
        %v3929 = vsub.f32 0.0, %v3745
        %v3930 = vsub.f32 0.0, %v3213
        %v3931 = vsub.f32 0.0, %v3302
        %v3932 = vsub.f32 0.0, %v3391
        %v3933 = vsub.f32 0.0, %v3480
        %v3934 = vsub.f32 0.0, %v3569
        %v3935 = vsub.f32 0.0, %v3658
        %v3936 = vsub.f32 0.0, %v3747
        %v3937 = vsub.f32 0.0, %v3216
        %v3938 = vsub.f32 0.0, %v3305
        %v3939 = vsub.f32 0.0, %v3394
        %v3940 = vsub.f32 0.0, %v3483
        %v3941 = vsub.f32 0.0, %v3572
        %v3942 = vsub.f32 0.0, %v3661
        %v3943 = vsub.f32 0.0, %v3750
        %v3944 = vsub.f32 0.0, %v3218
        %v3945 = vsub.f32 0.0, %v3307
        %v3946 = vsub.f32 0.0, %v3396
        %v3947 = vsub.f32 0.0, %v3485
        %v3948 = vsub.f32 0.0, %v3574
        %v3949 = vsub.f32 0.0, %v3663
        %v3950 = vsub.f32 0.0, %v3752
        %v3951 = vsub.f32 0.0, %v3221
        %v3952 = vsub.f32 0.0, %v3310
        %v3953 = vsub.f32 0.0, %v3399
        %v3954 = vsub.f32 0.0, %v3488
        %v3955 = vsub.f32 0.0, %v3577
        %v3956 = vsub.f32 0.0, %v3666
        %v3957 = vsub.f32 0.0, %v3755
        %v3958 = vsub.f32 0.0, %v3223
        %v3959 = vsub.f32 0.0, %v3312
        %v3960 = vsub.f32 0.0, %v3401
        %v3961 = vsub.f32 0.0, %v3490
        %v3962 = vsub.f32 0.0, %v3579
        %v3963 = vsub.f32 0.0, %v3668
        %v3964 = vsub.f32 0.0, %v3757
        %v3965 = vsub.f32 0.0, %v3226
        %v3966 = vsub.f32 0.0, %v3315
        %v3967 = vsub.f32 0.0, %v3404
        %v3968 = vsub.f32 0.0, %v3493
        %v3969 = vsub.f32 0.0, %v3582
        %v3970 = vsub.f32 0.0, %v3671
        %v3971 = vsub.f32 0.0, %v3760
        %v3972 = vsub.f32 0.0, %v3228
        %v3973 = vsub.f32 0.0, %v3317
        %v3974 = vsub.f32 0.0, %v3406
        %v3975 = vsub.f32 0.0, %v3495
        %v3976 = vsub.f32 0.0, %v3584
        %v3977 = vsub.f32 0.0, %v3673
        %v3978 = vsub.f32 0.0, %v3762
        %v3979 = vsub.f32 0.0, %v3231
        %v3980 = vsub.f32 0.0, %v3320
        %v3981 = vsub.f32 0.0, %v3409
        %v3982 = vsub.f32 0.0, %v3498
        %v3983 = vsub.f32 0.0, %v3587
        %v3984 = vsub.f32 0.0, %v3676
        %v3985 = vsub.f32 0.0, %v3765
        %v3986 = vsub.f32 0.0, %v3233
        %v3987 = vsub.f32 0.0, %v3322
        %v3988 = vsub.f32 0.0, %v3411
        %v3989 = vsub.f32 0.0, %v3500
        %v3990 = vsub.f32 0.0, %v3589
        %v3991 = vsub.f32 0.0, %v3678
        %v3992 = vsub.f32 0.0, %v3767
        %v3993 = vmul.f32 %v3769, 1.442695
        %v3994 = vpow.pop %v3993
        %v3995 = vmul.f32 %v3770, 1.442695
        %v3996 = vpow.pop %v3995
        %v3997 = vmul.f32 %v3771, 1.442695
        %v3998 = vpow.pop %v3997
        %v3999 = vmul.f32 %v3772, 1.442695
        %v4000 = vpow.pop %v3999
        %v4001 = vmul.f32 %v3773, 1.442695
        %v4002 = vpow.pop %v4001
        %v4003 = vmul.f32 %v3774, 1.442695
        %v4004 = vpow.pop %v4003
        %v4005 = vmul.f32 %v3775, 1.442695
        %v4006 = vpow.pop %v4005
        %v4007 = vmul.f32 %v3776, 1.442695
        %v4008 = vpow.pop %v4007
        %v4009 = vmul.f32 %v3777, 1.442695
        %v4010 = vpow.pop %v4009
        %v4011 = vmul.f32 %v3778, 1.442695
        %v4012 = vpow.pop %v4011
        %v4013 = vmul.f32 %v3779, 1.442695
        %v4014 = vpow.pop %v4013
        %v4015 = vmul.f32 %v3780, 1.442695
        %v4016 = vpow.pop %v4015
        %v4017 = vmul.f32 %v3781, 1.442695
        %v4018 = vpow.pop %v4017
        %v4019 = vmul.f32 %v3782, 1.442695
        %v4020 = vpow.pop %v4019
        %v4021 = vmul.f32 %v3783, 1.442695
        %v4022 = vpow.pop %v4021
        %v4023 = vmul.f32 %v3784, 1.442695
        %v4024 = vpow.pop %v4023
        %v4025 = vmul.f32 %v3785, 1.442695
        %v4026 = vpow.pop %v4025
        %v4027 = vmul.f32 %v3786, 1.442695
        %v4028 = vpow.pop %v4027
        %v4029 = vmul.f32 %v3787, 1.442695
        %v4030 = vpow.pop %v4029
        %v4031 = vmul.f32 %v3788, 1.442695
        %v4032 = vpow.pop %v4031
        %v4033 = vmul.f32 %v3789, 1.442695
        %v4034 = vpow.pop %v4033
        %v4035 = vmul.f32 %v3790, 1.442695
        %v4036 = vpow.pop %v4035
        %v4037 = vmul.f32 %v3791, 1.442695
        %v4038 = vpow.pop %v4037
        %v4039 = vmul.f32 %v3792, 1.442695
        %v4040 = vpow.pop %v4039
        %v4041 = vmul.f32 %v3793, 1.442695
        %v4042 = vpow.pop %v4041
        %v4043 = vmul.f32 %v3794, 1.442695
        %v4044 = vpow.pop %v4043
        %v4045 = vmul.f32 %v3795, 1.442695
        %v4046 = vpow.pop %v4045
        %v4047 = vmul.f32 %v3796, 1.442695
        %v4048 = vpow.pop %v4047
        %v4049 = vmul.f32 %v3797, 1.442695
        %v4050 = vpow.pop %v4049
        %v4051 = vmul.f32 %v3798, 1.442695
        %v4052 = vpow.pop %v4051
        %v4053 = vmul.f32 %v3799, 1.442695
        %v4054 = vpow.pop %v4053
        %v4055 = vmul.f32 %v3800, 1.442695
        %v4056 = vpow.pop %v4055
        %v4057 = vmul.f32 %v3801, 1.442695
        %v4058 = vpow.pop %v4057
        %v4059 = vmul.f32 %v3802, 1.442695
        %v4060 = vpow.pop %v4059
        %v4061 = vmul.f32 %v3803, 1.442695
        %v4062 = vpow.pop %v4061
        %v4063 = vmul.f32 %v3804, 1.442695
        %v4064 = vpow.pop %v4063
        %v4065 = vmul.f32 %v3805, 1.442695
        %v4066 = vpow.pop %v4065
        %v4067 = vmul.f32 %v3806, 1.442695
        %v4068 = vpow.pop %v4067
        %v4069 = vmul.f32 %v3807, 1.442695
        %v4070 = vpow.pop %v4069
        %v4071 = vmul.f32 %v3808, 1.442695
        %v4072 = vpow.pop %v4071
        %v4073 = vmul.f32 %v3809, 1.442695
        %v4074 = vpow.pop %v4073
        %v4075 = vmul.f32 %v3810, 1.442695
        %v4076 = vpow.pop %v4075
        %v4077 = vmul.f32 %v3811, 1.442695
        %v4078 = vpow.pop %v4077
        %v4079 = vmul.f32 %v3812, 1.442695
        %v4080 = vpow.pop %v4079
        %v4081 = vmul.f32 %v3813, 1.442695
        %v4082 = vpow.pop %v4081
        %v4083 = vmul.f32 %v3814, 1.442695
        %v4084 = vpow.pop %v4083
        %v4085 = vmul.f32 %v3815, 1.442695
        %v4086 = vpow.pop %v4085
        %v4087 = vmul.f32 %v3816, 1.442695
        %v4088 = vpow.pop %v4087
        %v4089 = vmul.f32 %v3817, 1.442695
        %v4090 = vpow.pop %v4089
        %v4091 = vmul.f32 %v3818, 1.442695
        %v4092 = vpow.pop %v4091
        %v4093 = vmul.f32 %v3819, 1.442695
        %v4094 = vpow.pop %v4093
        %v4095 = vmul.f32 %v3820, 1.442695
        %v4096 = vpow.pop %v4095
        %v4097 = vmul.f32 %v3821, 1.442695
        %v4098 = vpow.pop %v4097
        %v4099 = vmul.f32 %v3822, 1.442695
        %v4100 = vpow.pop %v4099
        %v4101 = vmul.f32 %v3823, 1.442695
        %v4102 = vpow.pop %v4101
        %v4103 = vmul.f32 %v3824, 1.442695
        %v4104 = vpow.pop %v4103
        %v4105 = vmul.f32 %v3825, 1.442695
        %v4106 = vpow.pop %v4105
        %v4107 = vmul.f32 %v3826, 1.442695
        %v4108 = vpow.pop %v4107
        %v4109 = vmul.f32 %v3827, 1.442695
        %v4110 = vpow.pop %v4109
        %v4111 = vmul.f32 %v3828, 1.442695
        %v4112 = vpow.pop %v4111
        %v4113 = vmul.f32 %v3829, 1.442695
        %v4114 = vpow.pop %v4113
        %v4115 = vmul.f32 %v3830, 1.442695
        %v4116 = vpow.pop %v4115
        %v4117 = vmul.f32 %v3831, 1.442695
        %v4118 = vpow.pop %v4117
        %v4119 = vmul.f32 %v3832, 1.442695
        %v4120 = vpow.pop %v4119
        %v4121 = vmul.f32 %v3833, 1.442695
        %v4122 = vpow.pop %v4121
        %v4123 = vmul.f32 %v3834, 1.442695
        %v4124 = vpow.pop %v4123
        %v4125 = vmul.f32 %v3835, 1.442695
        %v4126 = vpow.pop %v4125
        %v4127 = vmul.f32 %v3836, 1.442695
        %v4128 = vpow.pop %v4127
        %v4129 = vmul.f32 %v3837, 1.442695
        %v4130 = vpow.pop %v4129
        %v4131 = vmul.f32 %v3838, 1.442695
        %v4132 = vpow.pop %v4131
        %v4133 = vmul.f32 %v3839, 1.442695
        %v4134 = vpow.pop %v4133
        %v4135 = vmul.f32 %v3840, 1.442695
        %v4136 = vpow.pop %v4135
        %v4137 = vmul.f32 %v3841, 1.442695
        %v4138 = vpow.pop %v4137
        %v4139 = vmul.f32 %v3842, 1.442695
        %v4140 = vpow.pop %v4139
        %v4141 = vmul.f32 %v3843, 1.442695
        %v4142 = vpow.pop %v4141
        %v4143 = vmul.f32 %v3844, 1.442695
        %v4144 = vpow.pop %v4143
        %v4145 = vmul.f32 %v3845, 1.442695
        %v4146 = vpow.pop %v4145
        %v4147 = vmul.f32 %v3846, 1.442695
        %v4148 = vpow.pop %v4147
        %v4149 = vmul.f32 %v3847, 1.442695
        %v4150 = vpow.pop %v4149
        %v4151 = vmul.f32 %v3848, 1.442695
        %v4152 = vpow.pop %v4151
        %v4153 = vmul.f32 %v3849, 1.442695
        %v4154 = vpow.pop %v4153
        %v4155 = vmul.f32 %v3850, 1.442695
        %v4156 = vpow.pop %v4155
        %v4157 = vmul.f32 %v3851, 1.442695
        %v4158 = vpow.pop %v4157
        %v4159 = vmul.f32 %v3852, 1.442695
        %v4160 = vpow.pop %v4159
        %v4161 = vmul.f32 %v3853, 1.442695
        %v4162 = vpow.pop %v4161
        %v4163 = vmul.f32 %v3854, 1.442695
        %v4164 = vpow.pop %v4163
        %v4165 = vmul.f32 %v3855, 1.442695
        %v4166 = vpow.pop %v4165
        %v4167 = vmul.f32 %v3856, 1.442695
        %v4168 = vpow.pop %v4167
        %v4169 = vmul.f32 %v3857, 1.442695
        %v4170 = vpow.pop %v4169
        %v4171 = vmul.f32 %v3858, 1.442695
        %v4172 = vpow.pop %v4171
        %v4173 = vmul.f32 %v3859, 1.442695
        %v4174 = vpow.pop %v4173
        %v4175 = vmul.f32 %v3860, 1.442695
        %v4176 = vpow.pop %v4175
        %v4177 = vmul.f32 %v3861, 1.442695
        %v4178 = vpow.pop %v4177
        %v4179 = vmul.f32 %v3862, 1.442695
        %v4180 = vpow.pop %v4179
        %v4181 = vmul.f32 %v3863, 1.442695
        %v4182 = vpow.pop %v4181
        %v4183 = vmul.f32 %v3864, 1.442695
        %v4184 = vpow.pop %v4183
        %v4185 = vmul.f32 %v3865, 1.442695
        %v4186 = vpow.pop %v4185
        %v4187 = vmul.f32 %v3866, 1.442695
        %v4188 = vpow.pop %v4187
        %v4189 = vmul.f32 %v3867, 1.442695
        %v4190 = vpow.pop %v4189
        %v4191 = vmul.f32 %v3868, 1.442695
        %v4192 = vpow.pop %v4191
        %v4193 = vmul.f32 %v3869, 1.442695
        %v4194 = vpow.pop %v4193
        %v4195 = vmul.f32 %v3870, 1.442695
        %v4196 = vpow.pop %v4195
        %v4197 = vmul.f32 %v3871, 1.442695
        %v4198 = vpow.pop %v4197
        %v4199 = vmul.f32 %v3872, 1.442695
        %v4200 = vpow.pop %v4199
        %v4201 = vmul.f32 %v3873, 1.442695
        %v4202 = vpow.pop %v4201
        %v4203 = vmul.f32 %v3874, 1.442695
        %v4204 = vpow.pop %v4203
        %v4205 = vmul.f32 %v3875, 1.442695
        %v4206 = vpow.pop %v4205
        %v4207 = vmul.f32 %v3876, 1.442695
        %v4208 = vpow.pop %v4207
        %v4209 = vmul.f32 %v3877, 1.442695
        %v4210 = vpow.pop %v4209
        %v4211 = vmul.f32 %v3878, 1.442695
        %v4212 = vpow.pop %v4211
        %v4213 = vmul.f32 %v3879, 1.442695
        %v4214 = vpow.pop %v4213
        %v4215 = vmul.f32 %v3880, 1.442695
        %v4216 = vpow.pop %v4215
        %v4217 = vmul.f32 %v3881, 1.442695
        %v4218 = vpow.pop %v4217
        %v4219 = vmul.f32 %v3882, 1.442695
        %v4220 = vpow.pop %v4219
        %v4221 = vmul.f32 %v3883, 1.442695
        %v4222 = vpow.pop %v4221
        %v4223 = vmul.f32 %v3884, 1.442695
        %v4224 = vpow.pop %v4223
        %v4225 = vmul.f32 %v3885, 1.442695
        %v4226 = vpow.pop %v4225
        %v4227 = vmul.f32 %v3886, 1.442695
        %v4228 = vpow.pop %v4227
        %v4229 = vmul.f32 %v3887, 1.442695
        %v4230 = vpow.pop %v4229
        %v4231 = vmul.f32 %v3888, 1.442695
        %v4232 = vpow.pop %v4231
        %v4233 = vmul.f32 %v3889, 1.442695
        %v4234 = vpow.pop %v4233
        %v4235 = vmul.f32 %v3890, 1.442695
        %v4236 = vpow.pop %v4235
        %v4237 = vmul.f32 %v3891, 1.442695
        %v4238 = vpow.pop %v4237
        %v4239 = vmul.f32 %v3892, 1.442695
        %v4240 = vpow.pop %v4239
        %v4241 = vmul.f32 %v3893, 1.442695
        %v4242 = vpow.pop %v4241
        %v4243 = vmul.f32 %v3894, 1.442695
        %v4244 = vpow.pop %v4243
        %v4245 = vmul.f32 %v3895, 1.442695
        %v4246 = vpow.pop %v4245
        %v4247 = vmul.f32 %v3896, 1.442695
        %v4248 = vpow.pop %v4247
        %v4249 = vmul.f32 %v3897, 1.442695
        %v4250 = vpow.pop %v4249
        %v4251 = vmul.f32 %v3898, 1.442695
        %v4252 = vpow.pop %v4251
        %v4253 = vmul.f32 %v3899, 1.442695
        %v4254 = vpow.pop %v4253
        %v4255 = vmul.f32 %v3900, 1.442695
        %v4256 = vpow.pop %v4255
        %v4257 = vmul.f32 %v3901, 1.442695
        %v4258 = vpow.pop %v4257
        %v4259 = vmul.f32 %v3902, 1.442695
        %v4260 = vpow.pop %v4259
        %v4261 = vmul.f32 %v3903, 1.442695
        %v4262 = vpow.pop %v4261
        %v4263 = vmul.f32 %v3904, 1.442695
        %v4264 = vpow.pop %v4263
        %v4265 = vmul.f32 %v3905, 1.442695
        %v4266 = vpow.pop %v4265
        %v4267 = vmul.f32 %v3906, 1.442695
        %v4268 = vpow.pop %v4267
        %v4269 = vmul.f32 %v3907, 1.442695
        %v4270 = vpow.pop %v4269
        %v4271 = vmul.f32 %v3908, 1.442695
        %v4272 = vpow.pop %v4271
        %v4273 = vmul.f32 %v3909, 1.442695
        %v4274 = vpow.pop %v4273
        %v4275 = vmul.f32 %v3910, 1.442695
        %v4276 = vpow.pop %v4275
        %v4277 = vmul.f32 %v3911, 1.442695
        %v4278 = vpow.pop %v4277
        %v4279 = vmul.f32 %v3912, 1.442695
        %v4280 = vpow.pop %v4279
        %v4281 = vmul.f32 %v3913, 1.442695
        %v4282 = vpow.pop %v4281
        %v4283 = vmul.f32 %v3914, 1.442695
        %v4284 = vpow.pop %v4283
        %v4285 = vmul.f32 %v3915, 1.442695
        %v4286 = vpow.pop %v4285
        %v4287 = vmul.f32 %v3916, 1.442695
        %v4288 = vpow.pop %v4287
        %v4289 = vmul.f32 %v3917, 1.442695
        %v4290 = vpow.pop %v4289
        %v4291 = vmul.f32 %v3918, 1.442695
        %v4292 = vpow.pop %v4291
        %v4293 = vmul.f32 %v3919, 1.442695
        %v4294 = vpow.pop %v4293
        %v4295 = vmul.f32 %v3920, 1.442695
        %v4296 = vpow.pop %v4295
        %v4297 = vmul.f32 %v3921, 1.442695
        %v4298 = vpow.pop %v4297
        %v4299 = vmul.f32 %v3922, 1.442695
        %v4300 = vpow.pop %v4299
        %v4301 = vmul.f32 %v3923, 1.442695
        %v4302 = vpow.pop %v4301
        %v4303 = vmul.f32 %v3924, 1.442695
        %v4304 = vpow.pop %v4303
        %v4305 = vmul.f32 %v3925, 1.442695
        %v4306 = vpow.pop %v4305
        %v4307 = vmul.f32 %v3926, 1.442695
        %v4308 = vpow.pop %v4307
        %v4309 = vmul.f32 %v3927, 1.442695
        %v4310 = vpow.pop %v4309
        %v4311 = vmul.f32 %v3928, 1.442695
        %v4312 = vpow.pop %v4311
        %v4313 = vmul.f32 %v3929, 1.442695
        %v4314 = vpow.pop %v4313
        %v4315 = vmul.f32 %v3930, 1.442695
        %v4316 = vpow.pop %v4315
        %v4317 = vmul.f32 %v3931, 1.442695
        %v4318 = vpow.pop %v4317
        %v4319 = vmul.f32 %v3932, 1.442695
        %v4320 = vpow.pop %v4319
        %v4321 = vmul.f32 %v3933, 1.442695
        %v4322 = vpow.pop %v4321
        %v4323 = vmul.f32 %v3934, 1.442695
        %v4324 = vpow.pop %v4323
        %v4325 = vmul.f32 %v3935, 1.442695
        %v4326 = vpow.pop %v4325
        %v4327 = vmul.f32 %v3936, 1.442695
        %v4328 = vpow.pop %v4327
        %v4329 = vmul.f32 %v3937, 1.442695
        %v4330 = vpow.pop %v4329
        %v4331 = vmul.f32 %v3938, 1.442695
        %v4332 = vpow.pop %v4331
        %v4333 = vmul.f32 %v3939, 1.442695
        %v4334 = vpow.pop %v4333
        %v4335 = vmul.f32 %v3940, 1.442695
        %v4336 = vpow.pop %v4335
        %v4337 = vmul.f32 %v3941, 1.442695
        %v4338 = vpow.pop %v4337
        %v4339 = vmul.f32 %v3942, 1.442695
        %v4340 = vpow.pop %v4339
        %v4341 = vmul.f32 %v3943, 1.442695
        %v4342 = vpow.pop %v4341
        %v4343 = vmul.f32 %v3944, 1.442695
        %v4344 = vpow.pop %v4343
        %v4345 = vmul.f32 %v3945, 1.442695
        %v4346 = vpow.pop %v4345
        %v4347 = vmul.f32 %v3946, 1.442695
        %v4348 = vpow.pop %v4347
        %v4349 = vmul.f32 %v3947, 1.442695
        %v4350 = vpow.pop %v4349
        %v4351 = vmul.f32 %v3948, 1.442695
        %v4352 = vpow.pop %v4351
        %v4353 = vmul.f32 %v3949, 1.442695
        %v4354 = vpow.pop %v4353
        %v4355 = vmul.f32 %v3950, 1.442695
        %v4356 = vpow.pop %v4355
        %v4357 = vmul.f32 %v3951, 1.442695
        %v4358 = vpow.pop %v4357
        %v4359 = vmul.f32 %v3952, 1.442695
        %v4360 = vpow.pop %v4359
        %v4361 = vmul.f32 %v3953, 1.442695
        %v4362 = vpow.pop %v4361
        %v4363 = vmul.f32 %v3954, 1.442695
        %v4364 = vpow.pop %v4363
        %v4365 = vmul.f32 %v3955, 1.442695
        %v4366 = vpow.pop %v4365
        %v4367 = vmul.f32 %v3956, 1.442695
        %v4368 = vpow.pop %v4367
        %v4369 = vmul.f32 %v3957, 1.442695
        %v4370 = vpow.pop %v4369
        %v4371 = vmul.f32 %v3958, 1.442695
        %v4372 = vpow.pop %v4371
        %v4373 = vmul.f32 %v3959, 1.442695
        %v4374 = vpow.pop %v4373
        %v4375 = vmul.f32 %v3960, 1.442695
        %v4376 = vpow.pop %v4375
        %v4377 = vmul.f32 %v3961, 1.442695
        %v4378 = vpow.pop %v4377
        %v4379 = vmul.f32 %v3962, 1.442695
        %v4380 = vpow.pop %v4379
        %v4381 = vmul.f32 %v3963, 1.442695
        %v4382 = vpow.pop %v4381
        %v4383 = vmul.f32 %v3964, 1.442695
        %v4384 = vpow.pop %v4383
        %v4385 = vmul.f32 %v3965, 1.442695
        %v4386 = vpow.pop %v4385
        %v4387 = vmul.f32 %v3966, 1.442695
        %v4388 = vpow.pop %v4387
        %v4389 = vmul.f32 %v3967, 1.442695
        %v4390 = vpow.pop %v4389
        %v4391 = vmul.f32 %v3968, 1.442695
        %v4392 = vpow.pop %v4391
        %v4393 = vmul.f32 %v3969, 1.442695
        %v4394 = vpow.pop %v4393
        %v4395 = vmul.f32 %v3970, 1.442695
        %v4396 = vpow.pop %v4395
        %v4397 = vmul.f32 %v3971, 1.442695
        %v4398 = vpow.pop %v4397
        %v4399 = vmul.f32 %v3972, 1.442695
        %v4400 = vpow.pop %v4399
        %v4401 = vmul.f32 %v3973, 1.442695
        %v4402 = vpow.pop %v4401
        %v4403 = vmul.f32 %v3974, 1.442695
        %v4404 = vpow.pop %v4403
        %v4405 = vmul.f32 %v3975, 1.442695
        %v4406 = vpow.pop %v4405
        %v4407 = vmul.f32 %v3976, 1.442695
        %v4408 = vpow.pop %v4407
        %v4409 = vmul.f32 %v3977, 1.442695
        %v4410 = vpow.pop %v4409
        %v4411 = vmul.f32 %v3978, 1.442695
        %v4412 = vpow.pop %v4411
        %v4413 = vmul.f32 %v3979, 1.442695
        %v4414 = vpow.pop %v4413
        %v4415 = vmul.f32 %v3980, 1.442695
        %v4416 = vpow.pop %v4415
        %v4417 = vmul.f32 %v3981, 1.442695
        %v4418 = vpow.pop %v4417
        %v4419 = vmul.f32 %v3982, 1.442695
        %v4420 = vpow.pop %v4419
        %v4421 = vmul.f32 %v3983, 1.442695
        %v4422 = vpow.pop %v4421
        %v4423 = vmul.f32 %v3984, 1.442695
        %v4424 = vpow.pop %v4423
        %v4425 = vmul.f32 %v3985, 1.442695
        %v4426 = vpow.pop %v4425
        %v4427 = vmul.f32 %v3986, 1.442695
        %v4428 = vpow.pop %v4427
        %v4429 = vmul.f32 %v3987, 1.442695
        %v4430 = vpow.pop %v4429
        %v4431 = vmul.f32 %v3988, 1.442695
        %v4432 = vpow.pop %v4431
        %v4433 = vmul.f32 %v3989, 1.442695
        %v4434 = vpow.pop %v4433
        %v4435 = vmul.f32 %v3990, 1.442695
        %v4436 = vpow.pop %v4435
        %v4437 = vmul.f32 %v3991, 1.442695
        %v4438 = vpow.pop %v4437
        %v4439 = vmul.f32 %v3992, 1.442695
        %v4440 = vpow.pop %v4439
        %v4441 = vadd.f32 %v3994, 1.0
        %v4442 = vadd.f32 %v3996, 1.0
        %v4443 = vadd.f32 %v3998, 1.0
        %v4444 = vadd.f32 %v4000, 1.0
        %v4445 = vadd.f32 %v4002, 1.0
        %v4446 = vadd.f32 %v4004, 1.0
        %v4447 = vadd.f32 %v4006, 1.0
        %v4448 = vadd.f32 %v4008, 1.0
        %v4449 = vadd.f32 %v4010, 1.0
        %v4450 = vadd.f32 %v4012, 1.0
        %v4451 = vadd.f32 %v4014, 1.0
        %v4452 = vadd.f32 %v4016, 1.0
        %v4453 = vadd.f32 %v4018, 1.0
        %v4454 = vadd.f32 %v4020, 1.0
        %v4455 = vadd.f32 %v4022, 1.0
        %v4456 = vadd.f32 %v4024, 1.0
        %v4457 = vadd.f32 %v4026, 1.0
        %v4458 = vadd.f32 %v4028, 1.0
        %v4459 = vadd.f32 %v4030, 1.0
        %v4460 = vadd.f32 %v4032, 1.0
        %v4461 = vadd.f32 %v4034, 1.0
        %v4462 = vadd.f32 %v4036, 1.0
        %v4463 = vadd.f32 %v4038, 1.0
        %v4464 = vadd.f32 %v4040, 1.0
        %v4465 = vadd.f32 %v4042, 1.0
        %v4466 = vadd.f32 %v4044, 1.0
        %v4467 = vadd.f32 %v4046, 1.0
        %v4468 = vadd.f32 %v4048, 1.0
        %v4469 = vadd.f32 %v4050, 1.0
        %v4470 = vadd.f32 %v4052, 1.0
        %v4471 = vadd.f32 %v4054, 1.0
        %v4472 = vadd.f32 %v4056, 1.0
        %v4473 = vadd.f32 %v4058, 1.0
        %v4474 = vadd.f32 %v4060, 1.0
        %v4475 = vadd.f32 %v4062, 1.0
        %v4476 = vadd.f32 %v4064, 1.0
        %v4477 = vadd.f32 %v4066, 1.0
        %v4478 = vadd.f32 %v4068, 1.0
        %v4479 = vadd.f32 %v4070, 1.0
        %v4480 = vadd.f32 %v4072, 1.0
        %v4481 = vadd.f32 %v4074, 1.0
        %v4482 = vadd.f32 %v4076, 1.0
        %v4483 = vadd.f32 %v4078, 1.0
        %v4484 = vadd.f32 %v4080, 1.0
        %v4485 = vadd.f32 %v4082, 1.0
        %v4486 = vadd.f32 %v4084, 1.0
        %v4487 = vadd.f32 %v4086, 1.0
        %v4488 = vadd.f32 %v4088, 1.0
        %v4489 = vadd.f32 %v4090, 1.0
        %v4490 = vadd.f32 %v4092, 1.0
        %v4491 = vadd.f32 %v4094, 1.0
        %v4492 = vadd.f32 %v4096, 1.0
        %v4493 = vadd.f32 %v4098, 1.0
        %v4494 = vadd.f32 %v4100, 1.0
        %v4495 = vadd.f32 %v4102, 1.0
        %v4496 = vadd.f32 %v4104, 1.0
        %v4497 = vadd.f32 %v4106, 1.0
        %v4498 = vadd.f32 %v4108, 1.0
        %v4499 = vadd.f32 %v4110, 1.0
        %v4500 = vadd.f32 %v4112, 1.0
        %v4501 = vadd.f32 %v4114, 1.0
        %v4502 = vadd.f32 %v4116, 1.0
        %v4503 = vadd.f32 %v4118, 1.0
        %v4504 = vadd.f32 %v4120, 1.0
        %v4505 = vadd.f32 %v4122, 1.0
        %v4506 = vadd.f32 %v4124, 1.0
        %v4507 = vadd.f32 %v4126, 1.0
        %v4508 = vadd.f32 %v4128, 1.0
        %v4509 = vadd.f32 %v4130, 1.0
        %v4510 = vadd.f32 %v4132, 1.0
        %v4511 = vadd.f32 %v4134, 1.0
        %v4512 = vadd.f32 %v4136, 1.0
        %v4513 = vadd.f32 %v4138, 1.0
        %v4514 = vadd.f32 %v4140, 1.0
        %v4515 = vadd.f32 %v4142, 1.0
        %v4516 = vadd.f32 %v4144, 1.0
        %v4517 = vadd.f32 %v4146, 1.0
        %v4518 = vadd.f32 %v4148, 1.0
        %v4519 = vadd.f32 %v4150, 1.0
        %v4520 = vadd.f32 %v4152, 1.0
        %v4521 = vadd.f32 %v4154, 1.0
        %v4522 = vadd.f32 %v4156, 1.0
        %v4523 = vadd.f32 %v4158, 1.0
        %v4524 = vadd.f32 %v4160, 1.0
        %v4525 = vadd.f32 %v4162, 1.0
        %v4526 = vadd.f32 %v4164, 1.0
        %v4527 = vadd.f32 %v4166, 1.0
        %v4528 = vadd.f32 %v4168, 1.0
        %v4529 = vadd.f32 %v4170, 1.0
        %v4530 = vadd.f32 %v4172, 1.0
        %v4531 = vadd.f32 %v4174, 1.0
        %v4532 = vadd.f32 %v4176, 1.0
        %v4533 = vadd.f32 %v4178, 1.0
        %v4534 = vadd.f32 %v4180, 1.0
        %v4535 = vadd.f32 %v4182, 1.0
        %v4536 = vadd.f32 %v4184, 1.0
        %v4537 = vadd.f32 %v4186, 1.0
        %v4538 = vadd.f32 %v4188, 1.0
        %v4539 = vadd.f32 %v4190, 1.0
        %v4540 = vadd.f32 %v4192, 1.0
        %v4541 = vadd.f32 %v4194, 1.0
        %v4542 = vadd.f32 %v4196, 1.0
        %v4543 = vadd.f32 %v4198, 1.0
        %v4544 = vadd.f32 %v4200, 1.0
        %v4545 = vadd.f32 %v4202, 1.0
        %v4546 = vadd.f32 %v4204, 1.0
        %v4547 = vadd.f32 %v4206, 1.0
        %v4548 = vadd.f32 %v4208, 1.0
        %v4549 = vadd.f32 %v4210, 1.0
        %v4550 = vadd.f32 %v4212, 1.0
        %v4551 = vadd.f32 %v4214, 1.0
        %v4552 = vadd.f32 %v4216, 1.0
        %v4553 = vadd.f32 %v4218, 1.0
        %v4554 = vadd.f32 %v4220, 1.0
        %v4555 = vadd.f32 %v4222, 1.0
        %v4556 = vadd.f32 %v4224, 1.0
        %v4557 = vadd.f32 %v4226, 1.0
        %v4558 = vadd.f32 %v4228, 1.0
        %v4559 = vadd.f32 %v4230, 1.0
        %v4560 = vadd.f32 %v4232, 1.0
        %v4561 = vadd.f32 %v4234, 1.0
        %v4562 = vadd.f32 %v4236, 1.0
        %v4563 = vadd.f32 %v4238, 1.0
        %v4564 = vadd.f32 %v4240, 1.0
        %v4565 = vadd.f32 %v4242, 1.0
        %v4566 = vadd.f32 %v4244, 1.0
        %v4567 = vadd.f32 %v4246, 1.0
        %v4568 = vadd.f32 %v4248, 1.0
        %v4569 = vadd.f32 %v4250, 1.0
        %v4570 = vadd.f32 %v4252, 1.0
        %v4571 = vadd.f32 %v4254, 1.0
        %v4572 = vadd.f32 %v4256, 1.0
        %v4573 = vadd.f32 %v4258, 1.0
        %v4574 = vadd.f32 %v4260, 1.0
        %v4575 = vadd.f32 %v4262, 1.0
        %v4576 = vadd.f32 %v4264, 1.0
        %v4577 = vadd.f32 %v4266, 1.0
        %v4578 = vadd.f32 %v4268, 1.0
        %v4579 = vadd.f32 %v4270, 1.0
        %v4580 = vadd.f32 %v4272, 1.0
        %v4581 = vadd.f32 %v4274, 1.0
        %v4582 = vadd.f32 %v4276, 1.0
        %v4583 = vadd.f32 %v4278, 1.0
        %v4584 = vadd.f32 %v4280, 1.0
        %v4585 = vadd.f32 %v4282, 1.0
        %v4586 = vadd.f32 %v4284, 1.0
        %v4587 = vadd.f32 %v4286, 1.0
        %v4588 = vadd.f32 %v4288, 1.0
        %v4589 = vadd.f32 %v4290, 1.0
        %v4590 = vadd.f32 %v4292, 1.0
        %v4591 = vadd.f32 %v4294, 1.0
        %v4592 = vadd.f32 %v4296, 1.0
        %v4593 = vadd.f32 %v4298, 1.0
        %v4594 = vadd.f32 %v4300, 1.0
        %v4595 = vadd.f32 %v4302, 1.0
        %v4596 = vadd.f32 %v4304, 1.0
        %v4597 = vadd.f32 %v4306, 1.0
        %v4598 = vadd.f32 %v4308, 1.0
        %v4599 = vadd.f32 %v4310, 1.0
        %v4600 = vadd.f32 %v4312, 1.0
        %v4601 = vadd.f32 %v4314, 1.0
        %v4602 = vadd.f32 %v4316, 1.0
        %v4603 = vadd.f32 %v4318, 1.0
        %v4604 = vadd.f32 %v4320, 1.0
        %v4605 = vadd.f32 %v4322, 1.0
        %v4606 = vadd.f32 %v4324, 1.0
        %v4607 = vadd.f32 %v4326, 1.0
        %v4608 = vadd.f32 %v4328, 1.0
        %v4609 = vadd.f32 %v4330, 1.0
        %v4610 = vadd.f32 %v4332, 1.0
        %v4611 = vadd.f32 %v4334, 1.0
        %v4612 = vadd.f32 %v4336, 1.0
        %v4613 = vadd.f32 %v4338, 1.0
        %v4614 = vadd.f32 %v4340, 1.0
        %v4615 = vadd.f32 %v4342, 1.0
        %v4616 = vadd.f32 %v4344, 1.0
        %v4617 = vadd.f32 %v4346, 1.0
        %v4618 = vadd.f32 %v4348, 1.0
        %v4619 = vadd.f32 %v4350, 1.0
        %v4620 = vadd.f32 %v4352, 1.0
        %v4621 = vadd.f32 %v4354, 1.0
        %v4622 = vadd.f32 %v4356, 1.0
        %v4623 = vadd.f32 %v4358, 1.0
        %v4624 = vadd.f32 %v4360, 1.0
        %v4625 = vadd.f32 %v4362, 1.0
        %v4626 = vadd.f32 %v4364, 1.0
        %v4627 = vadd.f32 %v4366, 1.0
        %v4628 = vadd.f32 %v4368, 1.0
        %v4629 = vadd.f32 %v4370, 1.0
        %v4630 = vadd.f32 %v4372, 1.0
        %v4631 = vadd.f32 %v4374, 1.0
        %v4632 = vadd.f32 %v4376, 1.0
        %v4633 = vadd.f32 %v4378, 1.0
        %v4634 = vadd.f32 %v4380, 1.0
        %v4635 = vadd.f32 %v4382, 1.0
        %v4636 = vadd.f32 %v4384, 1.0
        %v4637 = vadd.f32 %v4386, 1.0
        %v4638 = vadd.f32 %v4388, 1.0
        %v4639 = vadd.f32 %v4390, 1.0
        %v4640 = vadd.f32 %v4392, 1.0
        %v4641 = vadd.f32 %v4394, 1.0
        %v4642 = vadd.f32 %v4396, 1.0
        %v4643 = vadd.f32 %v4398, 1.0
        %v4644 = vadd.f32 %v4400, 1.0
        %v4645 = vadd.f32 %v4402, 1.0
        %v4646 = vadd.f32 %v4404, 1.0
        %v4647 = vadd.f32 %v4406, 1.0
        %v4648 = vadd.f32 %v4408, 1.0
        %v4649 = vadd.f32 %v4410, 1.0
        %v4650 = vadd.f32 %v4412, 1.0
        %v4651 = vadd.f32 %v4414, 1.0
        %v4652 = vadd.f32 %v4416, 1.0
        %v4653 = vadd.f32 %v4418, 1.0
        %v4654 = vadd.f32 %v4420, 1.0
        %v4655 = vadd.f32 %v4422, 1.0
        %v4656 = vadd.f32 %v4424, 1.0
        %v4657 = vadd.f32 %v4426, 1.0
        %v4658 = vadd.f32 %v4428, 1.0
        %v4659 = vadd.f32 %v4430, 1.0
        %v4660 = vadd.f32 %v4432, 1.0
        %v4661 = vadd.f32 %v4434, 1.0
        %v4662 = vadd.f32 %v4436, 1.0
        %v4663 = vadd.f32 %v4438, 1.0
        %v4664 = vadd.f32 %v4440, 1.0
        %v4665 = vrcp.pop %v4441
        %v4666 = vrcp.pop %v4442
        %v4667 = vrcp.pop %v4443
        %v4668 = vrcp.pop %v4444
        %v4669 = vrcp.pop %v4445
        %v4670 = vrcp.pop %v4446
        %v4671 = vrcp.pop %v4447
        %v4672 = vrcp.pop %v4448
        %v4673 = vrcp.pop %v4449
        %v4674 = vrcp.pop %v4450
        %v4675 = vrcp.pop %v4451
        %v4676 = vrcp.pop %v4452
        %v4677 = vrcp.pop %v4453
        %v4678 = vrcp.pop %v4454
        %v4679 = vrcp.pop %v4455
        %v4680 = vrcp.pop %v4456
        %v4681 = vrcp.pop %v4457
        %v4682 = vrcp.pop %v4458
        %v4683 = vrcp.pop %v4459
        %v4684 = vrcp.pop %v4460
        %v4685 = vrcp.pop %v4461
        %v4686 = vrcp.pop %v4462
        %v4687 = vrcp.pop %v4463
        %v4688 = vrcp.pop %v4464
        %v4689 = vrcp.pop %v4465
        %v4690 = vrcp.pop %v4466
        %v4691 = vrcp.pop %v4467
        %v4692 = vrcp.pop %v4468
        %v4693 = vrcp.pop %v4469
        %v4694 = vrcp.pop %v4470
        %v4695 = vrcp.pop %v4471
        %v4696 = vrcp.pop %v4472
        %v4697 = vrcp.pop %v4473
        %v4698 = vrcp.pop %v4474
        %v4699 = vrcp.pop %v4475
        %v4700 = vrcp.pop %v4476
        %v4701 = vrcp.pop %v4477
        %v4702 = vrcp.pop %v4478
        %v4703 = vrcp.pop %v4479
        %v4704 = vrcp.pop %v4480
        %v4705 = vrcp.pop %v4481
        %v4706 = vrcp.pop %v4482
        %v4707 = vrcp.pop %v4483
        %v4708 = vrcp.pop %v4484
        %v4709 = vrcp.pop %v4485
        %v4710 = vrcp.pop %v4486
        %v4711 = vrcp.pop %v4487
        %v4712 = vrcp.pop %v4488
        %v4713 = vrcp.pop %v4489
        %v4714 = vrcp.pop %v4490
        %v4715 = vrcp.pop %v4491
        %v4716 = vrcp.pop %v4492
        %v4717 = vrcp.pop %v4493
        %v4718 = vrcp.pop %v4494
        %v4719 = vrcp.pop %v4495
        %v4720 = vrcp.pop %v4496
        %v4721 = vrcp.pop %v4497
        %v4722 = vrcp.pop %v4498
        %v4723 = vrcp.pop %v4499
        %v4724 = vrcp.pop %v4500
        %v4725 = vrcp.pop %v4501
        %v4726 = vrcp.pop %v4502
        %v4727 = vrcp.pop %v4503
        %v4728 = vrcp.pop %v4504
        %v4729 = vrcp.pop %v4505
        %v4730 = vrcp.pop %v4506
        %v4731 = vrcp.pop %v4507
        %v4732 = vrcp.pop %v4508
        %v4733 = vrcp.pop %v4509
        %v4734 = vrcp.pop %v4510
        %v4735 = vrcp.pop %v4511
        %v4736 = vrcp.pop %v4512
        %v4737 = vrcp.pop %v4513
        %v4738 = vrcp.pop %v4514
        %v4739 = vrcp.pop %v4515
        %v4740 = vrcp.pop %v4516
        %v4741 = vrcp.pop %v4517
        %v4742 = vrcp.pop %v4518
        %v4743 = vrcp.pop %v4519
        %v4744 = vrcp.pop %v4520
        %v4745 = vrcp.pop %v4521
        %v4746 = vrcp.pop %v4522
        %v4747 = vrcp.pop %v4523
        %v4748 = vrcp.pop %v4524
        %v4749 = vrcp.pop %v4525
        %v4750 = vrcp.pop %v4526
        %v4751 = vrcp.pop %v4527
        %v4752 = vrcp.pop %v4528
        %v4753 = vrcp.pop %v4529
        %v4754 = vrcp.pop %v4530
        %v4755 = vrcp.pop %v4531
        %v4756 = vrcp.pop %v4532
        %v4757 = vrcp.pop %v4533
        %v4758 = vrcp.pop %v4534
        %v4759 = vrcp.pop %v4535
        %v4760 = vrcp.pop %v4536
        %v4761 = vrcp.pop %v4537
        %v4762 = vrcp.pop %v4538
        %v4763 = vrcp.pop %v4539
        %v4764 = vrcp.pop %v4540
        %v4765 = vrcp.pop %v4541
        %v4766 = vrcp.pop %v4542
        %v4767 = vrcp.pop %v4543
        %v4768 = vrcp.pop %v4544
        %v4769 = vrcp.pop %v4545
        %v4770 = vrcp.pop %v4546
        %v4771 = vrcp.pop %v4547
        %v4772 = vrcp.pop %v4548
        %v4773 = vrcp.pop %v4549
        %v4774 = vrcp.pop %v4550
        %v4775 = vrcp.pop %v4551
        %v4776 = vrcp.pop %v4552
        %v4777 = vrcp.pop %v4553
        %v4778 = vrcp.pop %v4554
        %v4779 = vrcp.pop %v4555
        %v4780 = vrcp.pop %v4556
        %v4781 = vrcp.pop %v4557
        %v4782 = vrcp.pop %v4558
        %v4783 = vrcp.pop %v4559
        %v4784 = vrcp.pop %v4560
        %v4785 = vrcp.pop %v4561
        %v4786 = vrcp.pop %v4562
        %v4787 = vrcp.pop %v4563
        %v4788 = vrcp.pop %v4564
        %v4789 = vrcp.pop %v4565
        %v4790 = vrcp.pop %v4566
        %v4791 = vrcp.pop %v4567
        %v4792 = vrcp.pop %v4568
        %v4793 = vrcp.pop %v4569
        %v4794 = vrcp.pop %v4570
        %v4795 = vrcp.pop %v4571
        %v4796 = vrcp.pop %v4572
        %v4797 = vrcp.pop %v4573
        %v4798 = vrcp.pop %v4574
        %v4799 = vrcp.pop %v4575
        %v4800 = vrcp.pop %v4576
        %v4801 = vrcp.pop %v4577
        %v4802 = vrcp.pop %v4578
        %v4803 = vrcp.pop %v4579
        %v4804 = vrcp.pop %v4580
        %v4805 = vrcp.pop %v4581
        %v4806 = vrcp.pop %v4582
        %v4807 = vrcp.pop %v4583
        %v4808 = vrcp.pop %v4584
        %v4809 = vrcp.pop %v4585
        %v4810 = vrcp.pop %v4586
        %v4811 = vrcp.pop %v4587
        %v4812 = vrcp.pop %v4588
        %v4813 = vrcp.pop %v4589
        %v4814 = vrcp.pop %v4590
        %v4815 = vrcp.pop %v4591
        %v4816 = vrcp.pop %v4592
        %v4817 = vrcp.pop %v4593
        %v4818 = vrcp.pop %v4594
        %v4819 = vrcp.pop %v4595
        %v4820 = vrcp.pop %v4596
        %v4821 = vrcp.pop %v4597
        %v4822 = vrcp.pop %v4598
        %v4823 = vrcp.pop %v4599
        %v4824 = vrcp.pop %v4600
        %v4825 = vrcp.pop %v4601
        %v4826 = vrcp.pop %v4602
        %v4827 = vrcp.pop %v4603
        %v4828 = vrcp.pop %v4604
        %v4829 = vrcp.pop %v4605
        %v4830 = vrcp.pop %v4606
        %v4831 = vrcp.pop %v4607
        %v4832 = vrcp.pop %v4608
        %v4833 = vrcp.pop %v4609
        %v4834 = vrcp.pop %v4610
        %v4835 = vrcp.pop %v4611
        %v4836 = vrcp.pop %v4612
        %v4837 = vrcp.pop %v4613
        %v4838 = vrcp.pop %v4614
        %v4839 = vrcp.pop %v4615
        %v4840 = vrcp.pop %v4616
        %v4841 = vrcp.pop %v4617
        %v4842 = vrcp.pop %v4618
        %v4843 = vrcp.pop %v4619
        %v4844 = vrcp.pop %v4620
        %v4845 = vrcp.pop %v4621
        %v4846 = vrcp.pop %v4622
        %v4847 = vrcp.pop %v4623
        %v4848 = vrcp.pop %v4624
        %v4849 = vrcp.pop %v4625
        %v4850 = vrcp.pop %v4626
        %v4851 = vrcp.pop %v4627
        %v4852 = vrcp.pop %v4628
        %v4853 = vrcp.pop %v4629
        %v4854 = vrcp.pop %v4630
        %v4855 = vrcp.pop %v4631
        %v4856 = vrcp.pop %v4632
        %v4857 = vrcp.pop %v4633
        %v4858 = vrcp.pop %v4634
        %v4859 = vrcp.pop %v4635
        %v4860 = vrcp.pop %v4636
        %v4861 = vrcp.pop %v4637
        %v4862 = vrcp.pop %v4638
        %v4863 = vrcp.pop %v4639
        %v4864 = vrcp.pop %v4640
        %v4865 = vrcp.pop %v4641
        %v4866 = vrcp.pop %v4642
        %v4867 = vrcp.pop %v4643
        %v4868 = vrcp.pop %v4644
        %v4869 = vrcp.pop %v4645
        %v4870 = vrcp.pop %v4646
        %v4871 = vrcp.pop %v4647
        %v4872 = vrcp.pop %v4648
        %v4873 = vrcp.pop %v4649
        %v4874 = vrcp.pop %v4650
        %v4875 = vrcp.pop %v4651
        %v4876 = vrcp.pop %v4652
        %v4877 = vrcp.pop %v4653
        %v4878 = vrcp.pop %v4654
        %v4879 = vrcp.pop %v4655
        %v4880 = vrcp.pop %v4656
        %v4881 = vrcp.pop %v4657
        %v4882 = vrcp.pop %v4658
        %v4883 = vrcp.pop %v4659
        %v4884 = vrcp.pop %v4660
        %v4885 = vrcp.pop %v4661
        %v4886 = vrcp.pop %v4662
        %v4887 = vrcp.pop %v4663
        %v4888 = vrcp.pop %v4664
        %v4889 = vpack.c.bf16 %v4666, %v4665
        %v4890 = vpack.c.bf16 %v4668, %v4667
        %v4891 = vpack.c.bf16 %v4670, %v4669
        %v4892 = vpack.c.bf16 %v4671, %v4671
        %v4893 = vpack.c.bf16 %v4673, %v4672
        %v4894 = vpack.c.bf16 %v4675, %v4674
        %v4895 = vpack.c.bf16 %v4677, %v4676
        %v4896 = vpack.c.bf16 %v4678, %v4678
        %v4897 = vpack.c.bf16 %v4680, %v4679
        %v4898 = vpack.c.bf16 %v4682, %v4681
        %v4899 = vpack.c.bf16 %v4684, %v4683
        %v4900 = vpack.c.bf16 %v4685, %v4685
        %v4901 = vpack.c.bf16 %v4687, %v4686
        %v4902 = vpack.c.bf16 %v4689, %v4688
        %v4903 = vpack.c.bf16 %v4691, %v4690
        %v4904 = vpack.c.bf16 %v4692, %v4692
        %v4905 = vpack.c.bf16 %v4694, %v4693
        %v4906 = vpack.c.bf16 %v4696, %v4695
        %v4907 = vpack.c.bf16 %v4698, %v4697
        %v4908 = vpack.c.bf16 %v4699, %v4699
        %v4909 = vpack.c.bf16 %v4701, %v4700
        %v4910 = vpack.c.bf16 %v4703, %v4702
        %v4911 = vpack.c.bf16 %v4705, %v4704
        %v4912 = vpack.c.bf16 %v4706, %v4706
        %v4913 = vpack.c.bf16 %v4708, %v4707
        %v4914 = vpack.c.bf16 %v4710, %v4709
        %v4915 = vpack.c.bf16 %v4712, %v4711
        %v4916 = vpack.c.bf16 %v4713, %v4713
        %v4917 = vpack.c.bf16 %v4715, %v4714
        %v4918 = vpack.c.bf16 %v4717, %v4716
        %v4919 = vpack.c.bf16 %v4719, %v4718
        %v4920 = vpack.c.bf16 %v4720, %v4720
        %v4921 = vpack.c.bf16 %v4722, %v4721
        %v4922 = vpack.c.bf16 %v4724, %v4723
        %v4923 = vpack.c.bf16 %v4726, %v4725
        %v4924 = vpack.c.bf16 %v4727, %v4727
        %v4925 = vpack.c.bf16 %v4729, %v4728
        %v4926 = vpack.c.bf16 %v4731, %v4730
        %v4927 = vpack.c.bf16 %v4733, %v4732
        %v4928 = vpack.c.bf16 %v4734, %v4734
        %v4929 = vpack.c.bf16 %v4736, %v4735
        %v4930 = vpack.c.bf16 %v4738, %v4737
        %v4931 = vpack.c.bf16 %v4740, %v4739
        %v4932 = vpack.c.bf16 %v4741, %v4741
        %v4933 = vpack.c.bf16 %v4743, %v4742
        %v4934 = vpack.c.bf16 %v4745, %v4744
        %v4935 = vpack.c.bf16 %v4747, %v4746
        %v4936 = vpack.c.bf16 %v4748, %v4748
        %v4937 = vpack.c.bf16 %v4750, %v4749
        %v4938 = vpack.c.bf16 %v4752, %v4751
        %v4939 = vpack.c.bf16 %v4754, %v4753
        %v4940 = vpack.c.bf16 %v4755, %v4755
        %v4941 = vpack.c.bf16 %v4757, %v4756
        %v4942 = vpack.c.bf16 %v4759, %v4758
        %v4943 = vpack.c.bf16 %v4761, %v4760
        %v4944 = vpack.c.bf16 %v4762, %v4762
        %v4945 = vpack.c.bf16 %v4764, %v4763
        %v4946 = vpack.c.bf16 %v4766, %v4765
        %v4947 = vpack.c.bf16 %v4768, %v4767
        %v4948 = vpack.c.bf16 %v4769, %v4769
        %v4949 = vpack.c.bf16 %v4771, %v4770
        %v4950 = vpack.c.bf16 %v4773, %v4772
        %v4951 = vpack.c.bf16 %v4775, %v4774
        %v4952 = vpack.c.bf16 %v4776, %v4776
        %v4953 = vpack.c.bf16 %v4778, %v4777
        %v4954 = vpack.c.bf16 %v4780, %v4779
        %v4955 = vpack.c.bf16 %v4782, %v4781
        %v4956 = vpack.c.bf16 %v4783, %v4783
        %v4957 = vpack.c.bf16 %v4785, %v4784
        %v4958 = vpack.c.bf16 %v4787, %v4786
        %v4959 = vpack.c.bf16 %v4789, %v4788
        %v4960 = vpack.c.bf16 %v4790, %v4790
        %v4961 = vpack.c.bf16 %v4792, %v4791
        %v4962 = vpack.c.bf16 %v4794, %v4793
        %v4963 = vpack.c.bf16 %v4796, %v4795
        %v4964 = vpack.c.bf16 %v4797, %v4797
        %v4965 = vpack.c.bf16 %v4799, %v4798
        %v4966 = vpack.c.bf16 %v4801, %v4800
        %v4967 = vpack.c.bf16 %v4803, %v4802
        %v4968 = vpack.c.bf16 %v4804, %v4804
        %v4969 = vpack.c.bf16 %v4806, %v4805
        %v4970 = vpack.c.bf16 %v4808, %v4807
        %v4971 = vpack.c.bf16 %v4810, %v4809
        %v4972 = vpack.c.bf16 %v4811, %v4811
        %v4973 = vpack.c.bf16 %v4813, %v4812
        %v4974 = vpack.c.bf16 %v4815, %v4814
        %v4975 = vpack.c.bf16 %v4817, %v4816
        %v4976 = vpack.c.bf16 %v4818, %v4818
        %v4977 = vpack.c.bf16 %v4820, %v4819
        %v4978 = vpack.c.bf16 %v4822, %v4821
        %v4979 = vpack.c.bf16 %v4824, %v4823
        %v4980 = vpack.c.bf16 %v4825, %v4825
        %v4981 = vpack.c.bf16 %v4827, %v4826
        %v4982 = vpack.c.bf16 %v4829, %v4828
        %v4983 = vpack.c.bf16 %v4831, %v4830
        %v4984 = vpack.c.bf16 %v4832, %v4832
        %v4985 = vpack.c.bf16 %v4834, %v4833
        %v4986 = vpack.c.bf16 %v4836, %v4835
        %v4987 = vpack.c.bf16 %v4838, %v4837
        %v4988 = vpack.c.bf16 %v4839, %v4839
        %v4989 = vpack.c.bf16 %v4841, %v4840
        %v4990 = vpack.c.bf16 %v4843, %v4842
        %v4991 = vpack.c.bf16 %v4845, %v4844
        %v4992 = vpack.c.bf16 %v4846, %v4846
        %v4993 = vpack.c.bf16 %v4848, %v4847
        %v4994 = vpack.c.bf16 %v4850, %v4849
        %v4995 = vpack.c.bf16 %v4852, %v4851
        %v4996 = vpack.c.bf16 %v4853, %v4853
        %v4997 = vpack.c.bf16 %v4855, %v4854
        %v4998 = vpack.c.bf16 %v4857, %v4856
        %v4999 = vpack.c.bf16 %v4859, %v4858
        %v5000 = vpack.c.bf16 %v4860, %v4860
        %v5001 = vpack.c.bf16 %v4862, %v4861
        %v5002 = vpack.c.bf16 %v4864, %v4863
        %v5003 = vpack.c.bf16 %v4866, %v4865
        %v5004 = vpack.c.bf16 %v4867, %v4867
        %v5005 = vpack.c.bf16 %v4869, %v4868
        %v5006 = vpack.c.bf16 %v4871, %v4870
        %v5007 = vpack.c.bf16 %v4873, %v4872
        %v5008 = vpack.c.bf16 %v4874, %v4874
        %v5009 = vpack.c.bf16 %v4876, %v4875
        %v5010 = vpack.c.bf16 %v4878, %v4877
        %v5011 = vpack.c.bf16 %v4880, %v4879
        %v5012 = vpack.c.bf16 %v4881, %v4881
        %v5013 = vpack.c.bf16 %v4883, %v4882
        %v5014 = vpack.c.bf16 %v4885, %v4884
        %v5015 = vpack.c.bf16 %v4887, %v4886
        %v5016 = vpack.c.bf16 %v4888, %v4888
        %5017 = vst [vmem:[%s447] sm:$0xff] %v4889
        %5018 = vst [vmem:[%s447 + $0x8] sm:$0xff] %v4890
        %5019 = vst [vmem:[%s447 + $0x10] sm:$0xff] %v4891
        %vm5020 = vcmask 125952
        %5021 = vst.msk [vmem:[%s447 + $0x18] sm:$0xf] %vm5020, %v4892
        %5022 = vst [vmem:[%s447 + $0x1c] sm:$0xff] %v4893
        %5023 = vst [vmem:[%s447 + $0x24] sm:$0xff] %v4894
        %5024 = vst [vmem:[%s447 + $0x2c] sm:$0xff] %v4895
        %5025 = vst.msk [vmem:[%s447 + $0x34] sm:$0xf] %vm5020, %v4896
        %5026 = vst [vmem:[%s447 + $0x38] sm:$0xff] %v4897
        %5027 = vst [vmem:[%s447 + $0x40] sm:$0xff] %v4898
        %5028 = vst [vmem:[%s447 + $0x48] sm:$0xff] %v4899
        %5029 = vst.msk [vmem:[%s447 + $0x50] sm:$0xf] %vm5020, %v4900
        %5030 = vst [vmem:[%s447 + $0x54] sm:$0xff] %v4901
        %5031 = vst [vmem:[%s447 + $0x5c] sm:$0xff] %v4902
        %5032 = vst [vmem:[%s447 + $0x64] sm:$0xff] %v4903
        %5033 = vst.msk [vmem:[%s447 + $0x6c] sm:$0xf] %vm5020, %v4904
        %5034 = vst [vmem:[%s447 + $0x70] sm:$0xff] %v4905
        %5035 = vst [vmem:[%s447 + $0x78] sm:$0xff] %v4906
        %5036 = vst [vmem:[%s447 + $0x80] sm:$0xff] %v4907
        %5037 = vst.msk [vmem:[%s447 + $0x88] sm:$0xf] %vm5020, %v4908
        %5038 = vst [vmem:[%s447 + $0x8c] sm:$0xff] %v4909
        %5039 = vst [vmem:[%s447 + $0x94] sm:$0xff] %v4910
        %5040 = vst [vmem:[%s447 + $0x9c] sm:$0xff] %v4911
        %5041 = vst.msk [vmem:[%s447 + $0xa4] sm:$0xf] %vm5020, %v4912
        %5042 = vst [vmem:[%s447 + $0xa8] sm:$0xff] %v4913
        %5043 = vst [vmem:[%s447 + $0xb0] sm:$0xff] %v4914
        %5044 = vst [vmem:[%s447 + $0xb8] sm:$0xff] %v4915
        %5045 = vst.msk [vmem:[%s447 + $0xc0] sm:$0xf] %vm5020, %v4916
        %5046 = vst [vmem:[%s447 + $0xc4] sm:$0xff] %v4917
        %5047 = vst [vmem:[%s447 + $0xcc] sm:$0xff] %v4918
        %5048 = vst [vmem:[%s447 + $0xd4] sm:$0xff] %v4919
        %5049 = vst.msk [vmem:[%s447 + $0xdc] sm:$0xf] %vm5020, %v4920
        %5050 = vst [vmem:[%s447 + $0xe0] sm:$0xff] %v4921
        %5051 = vst [vmem:[%s447 + $0xe8] sm:$0xff] %v4922
        %5052 = vst [vmem:[%s447 + $0xf0] sm:$0xff] %v4923
        %5053 = vst.msk [vmem:[%s447 + $0xf8] sm:$0xf] %vm5020, %v4924
        %5054 = vst [vmem:[%s447 + $0xfc] sm:$0xff] %v4925
        %5055 = vst [vmem:[%s447 + $0x104] sm:$0xff] %v4926
        %5056 = vst [vmem:[%s447 + $0x10c] sm:$0xff] %v4927
        %5057 = vst.msk [vmem:[%s447 + $0x114] sm:$0xf] %vm5020, %v4928
        %5058 = vst [vmem:[%s447 + $0x118] sm:$0xff] %v4929
        %5059 = vst [vmem:[%s447 + $0x120] sm:$0xff] %v4930
        %5060 = vst [vmem:[%s447 + $0x128] sm:$0xff] %v4931
        %5061 = vst.msk [vmem:[%s447 + $0x130] sm:$0xf] %vm5020, %v4932
        %5062 = vst [vmem:[%s447 + $0x134] sm:$0xff] %v4933
        %5063 = vst [vmem:[%s447 + $0x13c] sm:$0xff] %v4934
        %5064 = vst [vmem:[%s447 + $0x144] sm:$0xff] %v4935
        %5065 = vst.msk [vmem:[%s447 + $0x14c] sm:$0xf] %vm5020, %v4936
        %5066 = vst [vmem:[%s447 + $0x150] sm:$0xff] %v4937
        %5067 = vst [vmem:[%s447 + $0x158] sm:$0xff] %v4938
        %5068 = vst [vmem:[%s447 + $0x160] sm:$0xff] %v4939
        %5069 = vst.msk [vmem:[%s447 + $0x168] sm:$0xf] %vm5020, %v4940
        %5070 = vst [vmem:[%s447 + $0x16c] sm:$0xff] %v4941
        %5071 = vst [vmem:[%s447 + $0x174] sm:$0xff] %v4942
        %5072 = vst [vmem:[%s447 + $0x17c] sm:$0xff] %v4943
        %5073 = vst.msk [vmem:[%s447 + $0x184] sm:$0xf] %vm5020, %v4944
        %5074 = vst [vmem:[%s447 + $0x188] sm:$0xff] %v4945
        %5075 = vst [vmem:[%s447 + $0x190] sm:$0xff] %v4946
        %5076 = vst [vmem:[%s447 + $0x198] sm:$0xff] %v4947
        %5077 = vst.msk [vmem:[%s447 + $0x1a0] sm:$0xf] %vm5020, %v4948
        %5078 = vst [vmem:[%s447 + $0x1a4] sm:$0xff] %v4949
        %5079 = vst [vmem:[%s447 + $0x1ac] sm:$0xff] %v4950
        %5080 = vst [vmem:[%s447 + $0x1b4] sm:$0xff] %v4951
        %5081 = vst.msk [vmem:[%s447 + $0x1bc] sm:$0xf] %vm5020, %v4952
        %5082 = vst [vmem:[%s447 + $0x1c0] sm:$0xff] %v4953
        %5083 = vst [vmem:[%s447 + $0x1c8] sm:$0xff] %v4954
        %5084 = vst [vmem:[%s447 + $0x1d0] sm:$0xff] %v4955
        %5085 = vst.msk [vmem:[%s447 + $0x1d8] sm:$0xf] %vm5020, %v4956
        %5086 = vst [vmem:[%s447 + $0x1dc] sm:$0xff] %v4957
        %5087 = vst [vmem:[%s447 + $0x1e4] sm:$0xff] %v4958
        %5088 = vst [vmem:[%s447 + $0x1ec] sm:$0xff] %v4959
        %5089 = vst.msk [vmem:[%s447 + $0x1f4] sm:$0xf] %vm5020, %v4960
        %5090 = vst [vmem:[%s447 + $0x1f8] sm:$0xff] %v4961
        %5091 = vst [vmem:[%s447 + $0x200] sm:$0xff] %v4962
        %5092 = vst [vmem:[%s447 + $0x208] sm:$0xff] %v4963
        %5093 = vst.msk [vmem:[%s447 + $0x210] sm:$0xf] %vm5020, %v4964
        %5094 = vst [vmem:[%s447 + $0x214] sm:$0xff] %v4965
        %5095 = vst [vmem:[%s447 + $0x21c] sm:$0xff] %v4966
        %5096 = vst [vmem:[%s447 + $0x224] sm:$0xff] %v4967
        %5097 = vst.msk [vmem:[%s447 + $0x22c] sm:$0xf] %vm5020, %v4968
        %5098 = vst [vmem:[%s447 + $0x230] sm:$0xff] %v4969
        %5099 = vst [vmem:[%s447 + $0x238] sm:$0xff] %v4970
        %5100 = vst [vmem:[%s447 + $0x240] sm:$0xff] %v4971
        %5101 = vst.msk [vmem:[%s447 + $0x248] sm:$0xf] %vm5020, %v4972
        %5102 = vst [vmem:[%s447 + $0x24c] sm:$0xff] %v4973
        %5103 = vst [vmem:[%s447 + $0x254] sm:$0xff] %v4974
        %5104 = vst [vmem:[%s447 + $0x25c] sm:$0xff] %v4975
        %5105 = vst.msk [vmem:[%s447 + $0x264] sm:$0xf] %vm5020, %v4976
        %5106 = vst [vmem:[%s447 + $0x268] sm:$0xff] %v4977
        %5107 = vst [vmem:[%s447 + $0x270] sm:$0xff] %v4978
        %5108 = vst [vmem:[%s447 + $0x278] sm:$0xff] %v4979
        %5109 = vst.msk [vmem:[%s447 + $0x280] sm:$0xf] %vm5020, %v4980
        %5110 = vst [vmem:[%s447 + $0x284] sm:$0xff] %v4981
        %5111 = vst [vmem:[%s447 + $0x28c] sm:$0xff] %v4982
        %5112 = vst [vmem:[%s447 + $0x294] sm:$0xff] %v4983
        %5113 = vst.msk [vmem:[%s447 + $0x29c] sm:$0xf] %vm5020, %v4984
        %5114 = vst [vmem:[%s447 + $0x2a0] sm:$0xff] %v4985
        %5115 = vst [vmem:[%s447 + $0x2a8] sm:$0xff] %v4986
        %5116 = vst [vmem:[%s447 + $0x2b0] sm:$0xff] %v4987
        %5117 = vst.msk [vmem:[%s447 + $0x2b8] sm:$0xf] %vm5020, %v4988
        %5118 = vst [vmem:[%s447 + $0x2bc] sm:$0xff] %v4989
        %5119 = vst [vmem:[%s447 + $0x2c4] sm:$0xff] %v4990
        %5120 = vst [vmem:[%s447 + $0x2cc] sm:$0xff] %v4991
        %5121 = vst.msk [vmem:[%s447 + $0x2d4] sm:$0xf] %vm5020, %v4992
        %5122 = vst [vmem:[%s447 + $0x2d8] sm:$0xff] %v4993
        %5123 = vst [vmem:[%s447 + $0x2e0] sm:$0xff] %v4994
        %5124 = vst [vmem:[%s447 + $0x2e8] sm:$0xff] %v4995
        %5125 = vst.msk [vmem:[%s447 + $0x2f0] sm:$0xf] %vm5020, %v4996
        %5126 = vst [vmem:[%s447 + $0x2f4] sm:$0xff] %v4997
        %5127 = vst [vmem:[%s447 + $0x2fc] sm:$0xff] %v4998
        %5128 = vst [vmem:[%s447 + $0x304] sm:$0xff] %v4999
        %5129 = vst.msk [vmem:[%s447 + $0x30c] sm:$0xf] %vm5020, %v5000
        %5130 = vst [vmem:[%s447 + $0x310] sm:$0xff] %v5001
        %5131 = vst [vmem:[%s447 + $0x318] sm:$0xff] %v5002
        %5132 = vst [vmem:[%s447 + $0x320] sm:$0xff] %v5003
        %5133 = vst.msk [vmem:[%s447 + $0x328] sm:$0xf] %vm5020, %v5004
        %5134 = vst [vmem:[%s447 + $0x32c] sm:$0xff] %v5005
        %5135 = vst [vmem:[%s447 + $0x334] sm:$0xff] %v5006
        %5136 = vst [vmem:[%s447 + $0x33c] sm:$0xff] %v5007
        %5137 = vst.msk [vmem:[%s447 + $0x344] sm:$0xf] %vm5020, %v5008
        %5138 = vst [vmem:[%s447 + $0x348] sm:$0xff] %v5009
        %5139 = vst [vmem:[%s447 + $0x350] sm:$0xff] %v5010
        %5140 = vst [vmem:[%s447 + $0x358] sm:$0xff] %v5011
        %5141 = vst.msk [vmem:[%s447 + $0x360] sm:$0xf] %vm5020, %v5012
        %5142 = vst [vmem:[%s447 + $0x364] sm:$0xff] %v5013
        %5143 = vst [vmem:[%s447 + $0x36c] sm:$0xff] %v5014
        %5144 = vst [vmem:[%s447 + $0x374] sm:$0xff] %v5015
        %5145 = vst.msk [vmem:[%s447 + $0x37c] sm:$0xf] %vm5020, %v5016
        %s5146 = sand.u32 %s310, 1
        %s5147 = sand.u32 %s310, 1
        %s5148 = smul.addr %s5147, 896
        %s5149 = scalar_lea.vmem [#allocation2], %s5148
        // Predicated region
        $region73: #{autoencoder_forward.1} parent=71 // pred_check
          %p5150 = pneg %p320
        $region74: #{autoencoder_forward.1} parent=71 // pred_check_branch
          %5152 = sbr.rel (%p5150) target = $region76
        $region75: #{autoencoder_forward.1} parent=71 // pred_region
          %s5153 = smul.u32 32, %s24
          %s5154 = ssub.s32 63, %s5153
          %p5155 = scmp.lt.s32.totalorder %s5154, 32
          %s5156 = scalar_select %p5155, %s5154, 32
          %s5157 = smul.u32 4, %s5156
          %s5158 = smul.u32 %s5157, 7
          %p5159 = scmp.ne.s32.totalorder 0, %s5158
          %s5160 = smul.addr %s5153, 7
          %s5161 = smul.addr %s5160, 4
          %s5162 = scalar_lea.vmem %s13, %s5161
          // Predicated region
          $region77: #{autoencoder_forward.1} parent=75 // pred_check
            %p5163 = pneg %p5159
          $region78: #{autoencoder_forward.1} parent=75 // pred_check_branch
            %5165 = sbr.rel (%p5163) target = $region80
          $region79: #{autoencoder_forward.1} parent=75 // pred_region
            // Predicated region
            $region81: #{autoencoder_forward.1} parent=79 // pred_check
              _
            $region82: #{autoencoder_forward.1} parent=79 // pred_check_branch
              %5167 = sbr.rel (0) target = $region84
            $region83: #{autoencoder_forward.1} parent=79 // pred_region
              %s5168 = scalar_lea.vmem %s5149, 24 [#allocation2]
              %s5169 = scalar_lea.vmem %s5162, 24
              %s5170 = sdiv.u32.pop %s5156, 11
              %s5171 = srem.u32.pop %s5156, 11
              // While loop
              $region85: #{autoencoder_forward.1} parent=83 // loop_pre_header
                _
              $region86: #{autoencoder_forward.1} parent=83 // loop_header
                %s5173 = sphi 0, %s5175
                %p5174 = scmp.ge.s32.totalorder %s5173, %s5170
                %s5178 = sphi 0, %s5249
                %s5179 = sphi %s5149, %s5252
                %s5180 = sphi %s5162, %s5253
              $region87: #{autoencoder_forward.1} parent=83 // loop_header_branch
                %5177 = sbr.rel (%p5174) target = $region91
              $region88: #{autoencoder_forward.1} parent=83 // loop_body
                %v5181 = vld [vmem:[%s5179] sm:$0xff]
                %5182 = vst [vmem:[%s5180] sm:$0xff] %v5181
                %v5183 = vld [vmem:[%s5179 + $0x1c] sm:$0xff]
                %5184 = vst [vmem:[%s5180 + $0x1c] sm:$0xff] %v5183
                %v5185 = vld [vmem:[%s5179 + $0x38] sm:$0xff]
                %5186 = vst [vmem:[%s5180 + $0x38] sm:$0xff] %v5185
                %v5187 = vld [vmem:[%s5179 + $0x54] sm:$0xff]
                %5188 = vst [vmem:[%s5180 + $0x54] sm:$0xff] %v5187
                %v5189 = vld [vmem:[%s5179 + $0x70] sm:$0xff]
                %5190 = vst [vmem:[%s5180 + $0x70] sm:$0xff] %v5189
                %v5191 = vld [vmem:[%s5179 + $0x8c] sm:$0xff]
                %5192 = vst [vmem:[%s5180 + $0x8c] sm:$0xff] %v5191
                %v5193 = vld [vmem:[%s5179 + $0xa8] sm:$0xff]
                %5194 = vst [vmem:[%s5180 + $0xa8] sm:$0xff] %v5193
                %v5195 = vld [vmem:[%s5179 + $0xc4] sm:$0xff]
                %5196 = vst [vmem:[%s5180 + $0xc4] sm:$0xff] %v5195
                %v5197 = vld [vmem:[%s5179 + $0xe0] sm:$0xff]
                %5198 = vst [vmem:[%s5180 + $0xe0] sm:$0xff] %v5197
                %v5199 = vld [vmem:[%s5179 + $0xfc] sm:$0xff]
                %5200 = vst [vmem:[%s5180 + $0xfc] sm:$0xff] %v5199
                %v5201 = vld [vmem:[%s5179 + $0x118] sm:$0xff]
                %5202 = vst [vmem:[%s5180 + $0x118] sm:$0xff] %v5201
                %v5203 = vld [vmem:[%s5179 + $0x8] sm:$0xff]
                %5204 = vst [vmem:[%s5180 + $0x8] sm:$0xff] %v5203
                %v5205 = vld [vmem:[%s5179 + $0x24] sm:$0xff]
                %5206 = vst [vmem:[%s5180 + $0x24] sm:$0xff] %v5205
                %v5207 = vld [vmem:[%s5179 + $0x40] sm:$0xff]
                %5208 = vst [vmem:[%s5180 + $0x40] sm:$0xff] %v5207
                %v5209 = vld [vmem:[%s5179 + $0x5c] sm:$0xff]
                %5210 = vst [vmem:[%s5180 + $0x5c] sm:$0xff] %v5209
                %v5211 = vld [vmem:[%s5179 + $0x78] sm:$0xff]
                %5212 = vst [vmem:[%s5180 + $0x78] sm:$0xff] %v5211
                %v5213 = vld [vmem:[%s5179 + $0x94] sm:$0xff]
                %5214 = vst [vmem:[%s5180 + $0x94] sm:$0xff] %v5213
                %v5215 = vld [vmem:[%s5179 + $0xb0] sm:$0xff]
                %5216 = vst [vmem:[%s5180 + $0xb0] sm:$0xff] %v5215
                %v5217 = vld [vmem:[%s5179 + $0xcc] sm:$0xff]
                %5218 = vst [vmem:[%s5180 + $0xcc] sm:$0xff] %v5217
                %v5219 = vld [vmem:[%s5179 + $0xe8] sm:$0xff]
                %5220 = vst [vmem:[%s5180 + $0xe8] sm:$0xff] %v5219
                %v5221 = vld [vmem:[%s5179 + $0x104] sm:$0xff]
                %5222 = vst [vmem:[%s5180 + $0x104] sm:$0xff] %v5221
                %v5223 = vld [vmem:[%s5179 + $0x120] sm:$0xff]
                %5224 = vst [vmem:[%s5180 + $0x120] sm:$0xff] %v5223
                %v5225 = vld [vmem:[%s5179 + $0x10] sm:$0xff]
                %5226 = vst [vmem:[%s5180 + $0x10] sm:$0xff] %v5225
                %v5227 = vld [vmem:[%s5179 + $0x2c] sm:$0xff]
                %5228 = vst [vmem:[%s5180 + $0x2c] sm:$0xff] %v5227
                %v5229 = vld [vmem:[%s5179 + $0x48] sm:$0xff]
                %5230 = vst [vmem:[%s5180 + $0x48] sm:$0xff] %v5229
                %v5231 = vld [vmem:[%s5179 + $0x64] sm:$0xff]
                %5232 = vst [vmem:[%s5180 + $0x64] sm:$0xff] %v5231
                %v5233 = vld [vmem:[%s5179 + $0x80] sm:$0xff]
                %5234 = vst [vmem:[%s5180 + $0x80] sm:$0xff] %v5233
                %v5235 = vld [vmem:[%s5179 + $0x9c] sm:$0xff]
                %5236 = vst [vmem:[%s5180 + $0x9c] sm:$0xff] %v5235
                %v5237 = vld [vmem:[%s5179 + $0xb8] sm:$0xff]
                %5238 = vst [vmem:[%s5180 + $0xb8] sm:$0xff] %v5237
                %v5239 = vld [vmem:[%s5179 + $0xd4] sm:$0xff]
                %5240 = vst [vmem:[%s5180 + $0xd4] sm:$0xff] %v5239
                %v5241 = vld [vmem:[%s5179 + $0xf0] sm:$0xff]
                %5242 = vst [vmem:[%s5180 + $0xf0] sm:$0xff] %v5241
                %v5243 = vld [vmem:[%s5179 + $0x10c] sm:$0xff]
                %5244 = vst [vmem:[%s5180 + $0x10c] sm:$0xff] %v5243
                %v5245 = vld [vmem:[%s5179 + $0x128] sm:$0xff]
                %5246 = vst [vmem:[%s5180 + $0x128] sm:$0xff] %v5245
                %s5247 = sadd.s32 1, %s5178
                %p5248 = scmp.ge.s32.totalorder %s5247, %s5170
                %s5249 = scalar_select %p5248, 0, %s5247
                %s5250 = smul.u32 %s5249, 308
                %s5251 = smul.u32 %s5249, 308
                %s5252 = scalar_lea.vmem %s5149, %s5250 [#allocation2]
                %s5253 = scalar_lea.vmem %s5162, %s5251
              $region89: #{autoencoder_forward.1} parent=83 // loop_footer
                %s5175 = sadd.s32 %s5173, 1
              $region90: #{autoencoder_forward.1} parent=83 // loop_footer_branch
                %5172 = sbr.rel target = $region86
              $region91: #{autoencoder_forward.1} parent=83 // loop_exit
                _
              %s5254 = sdiv.u32.pop %s5156, 11
              %s5255 = srem.u32.pop %s5156, 11
              %s5256 = smul.u32 %s5254, 11
              %s5257 = smul.u32 28, %s5256
              %s5258 = scalar_lea.vmem %s5149, %s5257 [#allocation2]
              %s5259 = smul.u32 28, %s5256
              %s5260 = scalar_lea.vmem %s5162, %s5259
              // While loop
              $region92: #{autoencoder_forward.1} parent=83 // loop_pre_header
                _
              $region93: #{autoencoder_forward.1} parent=83 // loop_header
                %s5262 = sphi 0, %s5264
                %p5263 = scmp.ge.s32.totalorder %s5262, %s5255
                %s5267 = sphi 0, %s5278
                %s5268 = sphi %s5258, %s5281
                %s5269 = sphi %s5260, %s5282
              $region94: #{autoencoder_forward.1} parent=83 // loop_header_branch
                %5266 = sbr.rel (%p5263) target = $region98
              $region95: #{autoencoder_forward.1} parent=83 // loop_body
                %v5270 = vld [vmem:[%s5268] sm:$0xff]
                %5271 = vst [vmem:[%s5269] sm:$0xff] %v5270
                %v5272 = vld [vmem:[%s5268 + $0x8] sm:$0xff]
                %5273 = vst [vmem:[%s5269 + $0x8] sm:$0xff] %v5272
                %v5274 = vld [vmem:[%s5268 + $0x10] sm:$0xff]
                %5275 = vst [vmem:[%s5269 + $0x10] sm:$0xff] %v5274
                %s5276 = sadd.s32 1, %s5267
                %p5277 = scmp.ge.s32.totalorder %s5276, %s5255
                %s5278 = scalar_select %p5277, 0, %s5276
                %s5279 = smul.u32 %s5278, 28
                %s5280 = smul.u32 %s5278, 28
                %s5281 = scalar_lea.vmem %s5258, %s5279 [#allocation2]
                %s5282 = scalar_lea.vmem %s5260, %s5280
              $region96: #{autoencoder_forward.1} parent=83 // loop_footer
                %s5264 = sadd.s32 %s5262, 1
              $region97: #{autoencoder_forward.1} parent=83 // loop_footer_branch
                %5261 = sbr.rel target = $region93
              $region98: #{autoencoder_forward.1} parent=83 // loop_exit
                _
              %s5284 = ssub.s32 16, 1
              %s5285 = sshrl.u32 %s5156, 5
              // While loop
              $region99: #{autoencoder_forward.1} parent=83 // loop_pre_header
                _
              $region100: #{autoencoder_forward.1} parent=83 // loop_header
                %s5287 = sphi 0, %s5289
                %p5288 = scmp.ge.s32.totalorder %s5287, %s5285
                %s5292 = sphi 0, %s5361
                %s5293 = sphi %s5168, %s5364
                %s5294 = sphi %s5169, %s5365
              $region101: #{autoencoder_forward.1} parent=83 // loop_header_branch
                %5291 = sbr.rel (%p5288) target = $region105
              $region102: #{autoencoder_forward.1} parent=83 // loop_body
                %v5295 = vld [vmem:[%s5293] sm:%s5284]
                %5296 = vst [vmem:[%s5294] sm:%s5284] %v5295
                %v5297 = vld [vmem:[%s5293 + $0x1c] sm:%s5284]
                %5298 = vst [vmem:[%s5294 + $0x1c] sm:%s5284] %v5297
                %v5299 = vld [vmem:[%s5293 + $0x38] sm:%s5284]
                %5300 = vst [vmem:[%s5294 + $0x38] sm:%s5284] %v5299
                %v5301 = vld [vmem:[%s5293 + $0x54] sm:%s5284]
                %5302 = vst [vmem:[%s5294 + $0x54] sm:%s5284] %v5301
                %v5303 = vld [vmem:[%s5293 + $0x70] sm:%s5284]
                %5304 = vst [vmem:[%s5294 + $0x70] sm:%s5284] %v5303
                %v5305 = vld [vmem:[%s5293 + $0x8c] sm:%s5284]
                %5306 = vst [vmem:[%s5294 + $0x8c] sm:%s5284] %v5305
                %v5307 = vld [vmem:[%s5293 + $0xa8] sm:%s5284]
                %5308 = vst [vmem:[%s5294 + $0xa8] sm:%s5284] %v5307
                %v5309 = vld [vmem:[%s5293 + $0xc4] sm:%s5284]
                %5310 = vst [vmem:[%s5294 + $0xc4] sm:%s5284] %v5309
                %v5311 = vld [vmem:[%s5293 + $0xe0] sm:%s5284]
                %5312 = vst [vmem:[%s5294 + $0xe0] sm:%s5284] %v5311
                %v5313 = vld [vmem:[%s5293 + $0xfc] sm:%s5284]
                %5314 = vst [vmem:[%s5294 + $0xfc] sm:%s5284] %v5313
                %v5315 = vld [vmem:[%s5293 + $0x118] sm:%s5284]
                %5316 = vst [vmem:[%s5294 + $0x118] sm:%s5284] %v5315
                %v5317 = vld [vmem:[%s5293 + $0x134] sm:%s5284]
                %5318 = vst [vmem:[%s5294 + $0x134] sm:%s5284] %v5317
                %v5319 = vld [vmem:[%s5293 + $0x150] sm:%s5284]
                %5320 = vst [vmem:[%s5294 + $0x150] sm:%s5284] %v5319
                %v5321 = vld [vmem:[%s5293 + $0x16c] sm:%s5284]
                %5322 = vst [vmem:[%s5294 + $0x16c] sm:%s5284] %v5321
                %v5323 = vld [vmem:[%s5293 + $0x188] sm:%s5284]
                %5324 = vst [vmem:[%s5294 + $0x188] sm:%s5284] %v5323
                %v5325 = vld [vmem:[%s5293 + $0x1a4] sm:%s5284]
                %5326 = vst [vmem:[%s5294 + $0x1a4] sm:%s5284] %v5325
                %v5327 = vld [vmem:[%s5293 + $0x1c0] sm:%s5284]
                %5328 = vst [vmem:[%s5294 + $0x1c0] sm:%s5284] %v5327
                %v5329 = vld [vmem:[%s5293 + $0x1dc] sm:%s5284]
                %5330 = vst [vmem:[%s5294 + $0x1dc] sm:%s5284] %v5329
                %v5331 = vld [vmem:[%s5293 + $0x1f8] sm:%s5284]
                %5332 = vst [vmem:[%s5294 + $0x1f8] sm:%s5284] %v5331
                %v5333 = vld [vmem:[%s5293 + $0x214] sm:%s5284]
                %5334 = vst [vmem:[%s5294 + $0x214] sm:%s5284] %v5333
                %v5335 = vld [vmem:[%s5293 + $0x230] sm:%s5284]
                %5336 = vst [vmem:[%s5294 + $0x230] sm:%s5284] %v5335
                %v5337 = vld [vmem:[%s5293 + $0x24c] sm:%s5284]
                %5338 = vst [vmem:[%s5294 + $0x24c] sm:%s5284] %v5337
                %v5339 = vld [vmem:[%s5293 + $0x268] sm:%s5284]
                %5340 = vst [vmem:[%s5294 + $0x268] sm:%s5284] %v5339
                %v5341 = vld [vmem:[%s5293 + $0x284] sm:%s5284]
                %5342 = vst [vmem:[%s5294 + $0x284] sm:%s5284] %v5341
                %v5343 = vld [vmem:[%s5293 + $0x2a0] sm:%s5284]
                %5344 = vst [vmem:[%s5294 + $0x2a0] sm:%s5284] %v5343
                %v5345 = vld [vmem:[%s5293 + $0x2bc] sm:%s5284]
                %5346 = vst [vmem:[%s5294 + $0x2bc] sm:%s5284] %v5345
                %v5347 = vld [vmem:[%s5293 + $0x2d8] sm:%s5284]
                %5348 = vst [vmem:[%s5294 + $0x2d8] sm:%s5284] %v5347
                %v5349 = vld [vmem:[%s5293 + $0x2f4] sm:%s5284]
                %5350 = vst [vmem:[%s5294 + $0x2f4] sm:%s5284] %v5349
                %v5351 = vld [vmem:[%s5293 + $0x310] sm:%s5284]
                %5352 = vst [vmem:[%s5294 + $0x310] sm:%s5284] %v5351
                %v5353 = vld [vmem:[%s5293 + $0x32c] sm:%s5284]
                %5354 = vst [vmem:[%s5294 + $0x32c] sm:%s5284] %v5353
                %v5355 = vld [vmem:[%s5293 + $0x348] sm:%s5284]
                %5356 = vst [vmem:[%s5294 + $0x348] sm:%s5284] %v5355
                %v5357 = vld [vmem:[%s5293 + $0x364] sm:%s5284]
                %5358 = vst [vmem:[%s5294 + $0x364] sm:%s5284] %v5357
                %s5359 = sadd.s32 1, %s5292
                %p5360 = scmp.ge.s32.totalorder %s5359, %s5285
                %s5361 = scalar_select %p5360, 0, %s5359
                %s5362 = smul.u32 %s5361, 896
                %s5363 = smul.u32 %s5361, 896
                %s5364 = scalar_lea.vmem %s5168, %s5362 [#allocation2]
                %s5365 = scalar_lea.vmem %s5169, %s5363
              $region103: #{autoencoder_forward.1} parent=83 // loop_footer
                %s5289 = sadd.s32 %s5287, 1
              $region104: #{autoencoder_forward.1} parent=83 // loop_footer_branch
                %5286 = sbr.rel target = $region100
              $region105: #{autoencoder_forward.1} parent=83 // loop_exit
                _
              %s5366 = sshrl.u32 %s5156, 5
              %s5367 = sand.u32 %s5156, 31
              %s5368 = smul.u32 %s5366, 32
              %s5369 = smul.u32 28, %s5368
              %s5370 = scalar_lea.vmem %s5168, %s5369 [#allocation2]
              %s5371 = smul.u32 28, %s5368
              %s5372 = scalar_lea.vmem %s5169, %s5371
              // While loop
              $region106: #{autoencoder_forward.1} parent=83 // loop_pre_header
                _
              $region107: #{autoencoder_forward.1} parent=83 // loop_header
                %s5374 = sphi 0, %s5376
                %p5375 = scmp.ge.s32.totalorder %s5374, %s5367
                %s5379 = sphi 0, %s5386
                %s5380 = sphi %s5370, %s5389
                %s5381 = sphi %s5372, %s5390
              $region108: #{autoencoder_forward.1} parent=83 // loop_header_branch
                %5378 = sbr.rel (%p5375) target = $region112
              $region109: #{autoencoder_forward.1} parent=83 // loop_body
                %v5382 = vld [vmem:[%s5380] sm:%s5284]
                %5383 = vst [vmem:[%s5381] sm:%s5284] %v5382
                %s5384 = sadd.s32 1, %s5379
                %p5385 = scmp.ge.s32.totalorder %s5384, %s5367
                %s5386 = scalar_select %p5385, 0, %s5384
                %s5387 = smul.u32 %s5386, 28
                %s5388 = smul.u32 %s5386, 28
                %s5389 = scalar_lea.vmem %s5370, %s5387 [#allocation2]
                %s5390 = scalar_lea.vmem %s5372, %s5388
              $region110: #{autoencoder_forward.1} parent=83 // loop_footer
                %s5376 = sadd.s32 %s5374, 1
              $region111: #{autoencoder_forward.1} parent=83 // loop_footer_branch
                %5373 = sbr.rel target = $region107
              $region112: #{autoencoder_forward.1} parent=83 // loop_exit
                _
            $region84: #{autoencoder_forward.1} parent=79 // pred_fallthru
              _
          $region80: #{autoencoder_forward.1} parent=75 // pred_fallthru
            _
          %5391 = vnop
        $region76: #{autoencoder_forward.1} parent=71 // pred_fallthru
          _
      $region72: #{autoencoder_forward.1} parent=5 // pred_fallthru
        _
      %p5392 = scmp.le.s32.totalorder 2, %s19
      // Predicated region
      $region113: #{autoencoder_forward.1} parent=5 // pred_check
        %p5393 = pneg %p5392
      $region114: #{autoencoder_forward.1} parent=5 // pred_check_branch
        %5395 = sbr.rel (%p5393) target = $region116
      $region115: #{autoencoder_forward.1} parent=5 // pred_region
        %s5396 = ssub.s32 %s19, 2
        // Predicated region
        $region117: #{autoencoder_forward.1} parent=115 // pred_check
          %p5397 = pneg %p326
        $region118: #{autoencoder_forward.1} parent=115 // pred_check_branch
          %5399 = sbr.rel (%p5397) target = $region120
        $region119: #{autoencoder_forward.1} parent=115 // pred_region
          %s5400 = sand.u32 %s311, 1
          %s5401 = sand.u32 %s311, 1
          %s5402 = smul.addr %s5401, 896
          %s5403 = scalar_lea.vmem [#allocation2], %s5402
        $region120: #{autoencoder_forward.1} parent=115 // pred_fallthru
          _
      $region116: #{autoencoder_forward.1} parent=5 // pred_fallthru
        _
    $region6: #{autoencoder_forward.1} parent=1 // loop_footer
      %s23 = sadd.s32 1, %s19
    $region7: #{autoencoder_forward.1} parent=1 // loop_footer_branch
      %18 = sbr.rel target = $region3
    $region8: #{autoencoder_forward.1} parent=1 // loop_exit
      _

</llo_original>
